<compile_context>
chip_gen: v7x
topology: tpu7x:2x2x1
jax: 0.10.0
libtpu: 0.0.40
codegen_flags: <defaults>
</compile_context>

<pallas_src>
import functools

import jax
import jax.numpy as jnp
from jax.experimental import pallas as pl
from jax.experimental.pallas import tpu as pltpu


def _round_up(x, m):
    return (x + m - 1) // m * m


# ----------------------------------------------------------------------------
# Kernel 1: conv1 (5x5, stride 2) as an M-tiled im2col GEMM.
# BN scale already folded into the weights; epilogue = +bias, ReLU (f32).
# ----------------------------------------------------------------------------
def _conv1_kernel(x_ref, w_ref, b_ref, o_ref):
    acc = jnp.dot(x_ref[...], w_ref[...], preferred_element_type=jnp.float32)
    o_ref[...] = jnp.maximum(acc + b_ref[...], 0.0).astype(o_ref.dtype)


def conv1_5x5_s2(x_nhwc, w_oihw, scale, bias):
    """Conv2d(3->32, k=5, s=2, p=2, bias=False) + folded BN + ReLU. NHWC in/out (bf16 out)."""
    N, H, W, Cin = x_nhwc.shape
    Cout, Cin_w, kh, kw = w_oihw.shape
    assert (Cin, kh, kw) == (Cin_w, 5, 5)
    stride, pad = 2, 2
    Ho = (H + 2 * pad - kh) // stride + 1
    Wo = (W + 2 * pad - kw) // stride + 1

    # NOTE: JAX-side im2col replicates the input kh*kw = 25x in HBM.  Fine for
    # the small inputs used here; production-sized images should gather
    # in-kernel (strided reads) instead to avoid the 25x HBM traffic.
    x_pad = jnp.pad(x_nhwc, ((0, 0), (pad, pad), (pad, pad), (0, 0)))
    patches = [x_pad[:, i:i + stride * Ho:stride, j:j + stride * Wo:stride, :]
               for i in range(kh) for j in range(kw)]
    patches = jnp.concatenate(patches, axis=-1)            # (N, Ho, Wo, 25*Cin)

    M = N * Ho * Wo
    K = kh * kw * Cin
    Kp = _round_up(K, 128)                                 # lane-dense K (75 -> 128)
    tm = min(256, _round_up(M, 8))
    Mp = _round_up(M, tm)

    x2d = patches.reshape(M, K)
    x2d = jnp.pad(x2d, ((0, Mp - M), (0, Kp - K))).astype(jnp.bfloat16)

    # (Cout, Cin, kh, kw) -> (kh, kw, Cin, Cout) -> (K, Cout); fold BN scale in.
    w2d = jnp.transpose(w_oihw * scale[:, None, None, None],
                        (2, 3, 1, 0)).reshape(K, Cout)
    w2d = jnp.pad(w2d, ((0, Kp - K), (0, 0))).astype(jnp.bfloat16)
    b2d = bias.reshape(1, Cout).astype(jnp.float32)

    out2d = pl.pallas_call(
        _conv1_kernel,
        out_shape=jax.ShapeDtypeStruct((Mp, Cout), jnp.bfloat16),
        grid=(Mp // tm,),
        in_specs=[
            pl.BlockSpec((tm, Kp), lambda i: (i, 0)),
            pl.BlockSpec((Kp, Cout), lambda i: (0, 0)),    # resident across tiles
            pl.BlockSpec((1, Cout), lambda i: (0, 0)),     # resident across tiles
        ],
        out_specs=pl.BlockSpec((tm, Cout), lambda i: (i, 0)),
        compiler_params=pltpu.CompilerParams(
            dimension_semantics=("parallel",),
            vmem_limit_bytes=32 * 1024 * 1024),
    )(x2d, w2d, b2d)

    return out2d[:M].reshape(N, Ho, Wo, Cout)


# ----------------------------------------------------------------------------
# Kernel 2: fused conv2 stack (8 residual blocks) + conv3.
#
# One image-GROUP per grid step (G images packed along the lane axis -> G*C
# lanes).  The zero-padded activation lives in a VMEM scratch (flat rows =
# Hp * pitch, pitch padded to a multiple of 8) for all 17 convolutions.  Each
# conv: 9 shifted sublane slices -> lane-concatenated im2col scratch -> one
# K = 9*G*C GEMM with a block-diagonal (9*G*C, G*C) weight -> f32 epilogue
# (bias, ReLU, interior mask) -> bf16 writeback.
# ----------------------------------------------------------------------------
def _stack_kernel(x_ref, w_ref, b_ref, mask_ref, o_ref,
                  act_buf, tmp_buf, col_buf,
                  *, n_blocks, pitch, rows, core_ofs, buf_rows, gc, ho, wo):
    read_base = core_ofs - pitch - 1          # >= 0 by construction (static)
    core_end = core_ofs + rows

    def conv3x3(src_buf, w, b, relu):
        # Implicit im2col: 9 shifted sublane slices of the padded VMEM-resident
        # activation, placed at lane offsets t*gc -> ONE fused-K GEMM.
        for t in range(9):
            di, dj = t // 3, t % 3
            ofs = read_base + di * pitch + dj             # static offsets
            col_buf[:, t * gc:(t + 1) * gc] = src_buf[ofs:ofs + rows, :]
        acc = jnp.dot(col_buf[...], w, preferred_element_type=jnp.float32) + b
        if relu:
            acc = jnp.maximum(acc, 0.0)
        return acc * mask_ref[...]            # keep the padding ring exactly zero

    # Zero only the halo rows (never written; must be NaN-free because the
    # masked-out ring feeds later taps).  Done every step because with a
    # "parallel" grid each TensorCore owns its own scratch instance.
    zhead = jnp.zeros((core_ofs, gc), act_buf.dtype)
    ztail = jnp.zeros((buf_rows - core_end, gc), act_buf.dtype)
    act_buf[0:core_ofs, :] = zhead
    tmp_buf[0:core_ofs, :] = zhead
    act_buf[core_end:buf_rows, :] = ztail
    tmp_buf[core_end:buf_rows, :] = ztail

    # Load this group's padded, lane-packed activation (ring already zero).
    act_buf[core_ofs:core_end, :] = x_ref[0]

    # 8 residual blocks; net2 shares net1's Conv+BN weights (as in reference):
    #   y = relu(bn(conv(x))); y = relu(bn(conv(y))); x = y + x
    @pl.loop(0, n_blocks)
    def _(blk):
        w = w_ref[blk]                        # (9*gc, gc) bf16, resident in VMEM
        b = b_ref[blk]                        # (1, gc)    f32
        tmp_buf[core_ofs:core_end, :] = conv3x3(act_buf, w, b, True).astype(tmp_buf.dtype)
        # Residual read directly from act_buf (RHS evaluated before the store).
        out2 = (conv3x3(tmp_buf, w, b, True)
                + act_buf[core_ofs:core_end, :].astype(jnp.float32))
        act_buf[core_ofs:core_end, :] = out2.astype(act_buf.dtype)

    # conv3: plain 3x3 conv, no BN / bias / ReLU; write interior pixels only.
    out3 = conv3x3(act_buf, w_ref[n_blocks], b_ref[n_blocks], False)
    for h in range(ho):
        src = (h + 1) * pitch + 1
        o_ref[0, h * wo:(h + 1) * wo, :] = out3[src:src + wo, :]


def _pack_stack_weights(block_params, conv3_w, C, G):
    """Per-layer fused 9-tap, G-image block-diagonal weights + packed biases."""
    taps_l, bias_l = [], []
    for blk in block_params:
        s, b = _fold_bn(blk["bn"])
        w_s = blk["w"] * s[:, None, None, None]                  # (Co, Ci, 3, 3)
        taps_l.append(jnp.transpose(w_s, (2, 3, 1, 0)).reshape(9, C, C))
        bias_l.append(jnp.tile(b.reshape(1, C), (1, G)))
    taps_l.append(jnp.transpose(conv3_w, (2, 3, 1, 0)).reshape(9, C, C))
    bias_l.append(jnp.zeros((1, G * C), jnp.float32))
    L = len(taps_l)
    taps = jnp.stack(taps_l)                                     # (L, 9, Ci, Co)
    eye = jnp.eye(G, dtype=taps.dtype)
    # Block-diagonal over the G lane-packed images: row (t, g, ci) -> col (g, co)
    w_bd = jnp.einsum('ltij,gh->ltgihj', taps, eye)
    w_bd = w_bd.reshape(L, 9 * G * C, G * C).astype(jnp.bfloat16)
    b_all = jnp.stack(bias_l).astype(jnp.float32)                # (L, 1, G*C)
    return w_bd, b_all


def resblocks_and_conv3(x_nhwc, block_params, conv3_w):
    N, Ho, Wo, C = x_nhwc.shape
    n_blocks = len(block_params)
    L = n_blocks + 1

    # Lane packing: largest G in {4,2,1} dividing N (G=4 -> fully 128-lane dense).
    G = max(g for g in (4, 2, 1) if N % g == 0)
    Ng = N // G
    GC = G * C

    Hp = Ho + 2
    pitch = _round_up(Wo + 2, 8)              # padded row pitch (sublane-aligned)
    rows = Hp * pitch
    core_ofs = _round_up(pitch + 1, 16)       # 16-aligned for bf16 sublane packing
    buf_rows = _round_up(core_ofs + rows + pitch + 1, 16)

    w_all, b_all = _pack_stack_weights(block_params, conv3_w, C, G)

    # Zero-padded (H and W, plus pitch padding) and lane-packed input:
    # (N, Ho, Wo, C) -> (Ng, Hp*pitch, G*C) bf16.
    xp = jnp.pad(x_nhwc, ((0, 0), (1, 1), (1, pitch - Wo - 1), (0, 0)))
    xf = xp.reshape(N, rows, C).astype(jnp.bfloat16)
    xf = xf.reshape(Ng, G, rows, C).transpose(0, 2, 1, 3).reshape(Ng, rows, GC)

    # Interior-pixel mask (zero on the padding ring and pitch-padding columns).
    mask = jnp.zeros((Hp, pitch), jnp.float32)
    mask = mask.at[1:Ho + 1, 1:Wo + 1].set(1.0).reshape(rows, 1)

    kernel = functools.partial(
        _stack_kernel, n_blocks=n_blocks, pitch=pitch, rows=rows,
        core_ofs=core_ofs, buf_rows=buf_rows, gc=GC, ho=Ho, wo=Wo)

    # TODO(synk): for production-sized H,W add a row-strip tiled variant (1-row
    # halo) so act/tmp/col scratch fits v7x's 64 MiB VMEM and both TCs get work.
    out = pl.pallas_call(
        kernel,
        out_shape=jax.ShapeDtypeStruct((Ng, Ho * Wo, GC), jnp.float32),
        grid=(Ng,),                                          # one image group / step
        in_specs=[
            pl.BlockSpec((1, rows, GC), lambda n: (n, 0, 0)),
            pl.BlockSpec((L, 9 * GC, GC), lambda n: (0, 0, 0)),   # resident weights
            pl.BlockSpec((L, 1, GC), lambda n: (0, 0, 0)),        # resident biases
            pl.BlockSpec((rows, 1), lambda n: (0, 0)),            # resident mask
        ],
        out_specs=pl.BlockSpec((1, Ho * Wo, GC), lambda n: (n, 0, 0)),
        scratch_shapes=[
            pltpu.VMEM((buf_rows, GC), jnp.bfloat16),   # act_buf (padded, haloed)
            pltpu.VMEM((buf_rows, GC), jnp.bfloat16),   # tmp_buf (padded, haloed)
            pltpu.VMEM((rows, 9 * GC), jnp.bfloat16),   # im2col window (fused K)
        ],
        compiler_params=pltpu.CompilerParams(
            dimension_semantics=("parallel",),          # shard groups across TCs
            vmem_limit_bytes=32 * 1024 * 1024),
    )(xf, w_all, b_all, mask)

    # Unpack lanes: (Ng, Ho*Wo, G*C) -> (N, Ho, Wo, C).
    out = out.reshape(Ng, Ho, Wo, G, C).transpose(0, 3, 1, 2, 4)
    return out.reshape(N, Ho, Wo, C)


# ----------------------------------------------------------------------------
# Parameter construction (deterministic, synthetic) and BN folding.
# ----------------------------------------------------------------------------
def _fold_bn(bn, eps=1e-5):
    # Inference-mode BN: y = gamma*(x - mean)/sqrt(var + eps) + beta
    # TODO(synk): training-mode batch statistics are not implemented.
    scale = bn["gamma"] / jnp.sqrt(bn["var"] + eps)
    bias = bn["beta"] - bn["mean"] * scale
    return scale, bias


def _init_bn(key, c):
    k1, k2, k3, k4 = jax.random.split(key, 4)
    return {
        "gamma": 1.0 + 0.1 * jax.random.normal(k1, (c,), jnp.float32),
        "beta": 0.1 * jax.random.normal(k2, (c,), jnp.float32),
        "mean": 0.1 * jax.random.normal(k3, (c,), jnp.float32),
        "var": 0.5 + jnp.abs(jax.random.normal(k4, (c,), jnp.float32)),
    }


def init_params(key):
    keys = jax.random.split(key, 2 + 2 * 8 + 1)
    params = {}
    # conv1: Conv2dBn(3 -> 32, k=5, s=2, p=2) + BN + ReLU
    params["conv1_w"] = 0.1 * jax.random.normal(keys[0], (32, 3, 5, 5), jnp.float32)
    params["bn1"] = _init_bn(keys[1], 32)
    # conv2: 8 ResidualBlocks; each block shares ONE Conv2dBn (net2 = net1).
    blocks = []
    for b in range(8):
        kw_, kb_ = keys[2 + 2 * b], keys[3 + 2 * b]
        blocks.append({
            "w": 0.05 * jax.random.normal(kw_, (32, 32, 3, 3), jnp.float32),
            "bn": _init_bn(kb_, 32),
        })
    params["blocks"] = blocks
    # conv3: plain Conv2d(32 -> 32, k=3, s=1, p=1, bias=False), no BN, no ReLU.
    params["conv3_w"] = 0.05 * jax.random.normal(keys[-1], (32, 32, 3, 3), jnp.float32)
    return params


# ----------------------------------------------------------------------------
# CostNet forward (input/output NCHW, matching the PyTorch module).
# ----------------------------------------------------------------------------
def costnet_forward(x_nchw, params):
    x = jnp.transpose(x_nchw, (0, 2, 3, 1))            # NCHW -> NHWC
    s, b = _fold_bn(params["bn1"])
    x = conv1_5x5_s2(x, params["conv1_w"], s, b)       # conv1 + BN + ReLU (bf16)
    x = resblocks_and_conv3(x, params["blocks"], params["conv3_w"])  # fused stack
    return jnp.transpose(x, (0, 3, 1, 2))              # NHWC -> NCHW


if __name__ == "__main__":
    key = jax.random.PRNGKey(0)
    k_params, k_x = jax.random.split(key)
    params = init_params(k_params)

    # Small input consistent with the module: NCHW, 3 input channels.
    x = jax.random.normal(k_x, (2, 3, 16, 16), jnp.float32)

    fwd = jax.jit(costnet_forward)
    out = jax.block_until_ready(fwd(x, params))

    assert out.shape == (2, 32, 8, 8), out.shape
    assert bool(jnp.all(jnp.isfinite(out)))
    print("KERNEL_OK")
</pallas_src>

<mosaic_0001>
module attributes {stable_mosaic.version = 11 : i64} {
  func.func @_conv1_kernel(%arg0: i32, %arg1: memref<128x128xbf16, #tpu.memory_space<vmem>>, %arg2: memref<128x32xbf16, #tpu.memory_space<vmem>>, %arg3: memref<1x32xf32, #tpu.memory_space<vmem>>, %arg4: memref<128x32xbf16, #tpu.memory_space<vmem>>) attributes {dimension_semantics = [#tpu.dimension_semantics<parallel>], iteration_bounds = array<i64: 1>, scalar_prefetch = 0 : i64, scratch_operands = 0 : i64, tpu.core_type = #tpu.core_type<tc>, window_params = [{transform_indices = @transform_0, window_bounds = array<i64: 128, 128>}, {pipeline_mode = #tpu.pipeline_mode<synchronous>, transform_indices = @transform_1, window_bounds = array<i64: 128, 32>}, {pipeline_mode = #tpu.pipeline_mode<synchronous>, transform_indices = @transform_2, window_bounds = array<i64: 1, 32>}, {transform_indices = @transform_3, window_bounds = array<i64: 128, 32>}]} {
    %c0 = arith.constant 0 : index
    %c0_0 = arith.constant 0 : index
    %0 = vector.load %arg1[%c0, %c0_0] : memref<128x128xbf16, #tpu.memory_space<vmem>>, vector<128x128xbf16>
    %c0_1 = arith.constant 0 : index
    %c0_2 = arith.constant 0 : index
    %1 = vector.load %arg2[%c0_1, %c0_2] : memref<128x32xbf16, #tpu.memory_space<vmem>>, vector<128x32xbf16>
    %cst = arith.constant dense<0.000000e+00> : vector<128x32xf32>
    %2 = tpu.matmul %0, %1, %cst {dimension_numbers = #tpu.dot_dimension_numbers<[1], [0], [0], [1], [0, 0, 1, 1], [], []>} : vector<128x128xbf16>, vector<128x32xbf16>, vector<128x32xf32> -> vector<128x32xf32>
    %c0_3 = arith.constant 0 : index
    %c0_4 = arith.constant 0 : index
    %3 = vector.load %arg3[%c0_3, %c0_4] : memref<1x32xf32, #tpu.memory_space<vmem>>, vector<1x32xf32>
    %4 = vector.broadcast %3 : vector<1x32xf32> to vector<128x32xf32>
    %5 = arith.addf %2, %4 : vector<128x32xf32>
    %cst_5 = arith.constant 0.000000e+00 : f32
    %6 = vector.broadcast %cst_5 : f32 to vector<128x32xf32>
    %7 = arith.maximumf %5, %6 : vector<128x32xf32>
    %8 = arith.truncf %7 : vector<128x32xf32> to vector<128x32xbf16>
    %c0_6 = arith.constant 0 : index
    %c0_7 = arith.constant 0 : index
    %9 = vector.load %arg4[%c0_6, %c0_7] : memref<128x32xbf16, #tpu.memory_space<vmem>>, vector<128x32xbf16>
    tpu.vector_store %arg4[%c0_6, %c0_7], %8 {strides = array<i32>} : memref<128x32xbf16, #tpu.memory_space<vmem>>, vector<128x32xbf16>,
    return
  }
  func.func @transform_0(%arg0: i32) -> (i32, i32) {
    %c0_i32 = arith.constant 0 : i32
    %c0_i32_0 = arith.constant 0 : i32
    return %arg0, %c0_i32 : i32, i32
  }
  func.func @transform_1(%arg0: i32) -> (i32, i32) {
    %c0_i32 = arith.constant 0 : i32
    %c0_i32_0 = arith.constant 0 : i32
    %c0_i32_1 = arith.constant 0 : i32
    return %c0_i32, %c0_i32_0 : i32, i32
  }
  func.func @transform_2(%arg0: i32) -> (i32, i32) {
    %c0_i32 = arith.constant 0 : i32
    %c0_i32_0 = arith.constant 0 : i32
    %c0_i32_1 = arith.constant 0 : i32
    return %c0_i32, %c0_i32_0 : i32, i32
  }
  func.func @transform_3(%arg0: i32) -> (i32, i32) {
    %c0_i32 = arith.constant 0 : i32
    %c0_i32_0 = arith.constant 0 : i32
    return %arg0, %c0_i32 : i32, i32
  }
}

module attributes {stable_mosaic.version = 11 : i64} {
  func.func @_stack_kernel(%arg0: i32, %arg1: memref<1x160x64xbf16, #tpu.memory_space<vmem>>, %arg2: memref<9x576x64xbf16, #tpu.memory_space<vmem>>, %arg3: memref<9x1x64xf32, #tpu.memory_space<vmem>>, %arg4: memref<160x1xf32, #tpu.memory_space<vmem>>, %arg5: memref<1x64x64xf32, #tpu.memory_space<vmem>>, %arg6: memref<224x64xbf16, #tpu.memory_space<vmem>>, %arg7: memref<224x64xbf16, #tpu.memory_space<vmem>>, %arg8: memref<160x576xbf16, #tpu.memory_space<vmem>>) attributes {dimension_semantics = [#tpu.dimension_semantics<parallel>], iteration_bounds = array<i64: 1>, scalar_prefetch = 0 : i64, scratch_operands = 3 : i64, tpu.core_type = #tpu.core_type<tc>, window_params = [{transform_indices = @transform_0, window_bounds = array<i64: 1, 160, 64>}, {pipeline_mode = #tpu.pipeline_mode<synchronous>, transform_indices = @transform_1, window_bounds = array<i64: 9, 576, 64>}, {pipeline_mode = #tpu.pipeline_mode<synchronous>, transform_indices = @transform_2, window_bounds = array<i64: 9, 1, 64>}, {pipeline_mode = #tpu.pipeline_mode<synchronous>, transform_indices = @transform_3, window_bounds = array<i64: 160, 1>}, {transform_indices = @transform_4, window_bounds = array<i64: 1, 64, 64>}]} {
    %cst = arith.constant 0.000000e+00 : bf16
    %0 = vector.broadcast %cst : bf16 to vector<32x64xbf16>
    %cst_0 = arith.constant 0.000000e+00 : bf16
    %1 = vector.broadcast %cst_0 : bf16 to vector<32x64xbf16>
    %c0 = arith.constant 0 : index
    %c0_1 = arith.constant 0 : index
    %2 = vector.load %arg6[%c0, %c0_1] : memref<224x64xbf16, #tpu.memory_space<vmem>>, vector<32x64xbf16>
    tpu.vector_store %arg6[%c0, %c0_1], %0 {strides = array<i32>} : memref<224x64xbf16, #tpu.memory_space<vmem>>, vector<32x64xbf16>,
    %c0_2 = arith.constant 0 : index
    %c0_3 = arith.constant 0 : index
    %3 = vector.load %arg7[%c0_2, %c0_3] : memref<224x64xbf16, #tpu.memory_space<vmem>>, vector<32x64xbf16>
    tpu.vector_store %arg7[%c0_2, %c0_3], %0 {strides = array<i32>} : memref<224x64xbf16, #tpu.memory_space<vmem>>, vector<32x64xbf16>,
    %c192 = arith.constant 192 : index
    %c0_4 = arith.constant 0 : index
    %4 = vector.load %arg6[%c192, %c0_4] : memref<224x64xbf16, #tpu.memory_space<vmem>>, vector<32x64xbf16>
    tpu.vector_store %arg6[%c192, %c0_4], %1 {strides = array<i32>} : memref<224x64xbf16, #tpu.memory_space<vmem>>, vector<32x64xbf16>,
    %c192_5 = arith.constant 192 : index
    %c0_6 = arith.constant 0 : index
    %5 = vector.load %arg7[%c192_5, %c0_6] : memref<224x64xbf16, #tpu.memory_space<vmem>>, vector<32x64xbf16>
    tpu.vector_store %arg7[%c192_5, %c0_6], %1 {strides = array<i32>} : memref<224x64xbf16, #tpu.memory_space<vmem>>, vector<32x64xbf16>,
    %c0_7 = arith.constant 0 : index
    %c0_8 = arith.constant 0 : index
    %c0_9 = arith.constant 0 : index
    %6 = vector.load %arg1[%c0_7, %c0_8, %c0_9] : memref<1x160x64xbf16, #tpu.memory_space<vmem>>, vector<1x160x64xbf16>
    %7 = vector.shape_cast %6 : vector<1x160x64xbf16> to vector<160x64xbf16>
    %c32 = arith.constant 32 : index
    %c0_10 = arith.constant 0 : index
    %8 = vector.load %arg6[%c32, %c0_10] : memref<224x64xbf16, #tpu.memory_space<vmem>>, vector<160x64xbf16>
    tpu.vector_store %arg6[%c32, %c0_10], %7 {strides = array<i32>} : memref<224x64xbf16, #tpu.memory_space<vmem>>, vector<160x64xbf16>,
    %c0_i32 = arith.constant 0 : i32
    %c8_i32 = arith.constant 8 : i32
    %9 = arith.addi %c0_i32, %c8_i32 : i32
    %c1_i32 = arith.constant 1 : i32
    scf.for %arg9 = %c0_i32 to %9 step %c1_i32  : i32 {
      %c1_i32_64 = arith.constant 1 : i32
      %71 = arith.muli %arg9, %c1_i32_64 : i32
      %c0_i32_65 = arith.constant 0 : i32
      %72 = arith.addi %c0_i32_65, %71 : i32
      %73 = arith.index_cast %72 : i32 to index
      %c0_66 = arith.constant 0 : index
      %c0_67 = arith.constant 0 : index
      %74 = vector.load %arg2[%73, %c0_66, %c0_67] : memref<9x576x64xbf16, #tpu.memory_space<vmem>>, vector<1x576x64xbf16>
      %75 = vector.shape_cast %74 : vector<1x576x64xbf16> to vector<576x64xbf16>
      %76 = arith.index_cast %72 : i32 to index
      %c0_68 = arith.constant 0 : index
      %c0_69 = arith.constant 0 : index
      %77 = vector.load %arg3[%76, %c0_68, %c0_69] : memref<9x1x64xf32, #tpu.memory_space<vmem>>, vector<1x1x64xf32>
      %78 = vector.shape_cast %77 : vector<1x1x64xf32> to vector<1x64xf32>
      %c15_70 = arith.constant 15 : index
      %c0_71 = arith.constant 0 : index
      %79 = vector.load %arg6[%c15_70, %c0_71] : memref<224x64xbf16, #tpu.memory_space<vmem>>, vector<160x64xbf16>
      %c0_72 = arith.constant 0 : index
      %c0_73 = arith.constant 0 : index
      %80 = vector.load %arg8[%c0_72, %c0_73] : memref<160x576xbf16, #tpu.memory_space<vmem>>, vector<160x64xbf16>
      tpu.vector_store %arg8[%c0_72, %c0_73], %79 {strides = array<i32>} : memref<160x576xbf16, #tpu.memory_space<vmem>>, vector<160x64xbf16>,
      %c16_74 = arith.constant 16 : index
      %c0_75 = arith.constant 0 : index
      %81 = vector.load %arg6[%c16_74, %c0_75] : memref<224x64xbf16, #tpu.memory_space<vmem>>, vector<160x64xbf16>
      %c0_76 = arith.constant 0 : index
      %c64_77 = arith.constant 64 : index
      %82 = vector.load %arg8[%c0_76, %c64_77] : memref<160x576xbf16, #tpu.memory_space<vmem>>, vector<160x64xbf16>
      tpu.vector_store %arg8[%c0_76, %c64_77], %81 {strides = array<i32>} : memref<160x576xbf16, #tpu.memory_space<vmem>>, vector<160x64xbf16>,
      %c17_78 = arith.constant 17 : index
      %c0_79 = arith.constant 0 : index
      %83 = vector.load %arg6[%c17_78, %c0_79] : memref<224x64xbf16, #tpu.memory_space<vmem>>, vector<160x64xbf16>
      %c0_80 = arith.constant 0 : index
      %c128_81 = arith.constant 128 : index
      %84 = vector.load %arg8[%c0_80, %c128_81] : memref<160x576xbf16, #tpu.memory_space<vmem>>, vector<160x64xbf16>
      tpu.vector_store %arg8[%c0_80, %c128_81], %83 {strides = array<i32>} : memref<160x576xbf16, #tpu.memory_space<vmem>>, vector<160x64xbf16>,
      %c31_82 = arith.constant 31 : index
      %c0_83 = arith.constant 0 : index
      %85 = vector.load %arg6[%c31_82, %c0_83] : memref<224x64xbf16, #tpu.memory_space<vmem>>, vector<160x64xbf16>
      %c0_84 = arith.constant 0 : index
      %c192_85 = arith.constant 192 : index
      %86 = vector.load %arg8[%c0_84, %c192_85] : memref<160x576xbf16, #tpu.memory_space<vmem>>, vector<160x64xbf16>
      tpu.vector_store %arg8[%c0_84, %c192_85], %85 {strides = array<i32>} : memref<160x576xbf16, #tpu.memory_space<vmem>>, vector<160x64xbf16>,
      %c32_86 = arith.constant 32 : index
      %c0_87 = arith.constant 0 : index
      %87 = vector.load %arg6[%c32_86, %c0_87] : memref<224x64xbf16, #tpu.memory_space<vmem>>, vector<160x64xbf16>
      %c0_88 = arith.constant 0 : index
      %c256_89 = arith.constant 256 : index
      %88 = vector.load %arg8[%c0_88, %c256_89] : memref<160x576xbf16, #tpu.memory_space<vmem>>, vector<160x64xbf16>
      tpu.vector_store %arg8[%c0_88, %c256_89], %87 {strides = array<i32>} : memref<160x576xbf16, #tpu.memory_space<vmem>>, vector<160x64xbf16>,
      %c33_90 = arith.constant 33 : index
      %c0_91 = arith.constant 0 : index
      %89 = vector.load %arg6[%c33_90, %c0_91] : memref<224x64xbf16, #tpu.memory_space<vmem>>, vector<160x64xbf16>
      %c0_92 = arith.constant 0 : index
      %c320_93 = arith.constant 320 : index
      %90 = vector.load %arg8[%c0_92, %c320_93] : memref<160x576xbf16, #tpu.memory_space<vmem>>, vector<160x64xbf16>
      tpu.vector_store %arg8[%c0_92, %c320_93], %89 {strides = array<i32>} : memref<160x576xbf16, #tpu.memory_space<vmem>>, vector<160x64xbf16>,
      %c47_94 = arith.constant 47 : index
      %c0_95 = arith.constant 0 : index
      %91 = vector.load %arg6[%c47_94, %c0_95] : memref<224x64xbf16, #tpu.memory_space<vmem>>, vector<160x64xbf16>
      %c0_96 = arith.constant 0 : index
      %c384_97 = arith.constant 384 : index
      %92 = vector.load %arg8[%c0_96, %c384_97] : memref<160x576xbf16, #tpu.memory_space<vmem>>, vector<160x64xbf16>
      tpu.vector_store %arg8[%c0_96, %c384_97], %91 {strides = array<i32>} : memref<160x576xbf16, #tpu.memory_space<vmem>>, vector<160x64xbf16>,
      %c48_98 = arith.constant 48 : index
      %c0_99 = arith.constant 0 : index
      %93 = vector.load %arg6[%c48_98, %c0_99] : memref<224x64xbf16, #tpu.memory_space<vmem>>, vector<160x64xbf16>
      %c0_100 = arith.constant 0 : index
      %c448_101 = arith.constant 448 : index
      %94 = vector.load %arg8[%c0_100, %c448_101] : memref<160x576xbf16, #tpu.memory_space<vmem>>, vector<160x64xbf16>
      tpu.vector_store %arg8[%c0_100, %c448_101], %93 {strides = array<i32>} : memref<160x576xbf16, #tpu.memory_space<vmem>>, vector<160x64xbf16>,
      %c49_102 = arith.constant 49 : index
      %c0_103 = arith.constant 0 : index
      %95 = vector.load %arg6[%c49_102, %c0_103] : memref<224x64xbf16, #tpu.memory_space<vmem>>, vector<160x64xbf16>
      %c0_104 = arith.constant 0 : index
      %c512_105 = arith.constant 512 : index
      %96 = vector.load %arg8[%c0_104, %c512_105] : memref<160x576xbf16, #tpu.memory_space<vmem>>, vector<160x64xbf16>
      tpu.vector_store %arg8[%c0_104, %c512_105], %95 {strides = array<i32>} : memref<160x576xbf16, #tpu.memory_space<vmem>>, vector<160x64xbf16>,
      %c0_106 = arith.constant 0 : index
      %c0_107 = arith.constant 0 : index
      %97 = vector.load %arg8[%c0_106, %c0_107] : memref<160x576xbf16, #tpu.memory_space<vmem>>, vector<160x576xbf16>
      %cst_108 = arith.constant dense<0.000000e+00> : vector<160x64xf32>
      %98 = tpu.matmul %97, %75, %cst_108 {dimension_numbers = #tpu.dot_dimension_numbers<[1], [0], [0], [1], [0, 0, 1, 1], [], []>} : vector<160x576xbf16>, vector<576x64xbf16>, vector<160x64xf32> -> vector<160x64xf32>
      %99 = vector.broadcast %78 : vector<1x64xf32> to vector<160x64xf32>
      %100 = arith.addf %98, %99 : vector<160x64xf32>
      %cst_109 = arith.constant 0.000000e+00 : f32
      %101 = vector.broadcast %cst_109 : f32 to vector<160x64xf32>
      %102 = arith.maximumf %100, %101 : vector<160x64xf32>
      %c0_110 = arith.constant 0 : index
      %c0_111 = arith.constant 0 : index
      %103 = vector.load %arg4[%c0_110, %c0_111] : memref<160x1xf32, #tpu.memory_space<vmem>>, vector<160x1xf32>
      %104 = vector.broadcast %103 : vector<160x1xf32> to vector<160x64xf32>
      %105 = arith.mulf %102, %104 : vector<160x64xf32>
      %106 = arith.truncf %105 : vector<160x64xf32> to vector<160x64xbf16>
      %c32_112 = arith.constant 32 : index
      %c0_113 = arith.constant 0 : index
      %107 = vector.load %arg7[%c32_112, %c0_113] : memref<224x64xbf16, #tpu.memory_space<vmem>>, vector<160x64xbf16>
      tpu.vector_store %arg7[%c32_112, %c0_113], %106 {strides = array<i32>} : memref<224x64xbf16, #tpu.memory_space<vmem>>, vector<160x64xbf16>,
      %c15_114 = arith.constant 15 : index
      %c0_115 = arith.constant 0 : index
      %108 = vector.load %arg7[%c15_114, %c0_115] : memref<224x64xbf16, #tpu.memory_space<vmem>>, vector<160x64xbf16>
      %c0_116 = arith.constant 0 : index
      %c0_117 = arith.constant 0 : index
      %109 = vector.load %arg8[%c0_116, %c0_117] : memref<160x576xbf16, #tpu.memory_space<vmem>>, vector<160x64xbf16>
      tpu.vector_store %arg8[%c0_116, %c0_117], %108 {strides = array<i32>} : memref<160x576xbf16, #tpu.memory_space<vmem>>, vector<160x64xbf16>,
      %c16_118 = arith.constant 16 : index
      %c0_119 = arith.constant 0 : index
      %110 = vector.load %arg7[%c16_118, %c0_119] : memref<224x64xbf16, #tpu.memory_space<vmem>>, vector<160x64xbf16>
      %c0_120 = arith.constant 0 : index
      %c64_121 = arith.constant 64 : index
      %111 = vector.load %arg8[%c0_120, %c64_121] : memref<160x576xbf16, #tpu.memory_space<vmem>>, vector<160x64xbf16>
      tpu.vector_store %arg8[%c0_120, %c64_121], %110 {strides = array<i32>} : memref<160x576xbf16, #tpu.memory_space<vmem>>, vector<160x64xbf16>,
      %c17_122 = arith.constant 17 : index
      %c0_123 = arith.constant 0 : index
      %112 = vector.load %arg7[%c17_122, %c0_123] : memref<224x64xbf16, #tpu.memory_space<vmem>>, vector<160x64xbf16>
      %c0_124 = arith.constant 0 : index
      %c128_125 = arith.constant 128 : index
      %113 = vector.load %arg8[%c0_124, %c128_125] : memref<160x576xbf16, #tpu.memory_space<vmem>>, vector<160x64xbf16>
      tpu.vector_store %arg8[%c0_124, %c128_125], %112 {strides = array<i32>} : memref<160x576xbf16, #tpu.memory_space<vmem>>, vector<160x64xbf16>,
      %c31_126 = arith.constant 31 : index
      %c0_127 = arith.constant 0 : index
      %114 = vector.load %arg7[%c31_126, %c0_127] : memref<224x64xbf16, #tpu.memory_space<vmem>>, vector<160x64xbf16>
      %c0_128 = arith.constant 0 : index
      %c192_129 = arith.constant 192 : index
      %115 = vector.load %arg8[%c0_128, %c192_129] : memref<160x576xbf16, #tpu.memory_space<vmem>>, vector<160x64xbf16>
      tpu.vector_store %arg8[%c0_128, %c192_129], %114 {strides = array<i32>} : memref<160x576xbf16, #tpu.memory_space<vmem>>, vector<160x64xbf16>,
      %c32_130 = arith.constant 32 : index
      %c0_131 = arith.constant 0 : index
      %116 = vector.load %arg7[%c32_130, %c0_131] : memref<224x64xbf16, #tpu.memory_space<vmem>>, vector<160x64xbf16>
      %c0_132 = arith.constant 0 : index
      %c256_133 = arith.constant 256 : index
      %117 = vector.load %arg8[%c0_132, %c256_133] : memref<160x576xbf16, #tpu.memory_space<vmem>>, vector<160x64xbf16>
      tpu.vector_store %arg8[%c0_132, %c256_133], %116 {strides = array<i32>} : memref<160x576xbf16, #tpu.memory_space<vmem>>, vector<160x64xbf16>,
      %c33_134 = arith.constant 33 : index
      %c0_135 = arith.constant 0 : index
      %118 = vector.load %arg7[%c33_134, %c0_135] : memref<224x64xbf16, #tpu.memory_space<vmem>>, vector<160x64xbf16>
      %c0_136 = arith.constant 0 : index
      %c320_137 = arith.constant 320 : index
      %119 = vector.load %arg8[%c0_136, %c320_137] : memref<160x576xbf16, #tpu.memory_space<vmem>>, vector<160x64xbf16>
      tpu.vector_store %arg8[%c0_136, %c320_137], %118 {strides = array<i32>} : memref<160x576xbf16, #tpu.memory_space<vmem>>, vector<160x64xbf16>,
      %c47_138 = arith.constant 47 : index
      %c0_139 = arith.constant 0 : index
      %120 = vector.load %arg7[%c47_138, %c0_139] : memref<224x64xbf16, #tpu.memory_space<vmem>>, vector<160x64xbf16>
      %c0_140 = arith.constant 0 : index
      %c384_141 = arith.constant 384 : index
      %121 = vector.load %arg8[%c0_140, %c384_141] : memref<160x576xbf16, #tpu.memory_space<vmem>>, vector<160x64xbf16>
      tpu.vector_store %arg8[%c0_140, %c384_141], %120 {strides = array<i32>} : memref<160x576xbf16, #tpu.memory_space<vmem>>, vector<160x64xbf16>,
      %c48_142 = arith.constant 48 : index
      %c0_143 = arith.constant 0 : index
      %122 = vector.load %arg7[%c48_142, %c0_143] : memref<224x64xbf16, #tpu.memory_space<vmem>>, vector<160x64xbf16>
      %c0_144 = arith.constant 0 : index
      %c448_145 = arith.constant 448 : index
      %123 = vector.load %arg8[%c0_144, %c448_145] : memref<160x576xbf16, #tpu.memory_space<vmem>>, vector<160x64xbf16>
      tpu.vector_store %arg8[%c0_144, %c448_145], %122 {strides = array<i32>} : memref<160x576xbf16, #tpu.memory_space<vmem>>, vector<160x64xbf16>,
      %c49_146 = arith.constant 49 : index
      %c0_147 = arith.constant 0 : index
      %124 = vector.load %arg7[%c49_146, %c0_147] : memref<224x64xbf16, #tpu.memory_space<vmem>>, vector<160x64xbf16>
      %c0_148 = arith.constant 0 : index
      %c512_149 = arith.constant 512 : index
      %125 = vector.load %arg8[%c0_148, %c512_149] : memref<160x576xbf16, #tpu.memory_space<vmem>>, vector<160x64xbf16>
      tpu.vector_store %arg8[%c0_148, %c512_149], %124 {strides = array<i32>} : memref<160x576xbf16, #tpu.memory_space<vmem>>, vector<160x64xbf16>,
      %c0_150 = arith.constant 0 : index
      %c0_151 = arith.constant 0 : index
      %126 = vector.load %arg8[%c0_150, %c0_151] : memref<160x576xbf16, #tpu.memory_space<vmem>>, vector<160x576xbf16>
      %cst_152 = arith.constant dense<0.000000e+00> : vector<160x64xf32>
      %127 = tpu.matmul %126, %75, %cst_152 {dimension_numbers = #tpu.dot_dimension_numbers<[1], [0], [0], [1], [0, 0, 1, 1], [], []>} : vector<160x576xbf16>, vector<576x64xbf16>, vector<160x64xf32> -> vector<160x64xf32>
      %128 = vector.broadcast %78 : vector<1x64xf32> to vector<160x64xf32>
      %129 = arith.addf %127, %128 : vector<160x64xf32>
      %cst_153 = arith.constant 0.000000e+00 : f32
      %130 = vector.broadcast %cst_153 : f32 to vector<160x64xf32>
      %131 = arith.maximumf %129, %130 : vector<160x64xf32>
      %c0_154 = arith.constant 0 : index
      %c0_155 = arith.constant 0 : index
      %132 = vector.load %arg4[%c0_154, %c0_155] : memref<160x1xf32, #tpu.memory_space<vmem>>, vector<160x1xf32>
      %133 = vector.broadcast %132 : vector<160x1xf32> to vector<160x64xf32>
      %134 = arith.mulf %131, %133 : vector<160x64xf32>
      %c32_156 = arith.constant 32 : index
      %c0_157 = arith.constant 0 : index
      %135 = vector.load %arg6[%c32_156, %c0_157] : memref<224x64xbf16, #tpu.memory_space<vmem>>, vector<160x64xbf16>
      %136 = arith.extf %135 : vector<160x64xbf16> to vector<160x64xf32>
      %137 = arith.addf %134, %136 : vector<160x64xf32>
      %138 = arith.truncf %137 : vector<160x64xf32> to vector<160x64xbf16>
      %c32_158 = arith.constant 32 : index
      %c0_159 = arith.constant 0 : index
      %139 = vector.load %arg6[%c32_158, %c0_159] : memref<224x64xbf16, #tpu.memory_space<vmem>>, vector<160x64xbf16>
      tpu.vector_store %arg6[%c32_158, %c0_159], %138 {strides = array<i32>} : memref<224x64xbf16, #tpu.memory_space<vmem>>, vector<160x64xbf16>,
    }
    %c8_i32_11 = arith.constant 8 : i32
    %c8 = arith.constant 8 : index
    %c0_12 = arith.constant 0 : index
    %c0_13 = arith.constant 0 : index
    %10 = vector.load %arg2[%c8, %c0_12, %c0_13] : memref<9x576x64xbf16, #tpu.memory_space<vmem>>, vector<1x576x64xbf16>
    %11 = vector.shape_cast %10 : vector<1x576x64xbf16> to vector<576x64xbf16>
    %c8_14 = arith.constant 8 : index
    %c0_15 = arith.constant 0 : index
    %c0_16 = arith.constant 0 : index
    %12 = vector.load %arg3[%c8_14, %c0_15, %c0_16] : memref<9x1x64xf32, #tpu.memory_space<vmem>>, vector<1x1x64xf32>
    %13 = vector.shape_cast %12 : vector<1x1x64xf32> to vector<1x64xf32>
    %c15 = arith.constant 15 : index
    %c0_17 = arith.constant 0 : index
    %14 = vector.load %arg6[%c15, %c0_17] : memref<224x64xbf16, #tpu.memory_space<vmem>>, vector<160x64xbf16>
    %c0_18 = arith.constant 0 : index
    %c0_19 = arith.constant 0 : index
    %15 = vector.load %arg8[%c0_18, %c0_19] : memref<160x576xbf16, #tpu.memory_space<vmem>>, vector<160x64xbf16>
    tpu.vector_store %arg8[%c0_18, %c0_19], %14 {strides = array<i32>} : memref<160x576xbf16, #tpu.memory_space<vmem>>, vector<160x64xbf16>,
    %c16 = arith.constant 16 : index
    %c0_20 = arith.constant 0 : index
    %16 = vector.load %arg6[%c16, %c0_20] : memref<224x64xbf16, #tpu.memory_space<vmem>>, vector<160x64xbf16>
    %c0_21 = arith.constant 0 : index
    %c64 = arith.constant 64 : index
    %17 = vector.load %arg8[%c0_21, %c64] : memref<160x576xbf16, #tpu.memory_space<vmem>>, vector<160x64xbf16>
    tpu.vector_store %arg8[%c0_21, %c64], %16 {strides = array<i32>} : memref<160x576xbf16, #tpu.memory_space<vmem>>, vector<160x64xbf16>,
    %c17 = arith.constant 17 : index
    %c0_22 = arith.constant 0 : index
    %18 = vector.load %arg6[%c17, %c0_22] : memref<224x64xbf16, #tpu.memory_space<vmem>>, vector<160x64xbf16>
    %c0_23 = arith.constant 0 : index
    %c128 = arith.constant 128 : index
    %19 = vector.load %arg8[%c0_23, %c128] : memref<160x576xbf16, #tpu.memory_space<vmem>>, vector<160x64xbf16>
    tpu.vector_store %arg8[%c0_23, %c128], %18 {strides = array<i32>} : memref<160x576xbf16, #tpu.memory_space<vmem>>, vector<160x64xbf16>,
    %c31 = arith.constant 31 : index
    %c0_24 = arith.constant 0 : index
    %20 = vector.load %arg6[%c31, %c0_24] : memref<224x64xbf16, #tpu.memory_space<vmem>>, vector<160x64xbf16>
    %c0_25 = arith.constant 0 : index
    %c192_26 = arith.constant 192 : index
    %21 = vector.load %arg8[%c0_25, %c192_26] : memref<160x576xbf16, #tpu.memory_space<vmem>>, vector<160x64xbf16>
    tpu.vector_store %arg8[%c0_25, %c192_26], %20 {strides = array<i32>} : memref<160x576xbf16, #tpu.memory_space<vmem>>, vector<160x64xbf16>,
    %c32_27 = arith.constant 32 : index
    %c0_28 = arith.constant 0 : index
    %22 = vector.load %arg6[%c32_27, %c0_28] : memref<224x64xbf16, #tpu.memory_space<vmem>>, vector<160x64xbf16>
    %c0_29 = arith.constant 0 : index
    %c256 = arith.constant 256 : index
    %23 = vector.load %arg8[%c0_29, %c256] : memref<160x576xbf16, #tpu.memory_space<vmem>>, vector<160x64xbf16>
    tpu.vector_store %arg8[%c0_29, %c256], %22 {strides = array<i32>} : memref<160x576xbf16, #tpu.memory_space<vmem>>, vector<160x64xbf16>,
    %c33 = arith.constant 33 : index
    %c0_30 = arith.constant 0 : index
    %24 = vector.load %arg6[%c33, %c0_30] : memref<224x64xbf16, #tpu.memory_space<vmem>>, vector<160x64xbf16>
    %c0_31 = arith.constant 0 : index
    %c320 = arith.constant 320 : index
    %25 = vector.load %arg8[%c0_31, %c320] : memref<160x576xbf16, #tpu.memory_space<vmem>>, vector<160x64xbf16>
    tpu.vector_store %arg8[%c0_31, %c320], %24 {strides = array<i32>} : memref<160x576xbf16, #tpu.memory_space<vmem>>, vector<160x64xbf16>,
    %c47 = arith.constant 47 : index
    %c0_32 = arith.constant 0 : index
    %26 = vector.load %arg6[%c47, %c0_32] : memref<224x64xbf16, #tpu.memory_space<vmem>>, vector<160x64xbf16>
    %c0_33 = arith.constant 0 : index
    %c384 = arith.constant 384 : index
    %27 = vector.load %arg8[%c0_33, %c384] : memref<160x576xbf16, #tpu.memory_space<vmem>>, vector<160x64xbf16>
    tpu.vector_store %arg8[%c0_33, %c384], %26 {strides = array<i32>} : memref<160x576xbf16, #tpu.memory_space<vmem>>, vector<160x64xbf16>,
    %c48 = arith.constant 48 : index
    %c0_34 = arith.constant 0 : index
    %28 = vector.load %arg6[%c48, %c0_34] : memref<224x64xbf16, #tpu.memory_space<vmem>>, vector<160x64xbf16>
    %c0_35 = arith.constant 0 : index
    %c448 = arith.constant 448 : index
    %29 = vector.load %arg8[%c0_35, %c448] : memref<160x576xbf16, #tpu.memory_space<vmem>>, vector<160x64xbf16>
    tpu.vector_store %arg8[%c0_35, %c448], %28 {strides = array<i32>} : memref<160x576xbf16, #tpu.memory_space<vmem>>, vector<160x64xbf16>,
    %c49 = arith.constant 49 : index
    %c0_36 = arith.constant 0 : index
    %30 = vector.load %arg6[%c49, %c0_36] : memref<224x64xbf16, #tpu.memory_space<vmem>>, vector<160x64xbf16>
    %c0_37 = arith.constant 0 : index
    %c512 = arith.constant 512 : index
    %31 = vector.load %arg8[%c0_37, %c512] : memref<160x576xbf16, #tpu.memory_space<vmem>>, vector<160x64xbf16>
    tpu.vector_store %arg8[%c0_37, %c512], %30 {strides = array<i32>} : memref<160x576xbf16, #tpu.memory_space<vmem>>, vector<160x64xbf16>,
    %c0_38 = arith.constant 0 : index
    %c0_39 = arith.constant 0 : index
    %32 = vector.load %arg8[%c0_38, %c0_39] : memref<160x576xbf16, #tpu.memory_space<vmem>>, vector<160x576xbf16>
    %cst_40 = arith.constant dense<0.000000e+00> : vector<160x64xf32>
    %33 = tpu.matmul %32, %11, %cst_40 {dimension_numbers = #tpu.dot_dimension_numbers<[1], [0], [0], [1], [0, 0, 1, 1], [], []>} : vector<160x576xbf16>, vector<576x64xbf16>, vector<160x64xf32> -> vector<160x64xf32>
    %34 = vector.broadcast %13 : vector<1x64xf32> to vector<160x64xf32>
    %35 = arith.addf %33, %34 : vector<160x64xf32>
    %c0_41 = arith.constant 0 : index
    %c0_42 = arith.constant 0 : index
    %36 = vector.load %arg4[%c0_41, %c0_42] : memref<160x1xf32, #tpu.memory_space<vmem>>, vector<160x1xf32>
    %37 = vector.broadcast %36 : vector<160x1xf32> to vector<160x64xf32>
    %38 = arith.mulf %35, %37 : vector<160x64xf32>
    %39 = vector.extract_strided_slice %38 {offsets = [17, 0], sizes = [8, 64], strides = [1, 1]} : vector<160x64xf32> to vector<8x64xf32>
    %c0_43 = arith.constant 0 : index
    %c0_44 = arith.constant 0 : index
    %c0_45 = arith.constant 0 : index
    %40 = vector.load %arg5[%c0_43, %c0_44, %c0_45] : memref<1x64x64xf32, #tpu.memory_space<vmem>>, vector<1x8x64xf32>
    %41 = vector.shape_cast %40 : vector<1x8x64xf32> to vector<8x64xf32>
    %42 = vector.shape_cast %39 : vector<8x64xf32> to vector<1x8x64xf32>
    tpu.vector_store %arg5[%c0_43, %c0_44, %c0_45], %42 {strides = array<i32>} : memref<1x64x64xf32, #tpu.memory_space<vmem>>, vector<1x8x64xf32>,
    %43 = vector.extract_strided_slice %38 {offsets = [33, 0], sizes = [8, 64], strides = [1, 1]} : vector<160x64xf32> to vector<8x64xf32>
    %c0_46 = arith.constant 0 : index
    %c8_47 = arith.constant 8 : index
    %c0_48 = arith.constant 0 : index
    %44 = vector.load %arg5[%c0_46, %c8_47, %c0_48] : memref<1x64x64xf32, #tpu.memory_space<vmem>>, vector<1x8x64xf32>
    %45 = vector.shape_cast %44 : vector<1x8x64xf32> to vector<8x64xf32>
    %46 = vector.shape_cast %43 : vector<8x64xf32> to vector<1x8x64xf32>
    tpu.vector_store %arg5[%c0_46, %c8_47, %c0_48], %46 {strides = array<i32>} : memref<1x64x64xf32, #tpu.memory_space<vmem>>, vector<1x8x64xf32>,
    %47 = vector.extract_strided_slice %38 {offsets = [49, 0], sizes = [8, 64], strides = [1, 1]} : vector<160x64xf32> to vector<8x64xf32>
    %c0_49 = arith.constant 0 : index
    %c16_50 = arith.constant 16 : index
    %c0_51 = arith.constant 0 : index
    %48 = vector.load %arg5[%c0_49, %c16_50, %c0_51] : memref<1x64x64xf32, #tpu.memory_space<vmem>>, vector<1x8x64xf32>
    %49 = vector.shape_cast %48 : vector<1x8x64xf32> to vector<8x64xf32>
    %50 = vector.shape_cast %47 : vector<8x64xf32> to vector<1x8x64xf32>
    tpu.vector_store %arg5[%c0_49, %c16_50, %c0_51], %50 {strides = array<i32>} : memref<1x64x64xf32, #tpu.memory_space<vmem>>, vector<1x8x64xf32>,
    %51 = vector.extract_strided_slice %38 {offsets = [65, 0], sizes = [8, 64], strides = [1, 1]} : vector<160x64xf32> to vector<8x64xf32>
    %c0_52 = arith.constant 0 : index
    %c24 = arith.constant 24 : index
    %c0_53 = arith.constant 0 : index
    %52 = vector.load %arg5[%c0_52, %c24, %c0_53] : memref<1x64x64xf32, #tpu.memory_space<vmem>>, vector<1x8x64xf32>
    %53 = vector.shape_cast %52 : vector<1x8x64xf32> to vector<8x64xf32>
    %54 = vector.shape_cast %51 : vector<8x64xf32> to vector<1x8x64xf32>
    tpu.vector_store %arg5[%c0_52, %c24, %c0_53], %54 {strides = array<i32>} : memref<1x64x64xf32, #tpu.memory_space<vmem>>, vector<1x8x64xf32>,
    %55 = vector.extract_strided_slice %38 {offsets = [81, 0], sizes = [8, 64], strides = [1, 1]} : vector<160x64xf32> to vector<8x64xf32>
    %c0_54 = arith.constant 0 : index
    %c32_55 = arith.constant 32 : index
    %c0_56 = arith.constant 0 : index
    %56 = vector.load %arg5[%c0_54, %c32_55, %c0_56] : memref<1x64x64xf32, #tpu.memory_space<vmem>>, vector<1x8x64xf32>
    %57 = vector.shape_cast %56 : vector<1x8x64xf32> to vector<8x64xf32>
    %58 = vector.shape_cast %55 : vector<8x64xf32> to vector<1x8x64xf32>
    tpu.vector_store %arg5[%c0_54, %c32_55, %c0_56], %58 {strides = array<i32>} : memref<1x64x64xf32, #tpu.memory_space<vmem>>, vector<1x8x64xf32>,
    %59 = vector.extract_strided_slice %38 {offsets = [97, 0], sizes = [8, 64], strides = [1, 1]} : vector<160x64xf32> to vector<8x64xf32>
    %c0_57 = arith.constant 0 : index
    %c40 = arith.constant 40 : index
    %c0_58 = arith.constant 0 : index
    %60 = vector.load %arg5[%c0_57, %c40, %c0_58] : memref<1x64x64xf32, #tpu.memory_space<vmem>>, vector<1x8x64xf32>
    %61 = vector.shape_cast %60 : vector<1x8x64xf32> to vector<8x64xf32>
    %62 = vector.shape_cast %59 : vector<8x64xf32> to vector<1x8x64xf32>
    tpu.vector_store %arg5[%c0_57, %c40, %c0_58], %62 {strides = array<i32>} : memref<1x64x64xf32, #tpu.memory_space<vmem>>, vector<1x8x64xf32>,
    %63 = vector.extract_strided_slice %38 {offsets = [113, 0], sizes = [8, 64], strides = [1, 1]} : vector<160x64xf32> to vector<8x64xf32>
    %c0_59 = arith.constant 0 : index
    %c48_60 = arith.constant 48 : index
    %c0_61 = arith.constant 0 : index
    %64 = vector.load %arg5[%c0_59, %c48_60, %c0_61] : memref<1x64x64xf32, #tpu.memory_space<vmem>>, vector<1x8x64xf32>
    %65 = vector.shape_cast %64 : vector<1x8x64xf32> to vector<8x64xf32>
    %66 = vector.shape_cast %63 : vector<8x64xf32> to vector<1x8x64xf32>
    tpu.vector_store %arg5[%c0_59, %c48_60, %c0_61], %66 {strides = array<i32>} : memref<1x64x64xf32, #tpu.memory_space<vmem>>, vector<1x8x64xf32>,
    %67 = vector.extract_strided_slice %38 {offsets = [129, 0], sizes = [8, 64], strides = [1, 1]} : vector<160x64xf32> to vector<8x64xf32>
    %c0_62 = arith.constant 0 : index
    %c56 = arith.constant 56 : index
    %c0_63 = arith.constant 0 : index
    %68 = vector.load %arg5[%c0_62, %c56, %c0_63] : memref<1x64x64xf32, #tpu.memory_space<vmem>>, vector<1x8x64xf32>
    %69 = vector.shape_cast %68 : vector<1x8x64xf32> to vector<8x64xf32>
    %70 = vector.shape_cast %67 : vector<8x64xf32> to vector<1x8x64xf32>
    tpu.vector_store %arg5[%c0_62, %c56, %c0_63], %70 {strides = array<i32>} : memref<1x64x64xf32, #tpu.memory_space<vmem>>, vector<1x8x64xf32>,
    return
  }
  func.func @transform_0(%arg0: i32) -> (i32, i32, i32) {
    %c0_i32 = arith.constant 0 : i32
    %c0_i32_0 = arith.constant 0 : i32
    %c0_i32_1 = arith.constant 0 : i32
    return %arg0, %c0_i32, %c0_i32_0 : i32, i32, i32
  }
  func.func @transform_1(%arg0: i32) -> (i32, i32, i32) {
    %c0_i32 = arith.constant 0 : i32
    %c0_i32_0 = arith.constant 0 : i32
    %c0_i32_1 = arith.constant 0 : i32
    %c0_i32_2 = arith.constant 0 : i32
    return %c0_i32, %c0_i32_0, %c0_i32_1 : i32, i32, i32
  }
  func.func @transform_2(%arg0: i32) -> (i32, i32, i32) {
    %c0_i32 = arith.constant 0 : i32
    %c0_i32_0 = arith.constant 0 : i32
    %c0_i32_1 = arith.constant 0 : i32
    %c0_i32_2 = arith.constant 0 : i32
    return %c0_i32, %c0_i32_0, %c0_i32_1 : i32, i32, i32
  }
  func.func @transform_3(%arg0: i32) -> (i32, i32) {
    %c0_i32 = arith.constant 0 : i32
    %c0_i32_0 = arith.constant 0 : i32
    %c0_i32_1 = arith.constant 0 : i32
    return %c0_i32, %c0_i32_0 : i32, i32
  }
  func.func @transform_4(%arg0: i32) -> (i32, i32, i32) {
    %c0_i32 = arith.constant 0 : i32
    %c0_i32_0 = arith.constant 0 : i32
    %c0_i32_1 = arith.constant 0 : i32
    return %arg0, %c0_i32, %c0_i32_0 : i32, i32, i32
  }
}

</mosaic_0001>

<llo_original>
// kernel: costnet_forward.2
$region0: #{costnet_forward.2}
  #allocation0 [shape = 'u32[]', space=smem, size = 0x4, offset = 0x4, fixed_abs, tag = 'smem constant byte address 0x4 - core index']
  #allocation1 [shape = 'u32[144,128]{1,0:T(1,128)}', space=vmem, size = 0x12000, scoped, tag = 'internal scratch']
  %s0 = inlined_call_operand.vmem [shape: bf16[128,128], index: 0, kind: input, shape index: {}]
  %s1 = inlined_call_operand.vmem [shape: bf16[128,32], index: 1, kind: input, shape index: {}]
  %s2 = inlined_call_operand.vmem [shape: f32[1,32], index: 2, kind: input, shape index: {}]
  %s3 = inlined_call_operand.vmem [shape: bf16[128,32], index: 3, kind: output, shape index: {}]
  %s4 = sld [smem:[#allocation0]]
  $region22: #{costnet_forward.2} parent=0
    _
  %s6 = ssub.s32 1, %s4
  %s7 = scalar_select 0, %s6, %s4
  // Predicated region
  $region2: #{costnet_forward.2} parent=0 // pred_check
    _
  $region3: #{costnet_forward.2} parent=0 // pred_check_branch
    %9 = sbr.rel (0) target = $region5
  $region4: #{costnet_forward.2} parent=0 // pred_region
    _
  $region5: #{costnet_forward.2} parent=0 // pred_fallthru
    _
  // Predicated region
  $region6: #{costnet_forward.2} parent=0 // pred_check
    _
  $region7: #{costnet_forward.2} parent=0 // pred_check_branch
    %11 = sbr.rel (0) target = $region9
  $region8: #{costnet_forward.2} parent=0 // pred_region
    _
  $region9: #{costnet_forward.2} parent=0 // pred_fallthru
    _
  // Predicated region
  $region10: #{costnet_forward.2} parent=0 // pred_check
    _
  $region11: #{costnet_forward.2} parent=0 // pred_check_branch
    %13 = sbr.rel (0) target = $region13
  $region12: #{costnet_forward.2} parent=0 // pred_region
    _
  $region13: #{costnet_forward.2} parent=0 // pred_fallthru
    _
  %v15 = vld [vmem:[%s0] sm:$0xf]
  %v16 = vld [vmem:[%s0 + $0x4] sm:$0xf]
  %v17 = vld [vmem:[%s0 + $0x8] sm:$0xf]
  %v18 = vld [vmem:[%s0 + $0xc] sm:$0xf]
  %v19 = vld [vmem:[%s0 + $0x10] sm:$0xf]
  %v20 = vld [vmem:[%s0 + $0x14] sm:$0xf]
  %v21 = vld [vmem:[%s0 + $0x18] sm:$0xf]
  %v22 = vld [vmem:[%s0 + $0x1c] sm:$0xf]
  %v23 = vld [vmem:[%s0 + $0x20] sm:$0xf]
  %v24 = vld [vmem:[%s0 + $0x24] sm:$0xf]
  %v25 = vld [vmem:[%s0 + $0x28] sm:$0xf]
  %v26 = vld [vmem:[%s0 + $0x2c] sm:$0xf]
  %v27 = vld [vmem:[%s0 + $0x30] sm:$0xf]
  %v28 = vld [vmem:[%s0 + $0x34] sm:$0xf]
  %v29 = vld [vmem:[%s0 + $0x38] sm:$0xf]
  %v30 = vld [vmem:[%s0 + $0x3c] sm:$0xf]
  %v31 = vld [vmem:[%s1] sm:$0xf]
  %v32 = vld [vmem:[%s1 + $0x4] sm:$0xf]
  %v33 = vld [vmem:[%s1 + $0x8] sm:$0xf]
  %v34 = vld [vmem:[%s1 + $0xc] sm:$0xf]
  %v35 = vld [vmem:[%s1 + $0x10] sm:$0xf]
  %v36 = vld [vmem:[%s1 + $0x14] sm:$0xf]
  %v37 = vld [vmem:[%s1 + $0x18] sm:$0xf]
  %v38 = vld [vmem:[%s1 + $0x1c] sm:$0xf]
  %v39 = vld [vmem:[%s1 + $0x20] sm:$0xf]
  %v40 = vld [vmem:[%s1 + $0x24] sm:$0xf]
  %v41 = vld [vmem:[%s1 + $0x28] sm:$0xf]
  %v42 = vld [vmem:[%s1 + $0x2c] sm:$0xf]
  %v43 = vld [vmem:[%s1 + $0x30] sm:$0xf]
  %v44 = vld [vmem:[%s1 + $0x34] sm:$0xf]
  %v45 = vld [vmem:[%s1 + $0x38] sm:$0xf]
  %v46 = vld [vmem:[%s1 + $0x3c] sm:$0xf]
  %v47 = vld [vmem:[%s2] sm:$0x1]
  %v49 = vlaneseq
  %v50 = vshrl.u32 %v49, 7
  %v51 = vsub.s32 0, %v50
  %v52 = vrot.slane %v47, %v51
  %v70 = vunpack.c.l.b16 %v15
  %v71 = vunpack.c.l.b16 %v16
  %v72 = vunpack.c.l.b16 %v17
  %v73 = vunpack.c.l.b16 %v18
  %v74 = vunpack.c.l.b16 %v19
  %v75 = vunpack.c.l.b16 %v20
  %v76 = vunpack.c.l.b16 %v21
  %v77 = vunpack.c.l.b16 %v22
  %v78 = vunpack.c.l.b16 %v23
  %v79 = vunpack.c.l.b16 %v24
  %v80 = vunpack.c.l.b16 %v25
  %v81 = vunpack.c.l.b16 %v26
  %v82 = vunpack.c.l.b16 %v27
  %v83 = vunpack.c.l.b16 %v28
  %v84 = vunpack.c.l.b16 %v29
  %v85 = vunpack.c.l.b16 %v30
  %v86 = vpack.c.b16 %v71, %v70
  %v87 = vpack.c.b16 %v73, %v72
  %v88 = vpack.c.b16 %v75, %v74
  %v89 = vpack.c.b16 %v77, %v76
  %v90 = vpack.c.b16 %v79, %v78
  %v91 = vpack.c.b16 %v81, %v80
  %v92 = vpack.c.b16 %v83, %v82
  %v93 = vpack.c.b16 %v85, %v84
  %v118 = vunpack.c.l.b16 %v31
  %v119 = vunpack.c.l.b16 %v32
  %v120 = vunpack.c.l.b16 %v33
  %v121 = vunpack.c.l.b16 %v34
  %v122 = vunpack.c.l.b16 %v35
  %v123 = vunpack.c.l.b16 %v36
  %v124 = vunpack.c.l.b16 %v37
  %v125 = vunpack.c.l.b16 %v38
  %v126 = vunpack.c.l.b16 %v39
  %v127 = vunpack.c.l.b16 %v40
  %v128 = vunpack.c.l.b16 %v41
  %v129 = vunpack.c.l.b16 %v42
  %v130 = vunpack.c.l.b16 %v43
  %v131 = vunpack.c.l.b16 %v44
  %v132 = vunpack.c.l.b16 %v45
  %v133 = vunpack.c.l.b16 %v46
  %v134 = vpack.c.b16 %v119, %v118
  %v135 = vpack.c.b16 %v121, %v120
  %v136 = vpack.c.b16 %v123, %v122
  %v137 = vpack.c.b16 %v125, %v124
  %v138 = vpack.c.b16 %v127, %v126
  %v139 = vpack.c.b16 %v129, %v128
  %v140 = vpack.c.b16 %v131, %v130
  %v141 = vpack.c.b16 %v133, %v132
  %150 = vmatprep.subr.bf16.mxu0 0
  %151 = vmatpush1.bf16.msra.mxu0 %v134
  %152 = vmatprep.subr.bf16.mxu0 0
  %153 = vmatpush1.bf16.msra.mxu0 %v135
  %154 = vmatprep.subr.bf16.mxu0 0
  %155 = vmatpush1.bf16.msra.mxu0 %v136
  %156 = vmatprep.subr.bf16.mxu0 0
  %157 = vmatpush1.bf16.msra.mxu0 %v137
  %158 = vmatprep.subr.bf16.mxu0 0
  %159 = vmatpush1.bf16.msra.mxu0 %v138
  %160 = vmatprep.subr.bf16.mxu0 0
  %161 = vmatpush1.bf16.msra.mxu0 %v139
  %162 = vmatprep.subr.bf16.mxu0 0
  %163 = vmatpush1.bf16.msra.mxu0 %v140
  %164 = vmatprep.subr.bf16.mxu0 0
  %165 = vmatpush1.bf16.msra.mxu0 %v141
  %166 = vmatprep.subr.bf16.mxu0 0
  %167 = vmatpush1.bf16.msra.mxu0 0
  %168 = vmatprep.subr.bf16.mxu0 0
  %169 = vmatpush1.bf16.msra.mxu0 0
  %170 = vmatprep.subr.bf16.mxu0 0
  %171 = vmatpush1.bf16.msra.mxu0 0
  %172 = vmatprep.subr.bf16.mxu0 0
  %173 = vmatpush1.bf16.msra.mxu0 0
  %174 = vmatprep.subr.bf16.mxu0 0
  %175 = vmatpush1.bf16.msra.mxu0 0
  %176 = vmatprep.subr.bf16.mxu0 0
  %177 = vmatpush1.bf16.msra.mxu0 0
  %178 = vmatprep.subr.bf16.mxu0 0
  %179 = vmatpush1.bf16.msra.mxu0 0
  %180 = vmatprep.subr.bf16.mxu0 0
  %181 = vmatpush1.bf16.msra.mxu0 0
  %182 = vmatprep.mubr.bf16.mxu0 0
  %183 = vmatmul.mubr.bf16.gmra.mrb[0].mxu0 %v86
  %v184 = vpop.f32.mrb[0].mxu0
  %v185 = vadd.f32 %v52, %v184
  %v186 = vpop.f32.mrb[0].mxu0
  %v187 = vpop.f32.mrb[0].mxu0
  %v188 = vadd.f32 %v52, %v187
  %v189 = vpop.f32.mrb[0].mxu0
  %190 = vmatprep.mubr.bf16.mxu0 0
  %191 = vmatmul.mubr.bf16.gmra.mrb[0].mxu0 %v87
  %v192 = vpop.f32.mrb[0].mxu0
  %v193 = vadd.f32 %v52, %v192
  %v194 = vpop.f32.mrb[0].mxu0
  %v195 = vpop.f32.mrb[0].mxu0
  %v196 = vadd.f32 %v52, %v195
  %v197 = vpop.f32.mrb[0].mxu0
  %198 = vmatprep.mubr.bf16.mxu0 0
  %199 = vmatmul.mubr.bf16.gmra.mrb[0].mxu0 %v88
  %v200 = vpop.f32.mrb[0].mxu0
  %v201 = vadd.f32 %v52, %v200
  %v202 = vpop.f32.mrb[0].mxu0
  %v203 = vpop.f32.mrb[0].mxu0
  %v204 = vadd.f32 %v52, %v203
  %v205 = vpop.f32.mrb[0].mxu0
  %206 = vmatprep.mubr.bf16.mxu0 0
  %207 = vmatmul.mubr.bf16.gmra.mrb[0].mxu0 %v89
  %v208 = vpop.f32.mrb[0].mxu0
  %v209 = vadd.f32 %v52, %v208
  %v210 = vpop.f32.mrb[0].mxu0
  %v211 = vpop.f32.mrb[0].mxu0
  %v212 = vadd.f32 %v52, %v211
  %v213 = vpop.f32.mrb[0].mxu0
  %214 = vmatprep.mubr.bf16.mxu0 0
  %215 = vmatmul.mubr.bf16.gmra.mrb[0].mxu0 %v90
  %v216 = vpop.f32.mrb[0].mxu0
  %v217 = vadd.f32 %v52, %v216
  %v218 = vpop.f32.mrb[0].mxu0
  %v219 = vpop.f32.mrb[0].mxu0
  %v220 = vadd.f32 %v52, %v219
  %v221 = vpop.f32.mrb[0].mxu0
  %222 = vmatprep.mubr.bf16.mxu0 0
  %223 = vmatmul.mubr.bf16.gmra.mrb[0].mxu0 %v91
  %v224 = vpop.f32.mrb[0].mxu0
  %v225 = vadd.f32 %v52, %v224
  %v226 = vpop.f32.mrb[0].mxu0
  %v227 = vpop.f32.mrb[0].mxu0
  %v228 = vadd.f32 %v52, %v227
  %v229 = vpop.f32.mrb[0].mxu0
  %230 = vmatprep.mubr.bf16.mxu0 0
  %231 = vmatmul.mubr.bf16.gmra.mrb[0].mxu0 %v92
  %v232 = vpop.f32.mrb[0].mxu0
  %v233 = vadd.f32 %v52, %v232
  %v234 = vpop.f32.mrb[0].mxu0
  %v235 = vpop.f32.mrb[0].mxu0
  %v236 = vadd.f32 %v52, %v235
  %v237 = vpop.f32.mrb[0].mxu0
  %238 = vmatprep.mubr.bf16.mxu0 0
  %239 = vmatmul.mubr.bf16.gmra.mrb[0].mxu0 %v93
  %v240 = vpop.f32.mrb[0].mxu0
  %v241 = vadd.f32 %v52, %v240
  %v242 = vpop.f32.mrb[0].mxu0
  %v243 = vpop.f32.mrb[0].mxu0
  %v244 = vadd.f32 %v52, %v243
  %v245 = vpop.f32.mrb[0].mxu0
  %246 = vdwg.mxu0
  %v247 = vmax.f32 %v185, 0.0
  %v248 = vmax.f32 %v188, 0.0
  %v249 = vmax.f32 %v193, 0.0
  %v250 = vmax.f32 %v196, 0.0
  %v251 = vmax.f32 %v201, 0.0
  %v252 = vmax.f32 %v204, 0.0
  %v253 = vmax.f32 %v209, 0.0
  %v254 = vmax.f32 %v212, 0.0
  %v255 = vmax.f32 %v217, 0.0
  %v256 = vmax.f32 %v220, 0.0
  %v257 = vmax.f32 %v225, 0.0
  %v258 = vmax.f32 %v228, 0.0
  %v259 = vmax.f32 %v233, 0.0
  %v260 = vmax.f32 %v236, 0.0
  %v261 = vmax.f32 %v241, 0.0
  %v262 = vmax.f32 %v244, 0.0
  %v263 = vpack.c.bf16 %v248, %v247
  %v264 = vpack.c.bf16 %v250, %v249
  %v265 = vpack.c.bf16 %v252, %v251
  %v266 = vpack.c.bf16 %v254, %v253
  %v267 = vpack.c.bf16 %v256, %v255
  %v268 = vpack.c.bf16 %v258, %v257
  %v269 = vpack.c.bf16 %v260, %v259
  %v270 = vpack.c.bf16 %v262, %v261
  %v279 = vunpack.c.l.b16 %v263
  %v280 = vunpack.c.h.b16 %v263
  %v281 = vunpack.c.l.b16 %v264
  %v282 = vunpack.c.h.b16 %v264
  %v283 = vunpack.c.l.b16 %v265
  %v284 = vunpack.c.h.b16 %v265
  %v285 = vunpack.c.l.b16 %v266
  %v286 = vunpack.c.h.b16 %v266
  %v287 = vunpack.c.l.b16 %v267
  %v288 = vunpack.c.h.b16 %v267
  %v289 = vunpack.c.l.b16 %v268
  %v290 = vunpack.c.h.b16 %v268
  %v291 = vunpack.c.l.b16 %v269
  %v292 = vunpack.c.h.b16 %v269
  %v293 = vunpack.c.l.b16 %v270
  %v294 = vunpack.c.h.b16 %v270
  %v295 = vpack.c.b16 %v279, %v279
  %v296 = vpack.c.b16 %v280, %v280
  %v297 = vpack.c.b16 %v281, %v281
  %v298 = vpack.c.b16 %v282, %v282
  %v299 = vpack.c.b16 %v283, %v283
  %v300 = vpack.c.b16 %v284, %v284
  %v301 = vpack.c.b16 %v285, %v285
  %v302 = vpack.c.b16 %v286, %v286
  %v303 = vpack.c.b16 %v287, %v287
  %v304 = vpack.c.b16 %v288, %v288
  %v305 = vpack.c.b16 %v289, %v289
  %v306 = vpack.c.b16 %v290, %v290
  %v307 = vpack.c.b16 %v291, %v291
  %v308 = vpack.c.b16 %v292, %v292
  %v309 = vpack.c.b16 %v293, %v293
  %v310 = vpack.c.b16 %v294, %v294
  %vm327 = vcmask 257024
  %328 = vst.msk [vmem:[%s3] sm:$0xf] %vm327, %v295
  %329 = vst.msk [vmem:[%s3 + $0x4] sm:$0xf] %vm327, %v296
  %330 = vst.msk [vmem:[%s3 + $0x8] sm:$0xf] %vm327, %v297
  %331 = vst.msk [vmem:[%s3 + $0xc] sm:$0xf] %vm327, %v298
  %332 = vst.msk [vmem:[%s3 + $0x10] sm:$0xf] %vm327, %v299
  %333 = vst.msk [vmem:[%s3 + $0x14] sm:$0xf] %vm327, %v300
  %334 = vst.msk [vmem:[%s3 + $0x18] sm:$0xf] %vm327, %v301
  %335 = vst.msk [vmem:[%s3 + $0x1c] sm:$0xf] %vm327, %v302
  %336 = vst.msk [vmem:[%s3 + $0x20] sm:$0xf] %vm327, %v303
  %337 = vst.msk [vmem:[%s3 + $0x24] sm:$0xf] %vm327, %v304
  %338 = vst.msk [vmem:[%s3 + $0x28] sm:$0xf] %vm327, %v305
  %339 = vst.msk [vmem:[%s3 + $0x2c] sm:$0xf] %vm327, %v306
  %340 = vst.msk [vmem:[%s3 + $0x30] sm:$0xf] %vm327, %v307
  %341 = vst.msk [vmem:[%s3 + $0x34] sm:$0xf] %vm327, %v308
  %342 = vst.msk [vmem:[%s3 + $0x38] sm:$0xf] %vm327, %v309
  %343 = vst.msk [vmem:[%s3 + $0x3c] sm:$0xf] %vm327, %v310
  // Predicated region
  $region14: #{costnet_forward.2} parent=0 // pred_check
    _
  $region15: #{costnet_forward.2} parent=0 // pred_check_branch
    %345 = sbr.rel (0) target = $region17
  $region16: #{costnet_forward.2} parent=0 // pred_region
    _
  $region17: #{costnet_forward.2} parent=0 // pred_fallthru
    _
  // Predicated region
  $region18: #{costnet_forward.2} parent=0 // pred_check
    _
  $region19: #{costnet_forward.2} parent=0 // pred_check_branch
    %347 = sbr.rel (0) target = $region21
  $region20: #{costnet_forward.2} parent=0 // pred_region
    _
  $region21: #{costnet_forward.2} parent=0 // pred_fallthru
    _

// kernel: costnet_forward.3
$region0: #{costnet_forward.3}
  #allocation0 [shape = 'u32[]', space=smem, size = 0x4, offset = 0x4, fixed_abs, tag = 'smem constant byte address 0x4 - core index']
  #allocation1 [shape = 'u32[144,128]{1,0:T(1,128)}', space=vmem, size = 0x12000, scoped, tag = 'internal scratch']
  #allocation2 [shape = 'bf16[224,64]{1,0:T(16,128)(2,1)}', space=vmem, size = 0xe000, scoped, tag = 'scratch operand']
  #allocation3 [shape = 'bf16[224,64]{1,0:T(16,128)(2,1)}', space=vmem, size = 0xe000, scoped, tag = 'scratch operand']
  #allocation4 [shape = 'bf16[160,576]{1,0:T(16,128)(2,1)}', space=vmem, size = 0x32000, scoped, tag = 'scratch operand']
  %s0 = inlined_call_operand.vmem [shape: bf16[1,160,64], index: 0, kind: input, shape index: {}]
  %s1 = inlined_call_operand.vmem [shape: bf16[9,576,64], index: 1, kind: input, shape index: {}]
  %s2 = inlined_call_operand.vmem [shape: f32[9,1,64], index: 2, kind: input, shape index: {}]
  %s3 = inlined_call_operand.vmem [shape: f32[160,1], index: 3, kind: input, shape index: {}]
  %s4 = inlined_call_operand.vmem [shape: f32[1,64,64], index: 4, kind: output, shape index: {}]
  %s5 = sld [smem:[#allocation0]]
  $region33: #{costnet_forward.3} parent=0
    _
  %s7 = ssub.s32 1, %s5
  %s8 = scalar_select 0, %s7, %s5
  // Predicated region
  $region2: #{costnet_forward.3} parent=0 // pred_check
    _
  $region3: #{costnet_forward.3} parent=0 // pred_check_branch
    %10 = sbr.rel (0) target = $region5
  $region4: #{costnet_forward.3} parent=0 // pred_region
    _
  $region5: #{costnet_forward.3} parent=0 // pred_fallthru
    _
  // Predicated region
  $region6: #{costnet_forward.3} parent=0 // pred_check
    _
  $region7: #{costnet_forward.3} parent=0 // pred_check_branch
    %12 = sbr.rel (0) target = $region9
  $region8: #{costnet_forward.3} parent=0 // pred_region
    _
  $region9: #{costnet_forward.3} parent=0 // pred_fallthru
    _
  // Predicated region
  $region10: #{costnet_forward.3} parent=0 // pred_check
    _
  $region11: #{costnet_forward.3} parent=0 // pred_check_branch
    %14 = sbr.rel (0) target = $region13
  $region12: #{costnet_forward.3} parent=0 // pred_region
    _
  $region13: #{costnet_forward.3} parent=0 // pred_fallthru
    _
  // Predicated region
  $region14: #{costnet_forward.3} parent=0 // pred_check
    _
  $region15: #{costnet_forward.3} parent=0 // pred_check_branch
    %16 = sbr.rel (0) target = $region17
  $region16: #{costnet_forward.3} parent=0 // pred_region
    _
  $region17: #{costnet_forward.3} parent=0 // pred_fallthru
    _
  %vm18 = vcmask 523264
  %19 = vst.msk [vmem:[#allocation2] sm:$0xff] %vm18, 0
  %20 = vst.msk [vmem:[#allocation2 + $0x8] sm:$0xff] %vm18, 0
  %21 = vst.msk [vmem:[#allocation3] sm:$0xff] %vm18, 0
  %22 = vst.msk [vmem:[#allocation3 + $0x8] sm:$0xff] %vm18, 0
  %23 = vst.msk [vmem:[#allocation2 + $0x60] sm:$0xff] %vm18, 0
  %24 = vst.msk [vmem:[#allocation2 + $0x68] sm:$0xff] %vm18, 0
  %25 = vst.msk [vmem:[#allocation3 + $0x60] sm:$0xff] %vm18, 0
  %26 = vst.msk [vmem:[#allocation3 + $0x68] sm:$0xff] %vm18, 0
  %v27 = vld [vmem:[%s0] sm:$0xf]
  %v28 = vld [vmem:[%s0 + $0x4] sm:$0xf]
  %v29 = vld [vmem:[%s0 + $0x8] sm:$0xf]
  %v30 = vld [vmem:[%s0 + $0xc] sm:$0xf]
  %v31 = vld [vmem:[%s0 + $0x10] sm:$0xf]
  %v32 = vld [vmem:[%s0 + $0x14] sm:$0xf]
  %v33 = vld [vmem:[%s0 + $0x18] sm:$0xf]
  %v34 = vld [vmem:[%s0 + $0x1c] sm:$0xf]
  %v35 = vld [vmem:[%s0 + $0x20] sm:$0xf]
  %v36 = vld [vmem:[%s0 + $0x24] sm:$0xf]
  %v37 = vld [vmem:[%s0 + $0x28] sm:$0xf]
  %v38 = vld [vmem:[%s0 + $0x2c] sm:$0xf]
  %v39 = vld [vmem:[%s0 + $0x30] sm:$0xf]
  %v40 = vld [vmem:[%s0 + $0x34] sm:$0xf]
  %v41 = vld [vmem:[%s0 + $0x38] sm:$0xf]
  %v42 = vld [vmem:[%s0 + $0x3c] sm:$0xf]
  %v43 = vld [vmem:[%s0 + $0x40] sm:$0xf]
  %v44 = vld [vmem:[%s0 + $0x44] sm:$0xf]
  %v45 = vld [vmem:[%s0 + $0x48] sm:$0xf]
  %v46 = vld [vmem:[%s0 + $0x4c] sm:$0xf]
  %v67 = vunpack.c.l.b16 %v27
  %v68 = vunpack.c.l.b16 %v28
  %v69 = vunpack.c.l.b16 %v29
  %v70 = vunpack.c.l.b16 %v30
  %v71 = vunpack.c.l.b16 %v31
  %v72 = vunpack.c.l.b16 %v32
  %v73 = vunpack.c.l.b16 %v33
  %v74 = vunpack.c.l.b16 %v34
  %v75 = vunpack.c.l.b16 %v35
  %v76 = vunpack.c.l.b16 %v36
  %v77 = vunpack.c.l.b16 %v37
  %v78 = vunpack.c.l.b16 %v38
  %v79 = vunpack.c.l.b16 %v39
  %v80 = vunpack.c.l.b16 %v40
  %v81 = vunpack.c.l.b16 %v41
  %v82 = vunpack.c.l.b16 %v42
  %v83 = vunpack.c.l.b16 %v43
  %v84 = vunpack.c.l.b16 %v44
  %v85 = vunpack.c.l.b16 %v45
  %v86 = vunpack.c.l.b16 %v46
  %v87 = vpack.c.b16 %v68, %v67
  %v88 = vpack.c.b16 %v70, %v69
  %v89 = vpack.c.b16 %v72, %v71
  %v90 = vpack.c.b16 %v74, %v73
  %v91 = vpack.c.b16 %v76, %v75
  %v92 = vpack.c.b16 %v78, %v77
  %v93 = vpack.c.b16 %v80, %v79
  %v94 = vpack.c.b16 %v82, %v81
  %v95 = vpack.c.b16 %v84, %v83
  %v96 = vpack.c.b16 %v86, %v85
  %107 = vst.msk [vmem:[#allocation2 + $0x10] sm:$0xff] %vm18, %v87
  %108 = vst.msk [vmem:[#allocation2 + $0x18] sm:$0xff] %vm18, %v88
  %109 = vst.msk [vmem:[#allocation2 + $0x20] sm:$0xff] %vm18, %v89
  %110 = vst.msk [vmem:[#allocation2 + $0x28] sm:$0xff] %vm18, %v90
  %111 = vst.msk [vmem:[#allocation2 + $0x30] sm:$0xff] %vm18, %v91
  %112 = vst.msk [vmem:[#allocation2 + $0x38] sm:$0xff] %vm18, %v92
  %113 = vst.msk [vmem:[#allocation2 + $0x40] sm:$0xff] %vm18, %v93
  %114 = vst.msk [vmem:[#allocation2 + $0x48] sm:$0xff] %vm18, %v94
  %115 = vst.msk [vmem:[#allocation2 + $0x50] sm:$0xff] %vm18, %v95
  %116 = vst.msk [vmem:[#allocation2 + $0x58] sm:$0xff] %vm18, %v96
  loop: start=0, step=1, limit=8
  $region18: #{costnet_forward.3} parent=0 // loop_pre_header
    _
  $region19: #{costnet_forward.3} parent=0 // loop_header
    %s118 = sphi 0, %s122
    %p119 = scmp.ge.s32.totalorder %s118, 8
  $region20: #{costnet_forward.3} parent=0 // loop_header_branch
    %121 = sbr.rel (%p119) target = $region24
  $region21: #{costnet_forward.3} parent=0 // loop_body
    %s123 = smul.u32 %s118, 72
    %s124 = smul.addr %s123, 4
    %s125 = scalar_lea.vmem %s1, %s124
    %v126 = vld [vmem:[%s125] sm:$0xf]
    %v127 = vld [vmem:[%s125 + $0x4] sm:$0xf]
    %v128 = vld [vmem:[%s125 + $0x8] sm:$0xf]
    %v129 = vld [vmem:[%s125 + $0xc] sm:$0xf]
    %v130 = vld [vmem:[%s125 + $0x10] sm:$0xf]
    %v131 = vld [vmem:[%s125 + $0x14] sm:$0xf]
    %v132 = vld [vmem:[%s125 + $0x18] sm:$0xf]
    %v133 = vld [vmem:[%s125 + $0x1c] sm:$0xf]
    %v134 = vld [vmem:[%s125 + $0x20] sm:$0xf]
    %v135 = vld [vmem:[%s125 + $0x24] sm:$0xf]
    %v136 = vld [vmem:[%s125 + $0x28] sm:$0xf]
    %v137 = vld [vmem:[%s125 + $0x2c] sm:$0xf]
    %v138 = vld [vmem:[%s125 + $0x30] sm:$0xf]
    %v139 = vld [vmem:[%s125 + $0x34] sm:$0xf]
    %v140 = vld [vmem:[%s125 + $0x38] sm:$0xf]
    %v141 = vld [vmem:[%s125 + $0x3c] sm:$0xf]
    %v142 = vld [vmem:[%s125 + $0x40] sm:$0xf]
    %v143 = vld [vmem:[%s125 + $0x44] sm:$0xf]
    %v144 = vld [vmem:[%s125 + $0x48] sm:$0xf]
    %v145 = vld [vmem:[%s125 + $0x4c] sm:$0xf]
    %v146 = vld [vmem:[%s125 + $0x50] sm:$0xf]
    %v147 = vld [vmem:[%s125 + $0x54] sm:$0xf]
    %v148 = vld [vmem:[%s125 + $0x58] sm:$0xf]
    %v149 = vld [vmem:[%s125 + $0x5c] sm:$0xf]
    %v150 = vld [vmem:[%s125 + $0x60] sm:$0xf]
    %v151 = vld [vmem:[%s125 + $0x64] sm:$0xf]
    %v152 = vld [vmem:[%s125 + $0x68] sm:$0xf]
    %v153 = vld [vmem:[%s125 + $0x6c] sm:$0xf]
    %v154 = vld [vmem:[%s125 + $0x70] sm:$0xf]
    %v155 = vld [vmem:[%s125 + $0x74] sm:$0xf]
    %v156 = vld [vmem:[%s125 + $0x78] sm:$0xf]
    %v157 = vld [vmem:[%s125 + $0x7c] sm:$0xf]
    %v158 = vld [vmem:[%s125 + $0x80] sm:$0xf]
    %v159 = vld [vmem:[%s125 + $0x84] sm:$0xf]
    %v160 = vld [vmem:[%s125 + $0x88] sm:$0xf]
    %v161 = vld [vmem:[%s125 + $0x8c] sm:$0xf]
    %v162 = vld [vmem:[%s125 + $0x90] sm:$0xf]
    %v163 = vld [vmem:[%s125 + $0x94] sm:$0xf]
    %v164 = vld [vmem:[%s125 + $0x98] sm:$0xf]
    %v165 = vld [vmem:[%s125 + $0x9c] sm:$0xf]
    %v166 = vld [vmem:[%s125 + $0xa0] sm:$0xf]
    %v167 = vld [vmem:[%s125 + $0xa4] sm:$0xf]
    %v168 = vld [vmem:[%s125 + $0xa8] sm:$0xf]
    %v169 = vld [vmem:[%s125 + $0xac] sm:$0xf]
    %v170 = vld [vmem:[%s125 + $0xb0] sm:$0xf]
    %v171 = vld [vmem:[%s125 + $0xb4] sm:$0xf]
    %v172 = vld [vmem:[%s125 + $0xb8] sm:$0xf]
    %v173 = vld [vmem:[%s125 + $0xbc] sm:$0xf]
    %v174 = vld [vmem:[%s125 + $0xc0] sm:$0xf]
    %v175 = vld [vmem:[%s125 + $0xc4] sm:$0xf]
    %v176 = vld [vmem:[%s125 + $0xc8] sm:$0xf]
    %v177 = vld [vmem:[%s125 + $0xcc] sm:$0xf]
    %v178 = vld [vmem:[%s125 + $0xd0] sm:$0xf]
    %v179 = vld [vmem:[%s125 + $0xd4] sm:$0xf]
    %v180 = vld [vmem:[%s125 + $0xd8] sm:$0xf]
    %v181 = vld [vmem:[%s125 + $0xdc] sm:$0xf]
    %v182 = vld [vmem:[%s125 + $0xe0] sm:$0xf]
    %v183 = vld [vmem:[%s125 + $0xe4] sm:$0xf]
    %v184 = vld [vmem:[%s125 + $0xe8] sm:$0xf]
    %v185 = vld [vmem:[%s125 + $0xec] sm:$0xf]
    %v186 = vld [vmem:[%s125 + $0xf0] sm:$0xf]
    %v187 = vld [vmem:[%s125 + $0xf4] sm:$0xf]
    %v188 = vld [vmem:[%s125 + $0xf8] sm:$0xf]
    %v189 = vld [vmem:[%s125 + $0xfc] sm:$0xf]
    %v190 = vld [vmem:[%s125 + $0x100] sm:$0xf]
    %v191 = vld [vmem:[%s125 + $0x104] sm:$0xf]
    %v192 = vld [vmem:[%s125 + $0x108] sm:$0xf]
    %v193 = vld [vmem:[%s125 + $0x10c] sm:$0xf]
    %v194 = vld [vmem:[%s125 + $0x110] sm:$0xf]
    %v195 = vld [vmem:[%s125 + $0x114] sm:$0xf]
    %v196 = vld [vmem:[%s125 + $0x118] sm:$0xf]
    %v197 = vld [vmem:[%s125 + $0x11c] sm:$0xf]
    %s198 = scalar_lea.vmem %s2, %s118
    %v199 = vld [vmem:[%s198] sm:$0x1]
    %v200 = vld [vmem:[#allocation2] sm:$0x80]
    %v201 = vld [vmem:[#allocation2 + $0x8] sm:$0xff]
    %v202 = vld [vmem:[#allocation2 + $0x10] sm:$0xff]
    %v203 = vld [vmem:[#allocation2 + $0x18] sm:$0xff]
    %v204 = vld [vmem:[#allocation2 + $0x20] sm:$0xff]
    %v205 = vld [vmem:[#allocation2 + $0x28] sm:$0xff]
    %v206 = vld [vmem:[#allocation2 + $0x30] sm:$0xff]
    %v207 = vld [vmem:[#allocation2 + $0x38] sm:$0xff]
    %v208 = vld [vmem:[#allocation2 + $0x40] sm:$0xff]
    %v209 = vld [vmem:[#allocation2 + $0x48] sm:$0xff]
    %v210 = vld [vmem:[#allocation2 + $0x50] sm:$0xff]
    %vm211 = vsmask.f32 256
    %v213 = vshrl.u32 %v200, 16
    %v215 = vrot.slane %v213, 7
    %v217 = vshrl.u32 %v201, 16
    %v219 = vrot.slane %v217, 7
    %v220 = vshll.u32 %v201, 16
    %v222 = vor.u32 %v219, %v220
    %v223 = vsel %vm211, %v215, %v222
    %v225 = vshrl.u32 %v202, 16
    %v227 = vrot.slane %v225, 7
    %v228 = vshll.u32 %v202, 16
    %v230 = vor.u32 %v227, %v228
    %v231 = vsel %vm211, %v219, %v230
    %v233 = vshrl.u32 %v203, 16
    %v235 = vrot.slane %v233, 7
    %v236 = vshll.u32 %v203, 16
    %v238 = vor.u32 %v235, %v236
    %v239 = vsel %vm211, %v227, %v238
    %v241 = vshrl.u32 %v204, 16
    %v243 = vrot.slane %v241, 7
    %v244 = vshll.u32 %v204, 16
    %v246 = vor.u32 %v243, %v244
    %v247 = vsel %vm211, %v235, %v246
    %v249 = vshrl.u32 %v205, 16
    %v251 = vrot.slane %v249, 7
    %v252 = vshll.u32 %v205, 16
    %v254 = vor.u32 %v251, %v252
    %v255 = vsel %vm211, %v243, %v254
    %v257 = vshrl.u32 %v206, 16
    %v259 = vrot.slane %v257, 7
    %v260 = vshll.u32 %v206, 16
    %v262 = vor.u32 %v259, %v260
    %v263 = vsel %vm211, %v251, %v262
    %v265 = vshrl.u32 %v207, 16
    %v267 = vrot.slane %v265, 7
    %v268 = vshll.u32 %v207, 16
    %v270 = vor.u32 %v267, %v268
    %v271 = vsel %vm211, %v259, %v270
    %v273 = vshrl.u32 %v208, 16
    %v275 = vrot.slane %v273, 7
    %v276 = vshll.u32 %v208, 16
    %v278 = vor.u32 %v275, %v276
    %v279 = vsel %vm211, %v267, %v278
    %v281 = vshrl.u32 %v209, 16
    %v283 = vrot.slane %v281, 7
    %v284 = vshll.u32 %v209, 16
    %v286 = vor.u32 %v283, %v284
    %v287 = vsel %vm211, %v275, %v286
    %v289 = vshrl.u32 %v210, 16
    %v291 = vrot.slane %v289, 7
    %v292 = vshll.u32 %v210, 16
    %v294 = vor.u32 %v291, %v292
    %v295 = vsel %vm211, %v283, %v294
    %306 = vst.msk [vmem:[#allocation4] sm:$0xff] %vm18, %v223
    %307 = vst.msk [vmem:[#allocation4 + $0x28] sm:$0xff] %vm18, %v231
    %308 = vst.msk [vmem:[#allocation4 + $0x50] sm:$0xff] %vm18, %v239
    %309 = vst.msk [vmem:[#allocation4 + $0x78] sm:$0xff] %vm18, %v247
    %310 = vst.msk [vmem:[#allocation4 + $0xa0] sm:$0xff] %vm18, %v255
    %311 = vst.msk [vmem:[#allocation4 + $0xc8] sm:$0xff] %vm18, %v263
    %312 = vst.msk [vmem:[#allocation4 + $0xf0] sm:$0xff] %vm18, %v271
    %313 = vst.msk [vmem:[#allocation4 + $0x118] sm:$0xff] %vm18, %v279
    %314 = vst.msk [vmem:[#allocation4 + $0x140] sm:$0xff] %vm18, %v287
    %315 = vst.msk [vmem:[#allocation4 + $0x168] sm:$0xff] %vm18, %v295
    %v316 = vld [vmem:[#allocation2 + $0x8] sm:$0xff]
    %v317 = vld [vmem:[#allocation2 + $0x10] sm:$0xff]
    %v318 = vld [vmem:[#allocation2 + $0x18] sm:$0xff]
    %v319 = vld [vmem:[#allocation2 + $0x20] sm:$0xff]
    %v320 = vld [vmem:[#allocation2 + $0x28] sm:$0xff]
    %v321 = vld [vmem:[#allocation2 + $0x30] sm:$0xff]
    %v322 = vld [vmem:[#allocation2 + $0x38] sm:$0xff]
    %v323 = vld [vmem:[#allocation2 + $0x40] sm:$0xff]
    %v324 = vld [vmem:[#allocation2 + $0x48] sm:$0xff]
    %v325 = vld [vmem:[#allocation2 + $0x50] sm:$0xff]
    %336 = vrot.lane.b32.xlu0 %v316, 64
    %v337 = vpop.permute.xlu0 %336
    %338 = vrot.lane.b32.xlu0 %v317, 64
    %v339 = vpop.permute.xlu0 %338
    %340 = vrot.lane.b32.xlu0 %v318, 64
    %v341 = vpop.permute.xlu0 %340
    %342 = vrot.lane.b32.xlu0 %v319, 64
    %v343 = vpop.permute.xlu0 %342
    %344 = vrot.lane.b32.xlu0 %v320, 64
    %v345 = vpop.permute.xlu0 %344
    %346 = vrot.lane.b32.xlu0 %v321, 64
    %v347 = vpop.permute.xlu0 %346
    %348 = vrot.lane.b32.xlu0 %v322, 64
    %v349 = vpop.permute.xlu0 %348
    %350 = vrot.lane.b32.xlu0 %v323, 64
    %v351 = vpop.permute.xlu0 %350
    %352 = vrot.lane.b32.xlu0 %v324, 64
    %v353 = vpop.permute.xlu0 %352
    %354 = vrot.lane.b32.xlu0 %v325, 64
    %v355 = vpop.permute.xlu0 %354
    %vm366 = vcmask 1048064
    %367 = vst.msk [vmem:[#allocation4] sm:$0xff] %vm366, %v337
    %368 = vst.msk [vmem:[#allocation4 + $0x28] sm:$0xff] %vm366, %v339
    %369 = vst.msk [vmem:[#allocation4 + $0x50] sm:$0xff] %vm366, %v341
    %370 = vst.msk [vmem:[#allocation4 + $0x78] sm:$0xff] %vm366, %v343
    %371 = vst.msk [vmem:[#allocation4 + $0xa0] sm:$0xff] %vm366, %v345
    %372 = vst.msk [vmem:[#allocation4 + $0xc8] sm:$0xff] %vm366, %v347
    %373 = vst.msk [vmem:[#allocation4 + $0xf0] sm:$0xff] %vm366, %v349
    %374 = vst.msk [vmem:[#allocation4 + $0x118] sm:$0xff] %vm366, %v351
    %375 = vst.msk [vmem:[#allocation4 + $0x140] sm:$0xff] %vm366, %v353
    %376 = vst.msk [vmem:[#allocation4 + $0x168] sm:$0xff] %vm366, %v355
    %v377 = vld [vmem:[#allocation2 + $0x8] sm:$0xff]
    %v378 = vld [vmem:[#allocation2 + $0x10] sm:$0xff]
    %v379 = vld [vmem:[#allocation2 + $0x18] sm:$0xff]
    %v380 = vld [vmem:[#allocation2 + $0x20] sm:$0xff]
    %v381 = vld [vmem:[#allocation2 + $0x28] sm:$0xff]
    %v382 = vld [vmem:[#allocation2 + $0x30] sm:$0xff]
    %v383 = vld [vmem:[#allocation2 + $0x38] sm:$0xff]
    %v384 = vld [vmem:[#allocation2 + $0x40] sm:$0xff]
    %v385 = vld [vmem:[#allocation2 + $0x48] sm:$0xff]
    %v386 = vld [vmem:[#allocation2 + $0x50] sm:$0xff]
    %v387 = vld [vmem:[#allocation2 + $0x58] sm:$0x1]
    %vm388 = vsmask.f32 7424
    %v390 = vshrl.u32 %v377, 16
    %v392 = vshll.u32 %v377, 16
    %v394 = vrot.slane %v392, 1
    %v395 = vor.u32 %v390, %v394
    %v397 = vshll.u32 %v378, 16
    %v399 = vrot.slane %v397, 1
    %v400 = vsel %vm388, %v395, %v399
    %v401 = vshrl.u32 %v378, 16
    %v403 = vor.u32 %v401, %v399
    %v405 = vshll.u32 %v379, 16
    %v407 = vrot.slane %v405, 1
    %v408 = vsel %vm388, %v403, %v407
    %v409 = vshrl.u32 %v379, 16
    %v411 = vor.u32 %v409, %v407
    %v413 = vshll.u32 %v380, 16
    %v415 = vrot.slane %v413, 1
    %v416 = vsel %vm388, %v411, %v415
    %v417 = vshrl.u32 %v380, 16
    %v419 = vor.u32 %v417, %v415
    %v421 = vshll.u32 %v381, 16
    %v423 = vrot.slane %v421, 1
    %v424 = vsel %vm388, %v419, %v423
    %v425 = vshrl.u32 %v381, 16
    %v427 = vor.u32 %v425, %v423
    %v429 = vshll.u32 %v382, 16
    %v431 = vrot.slane %v429, 1
    %v432 = vsel %vm388, %v427, %v431
    %v433 = vshrl.u32 %v382, 16
    %v435 = vor.u32 %v433, %v431
    %v437 = vshll.u32 %v383, 16
    %v439 = vrot.slane %v437, 1
    %v440 = vsel %vm388, %v435, %v439
    %v441 = vshrl.u32 %v383, 16
    %v443 = vor.u32 %v441, %v439
    %v445 = vshll.u32 %v384, 16
    %v447 = vrot.slane %v445, 1
    %v448 = vsel %vm388, %v443, %v447
    %v449 = vshrl.u32 %v384, 16
    %v451 = vor.u32 %v449, %v447
    %v453 = vshll.u32 %v385, 16
    %v455 = vrot.slane %v453, 1
    %v456 = vsel %vm388, %v451, %v455
    %v457 = vshrl.u32 %v385, 16
    %v459 = vor.u32 %v457, %v455
    %v461 = vshll.u32 %v386, 16
    %v463 = vrot.slane %v461, 1
    %v464 = vsel %vm388, %v459, %v463
    %v465 = vshrl.u32 %v386, 16
    %v467 = vor.u32 %v465, %v463
    %v469 = vshll.u32 %v387, 16
    %v471 = vrot.slane %v469, 1
    %v472 = vsel %vm388, %v467, %v471
    %483 = vst.msk [vmem:[#allocation4 + $0x8] sm:$0xff] %vm18, %v400
    %484 = vst.msk [vmem:[#allocation4 + $0x30] sm:$0xff] %vm18, %v408
    %485 = vst.msk [vmem:[#allocation4 + $0x58] sm:$0xff] %vm18, %v416
    %486 = vst.msk [vmem:[#allocation4 + $0x80] sm:$0xff] %vm18, %v424
    %487 = vst.msk [vmem:[#allocation4 + $0xa8] sm:$0xff] %vm18, %v432
    %488 = vst.msk [vmem:[#allocation4 + $0xd0] sm:$0xff] %vm18, %v440
    %489 = vst.msk [vmem:[#allocation4 + $0xf8] sm:$0xff] %vm18, %v448
    %490 = vst.msk [vmem:[#allocation4 + $0x120] sm:$0xff] %vm18, %v456
    %491 = vst.msk [vmem:[#allocation4 + $0x148] sm:$0xff] %vm18, %v464
    %492 = vst.msk [vmem:[#allocation4 + $0x170] sm:$0xff] %vm18, %v472
    %v493 = vld [vmem:[#allocation2 + $0x8] sm:$0x80]
    %v494 = vld [vmem:[#allocation2 + $0x10] sm:$0xff]
    %v495 = vld [vmem:[#allocation2 + $0x18] sm:$0xff]
    %v496 = vld [vmem:[#allocation2 + $0x20] sm:$0xff]
    %v497 = vld [vmem:[#allocation2 + $0x28] sm:$0xff]
    %v498 = vld [vmem:[#allocation2 + $0x30] sm:$0xff]
    %v499 = vld [vmem:[#allocation2 + $0x38] sm:$0xff]
    %v500 = vld [vmem:[#allocation2 + $0x40] sm:$0xff]
    %v501 = vld [vmem:[#allocation2 + $0x48] sm:$0xff]
    %v502 = vld [vmem:[#allocation2 + $0x50] sm:$0xff]
    %v503 = vld [vmem:[#allocation2 + $0x58] sm:$0xff]
    %v505 = vshrl.u32 %v493, 16
    %v507 = vrot.slane %v505, 7
    %v509 = vshrl.u32 %v494, 16
    %v511 = vrot.slane %v509, 7
    %v512 = vshll.u32 %v494, 16
    %v514 = vor.u32 %v511, %v512
    %v515 = vsel %vm211, %v507, %v514
    %v517 = vshrl.u32 %v495, 16
    %v519 = vrot.slane %v517, 7
    %v520 = vshll.u32 %v495, 16
    %v522 = vor.u32 %v519, %v520
    %v523 = vsel %vm211, %v511, %v522
    %v525 = vshrl.u32 %v496, 16
    %v527 = vrot.slane %v525, 7
    %v528 = vshll.u32 %v496, 16
    %v530 = vor.u32 %v527, %v528
    %v531 = vsel %vm211, %v519, %v530
    %v533 = vshrl.u32 %v497, 16
    %v535 = vrot.slane %v533, 7
    %v536 = vshll.u32 %v497, 16
    %v538 = vor.u32 %v535, %v536
    %v539 = vsel %vm211, %v527, %v538
    %v541 = vshrl.u32 %v498, 16
    %v543 = vrot.slane %v541, 7
    %v544 = vshll.u32 %v498, 16
    %v546 = vor.u32 %v543, %v544
    %v547 = vsel %vm211, %v535, %v546
    %v549 = vshrl.u32 %v499, 16
    %v551 = vrot.slane %v549, 7
    %v552 = vshll.u32 %v499, 16
    %v554 = vor.u32 %v551, %v552
    %v555 = vsel %vm211, %v543, %v554
    %v557 = vshrl.u32 %v500, 16
    %v559 = vrot.slane %v557, 7
    %v560 = vshll.u32 %v500, 16
    %v562 = vor.u32 %v559, %v560
    %v563 = vsel %vm211, %v551, %v562
    %v565 = vshrl.u32 %v501, 16
    %v567 = vrot.slane %v565, 7
    %v568 = vshll.u32 %v501, 16
    %v570 = vor.u32 %v567, %v568
    %v571 = vsel %vm211, %v559, %v570
    %v573 = vshrl.u32 %v502, 16
    %v575 = vrot.slane %v573, 7
    %v576 = vshll.u32 %v502, 16
    %v578 = vor.u32 %v575, %v576
    %v579 = vsel %vm211, %v567, %v578
    %v581 = vshrl.u32 %v503, 16
    %v583 = vrot.slane %v581, 7
    %v584 = vshll.u32 %v503, 16
    %v586 = vor.u32 %v583, %v584
    %v587 = vsel %vm211, %v575, %v586
    %588 = vrot.lane.b32.xlu0 %v515, 64
    %v589 = vpop.permute.xlu0 %588
    %590 = vrot.lane.b32.xlu0 %v523, 64
    %v591 = vpop.permute.xlu0 %590
    %592 = vrot.lane.b32.xlu0 %v531, 64
    %v593 = vpop.permute.xlu0 %592
    %594 = vrot.lane.b32.xlu0 %v539, 64
    %v595 = vpop.permute.xlu0 %594
    %596 = vrot.lane.b32.xlu0 %v547, 64
    %v597 = vpop.permute.xlu0 %596
    %598 = vrot.lane.b32.xlu0 %v555, 64
    %v599 = vpop.permute.xlu0 %598
    %600 = vrot.lane.b32.xlu0 %v563, 64
    %v601 = vpop.permute.xlu0 %600
    %602 = vrot.lane.b32.xlu0 %v571, 64
    %v603 = vpop.permute.xlu0 %602
    %604 = vrot.lane.b32.xlu0 %v579, 64
    %v605 = vpop.permute.xlu0 %604
    %606 = vrot.lane.b32.xlu0 %v587, 64
    %v607 = vpop.permute.xlu0 %606
    %618 = vst.msk [vmem:[#allocation4 + $0x8] sm:$0xff] %vm366, %v589
    %619 = vst.msk [vmem:[#allocation4 + $0x30] sm:$0xff] %vm366, %v591
    %620 = vst.msk [vmem:[#allocation4 + $0x58] sm:$0xff] %vm366, %v593
    %621 = vst.msk [vmem:[#allocation4 + $0x80] sm:$0xff] %vm366, %v595
    %622 = vst.msk [vmem:[#allocation4 + $0xa8] sm:$0xff] %vm366, %v597
    %623 = vst.msk [vmem:[#allocation4 + $0xd0] sm:$0xff] %vm366, %v599
    %624 = vst.msk [vmem:[#allocation4 + $0xf8] sm:$0xff] %vm366, %v601
    %625 = vst.msk [vmem:[#allocation4 + $0x120] sm:$0xff] %vm366, %v603
    %626 = vst.msk [vmem:[#allocation4 + $0x148] sm:$0xff] %vm366, %v605
    %627 = vst.msk [vmem:[#allocation4 + $0x170] sm:$0xff] %vm366, %v607
    %v628 = vld [vmem:[#allocation2 + $0x10] sm:$0xff]
    %v629 = vld [vmem:[#allocation2 + $0x18] sm:$0xff]
    %v630 = vld [vmem:[#allocation2 + $0x20] sm:$0xff]
    %v631 = vld [vmem:[#allocation2 + $0x28] sm:$0xff]
    %v632 = vld [vmem:[#allocation2 + $0x30] sm:$0xff]
    %v633 = vld [vmem:[#allocation2 + $0x38] sm:$0xff]
    %v634 = vld [vmem:[#allocation2 + $0x40] sm:$0xff]
    %v635 = vld [vmem:[#allocation2 + $0x48] sm:$0xff]
    %v636 = vld [vmem:[#allocation2 + $0x50] sm:$0xff]
    %v637 = vld [vmem:[#allocation2 + $0x58] sm:$0xff]
    %638 = vst.msk [vmem:[#allocation4 + $0x10] sm:$0xff] %vm18, %v628
    %639 = vst.msk [vmem:[#allocation4 + $0x38] sm:$0xff] %vm18, %v629
    %640 = vst.msk [vmem:[#allocation4 + $0x60] sm:$0xff] %vm18, %v630
    %641 = vst.msk [vmem:[#allocation4 + $0x88] sm:$0xff] %vm18, %v631
    %642 = vst.msk [vmem:[#allocation4 + $0xb0] sm:$0xff] %vm18, %v632
    %643 = vst.msk [vmem:[#allocation4 + $0xd8] sm:$0xff] %vm18, %v633
    %644 = vst.msk [vmem:[#allocation4 + $0x100] sm:$0xff] %vm18, %v634
    %645 = vst.msk [vmem:[#allocation4 + $0x128] sm:$0xff] %vm18, %v635
    %646 = vst.msk [vmem:[#allocation4 + $0x150] sm:$0xff] %vm18, %v636
    %647 = vst.msk [vmem:[#allocation4 + $0x178] sm:$0xff] %vm18, %v637
    %v648 = vld [vmem:[#allocation2 + $0x10] sm:$0xff]
    %v649 = vld [vmem:[#allocation2 + $0x18] sm:$0xff]
    %v650 = vld [vmem:[#allocation2 + $0x20] sm:$0xff]
    %v651 = vld [vmem:[#allocation2 + $0x28] sm:$0xff]
    %v652 = vld [vmem:[#allocation2 + $0x30] sm:$0xff]
    %v653 = vld [vmem:[#allocation2 + $0x38] sm:$0xff]
    %v654 = vld [vmem:[#allocation2 + $0x40] sm:$0xff]
    %v655 = vld [vmem:[#allocation2 + $0x48] sm:$0xff]
    %v656 = vld [vmem:[#allocation2 + $0x50] sm:$0xff]
    %v657 = vld [vmem:[#allocation2 + $0x58] sm:$0xff]
    %v658 = vld [vmem:[#allocation2 + $0x60] sm:$0x1]
    %v660 = vshrl.u32 %v648, 16
    %v662 = vshll.u32 %v648, 16
    %v664 = vrot.slane %v662, 1
    %v665 = vor.u32 %v660, %v664
    %v667 = vshll.u32 %v649, 16
    %v669 = vrot.slane %v667, 1
    %v670 = vsel %vm388, %v665, %v669
    %v671 = vshrl.u32 %v649, 16
    %v673 = vor.u32 %v671, %v669
    %v675 = vshll.u32 %v650, 16
    %v677 = vrot.slane %v675, 1
    %v678 = vsel %vm388, %v673, %v677
    %v679 = vshrl.u32 %v650, 16
    %v681 = vor.u32 %v679, %v677
    %v683 = vshll.u32 %v651, 16
    %v685 = vrot.slane %v683, 1
    %v686 = vsel %vm388, %v681, %v685
    %v687 = vshrl.u32 %v651, 16
    %v689 = vor.u32 %v687, %v685
    %v691 = vshll.u32 %v652, 16
    %v693 = vrot.slane %v691, 1
    %v694 = vsel %vm388, %v689, %v693
    %v695 = vshrl.u32 %v652, 16
    %v697 = vor.u32 %v695, %v693
    %v699 = vshll.u32 %v653, 16
    %v701 = vrot.slane %v699, 1
    %v702 = vsel %vm388, %v697, %v701
    %v703 = vshrl.u32 %v653, 16
    %v705 = vor.u32 %v703, %v701
    %v707 = vshll.u32 %v654, 16
    %v709 = vrot.slane %v707, 1
    %v710 = vsel %vm388, %v705, %v709
    %v711 = vshrl.u32 %v654, 16
    %v713 = vor.u32 %v711, %v709
    %v715 = vshll.u32 %v655, 16
    %v717 = vrot.slane %v715, 1
    %v718 = vsel %vm388, %v713, %v717
    %v719 = vshrl.u32 %v655, 16
    %v721 = vor.u32 %v719, %v717
    %v723 = vshll.u32 %v656, 16
    %v725 = vrot.slane %v723, 1
    %v726 = vsel %vm388, %v721, %v725
    %v727 = vshrl.u32 %v656, 16
    %v729 = vor.u32 %v727, %v725
    %v731 = vshll.u32 %v657, 16
    %v733 = vrot.slane %v731, 1
    %v734 = vsel %vm388, %v729, %v733
    %v735 = vshrl.u32 %v657, 16
    %v737 = vor.u32 %v735, %v733
    %v739 = vshll.u32 %v658, 16
    %v741 = vrot.slane %v739, 1
    %v742 = vsel %vm388, %v737, %v741
    %743 = vrot.lane.b32.xlu0 %v670, 64
    %v744 = vpop.permute.xlu0 %743
    %745 = vrot.lane.b32.xlu0 %v678, 64
    %v746 = vpop.permute.xlu0 %745
    %747 = vrot.lane.b32.xlu0 %v686, 64
    %v748 = vpop.permute.xlu0 %747
    %749 = vrot.lane.b32.xlu0 %v694, 64
    %v750 = vpop.permute.xlu0 %749
    %751 = vrot.lane.b32.xlu0 %v702, 64
    %v752 = vpop.permute.xlu0 %751
    %753 = vrot.lane.b32.xlu0 %v710, 64
    %v754 = vpop.permute.xlu0 %753
    %755 = vrot.lane.b32.xlu0 %v718, 64
    %v756 = vpop.permute.xlu0 %755
    %757 = vrot.lane.b32.xlu0 %v726, 64
    %v758 = vpop.permute.xlu0 %757
    %759 = vrot.lane.b32.xlu0 %v734, 64
    %v760 = vpop.permute.xlu0 %759
    %761 = vrot.lane.b32.xlu0 %v742, 64
    %v762 = vpop.permute.xlu0 %761
    %773 = vst.msk [vmem:[#allocation4 + $0x10] sm:$0xff] %vm366, %v744
    %774 = vst.msk [vmem:[#allocation4 + $0x38] sm:$0xff] %vm366, %v746
    %775 = vst.msk [vmem:[#allocation4 + $0x60] sm:$0xff] %vm366, %v748
    %776 = vst.msk [vmem:[#allocation4 + $0x88] sm:$0xff] %vm366, %v750
    %777 = vst.msk [vmem:[#allocation4 + $0xb0] sm:$0xff] %vm366, %v752
    %778 = vst.msk [vmem:[#allocation4 + $0xd8] sm:$0xff] %vm366, %v754
    %779 = vst.msk [vmem:[#allocation4 + $0x100] sm:$0xff] %vm366, %v756
    %780 = vst.msk [vmem:[#allocation4 + $0x128] sm:$0xff] %vm366, %v758
    %781 = vst.msk [vmem:[#allocation4 + $0x150] sm:$0xff] %vm366, %v760
    %782 = vst.msk [vmem:[#allocation4 + $0x178] sm:$0xff] %vm366, %v762
    %v783 = vld [vmem:[#allocation2 + $0x10] sm:$0x80]
    %v784 = vld [vmem:[#allocation2 + $0x18] sm:$0xff]
    %v785 = vld [vmem:[#allocation2 + $0x20] sm:$0xff]
    %v786 = vld [vmem:[#allocation2 + $0x28] sm:$0xff]
    %v787 = vld [vmem:[#allocation2 + $0x30] sm:$0xff]
    %v788 = vld [vmem:[#allocation2 + $0x38] sm:$0xff]
    %v789 = vld [vmem:[#allocation2 + $0x40] sm:$0xff]
    %v790 = vld [vmem:[#allocation2 + $0x48] sm:$0xff]
    %v791 = vld [vmem:[#allocation2 + $0x50] sm:$0xff]
    %v792 = vld [vmem:[#allocation2 + $0x58] sm:$0xff]
    %v793 = vld [vmem:[#allocation2 + $0x60] sm:$0xff]
    %v795 = vshrl.u32 %v783, 16
    %v797 = vrot.slane %v795, 7
    %v799 = vshrl.u32 %v784, 16
    %v801 = vrot.slane %v799, 7
    %v802 = vshll.u32 %v784, 16
    %v804 = vor.u32 %v801, %v802
    %v805 = vsel %vm211, %v797, %v804
    %v807 = vshrl.u32 %v785, 16
    %v809 = vrot.slane %v807, 7
    %v810 = vshll.u32 %v785, 16
    %v812 = vor.u32 %v809, %v810
    %v813 = vsel %vm211, %v801, %v812
    %v815 = vshrl.u32 %v786, 16
    %v817 = vrot.slane %v815, 7
    %v818 = vshll.u32 %v786, 16
    %v820 = vor.u32 %v817, %v818
    %v821 = vsel %vm211, %v809, %v820
    %v823 = vshrl.u32 %v787, 16
    %v825 = vrot.slane %v823, 7
    %v826 = vshll.u32 %v787, 16
    %v828 = vor.u32 %v825, %v826
    %v829 = vsel %vm211, %v817, %v828
    %v831 = vshrl.u32 %v788, 16
    %v833 = vrot.slane %v831, 7
    %v834 = vshll.u32 %v788, 16
    %v836 = vor.u32 %v833, %v834
    %v837 = vsel %vm211, %v825, %v836
    %v839 = vshrl.u32 %v789, 16
    %v841 = vrot.slane %v839, 7
    %v842 = vshll.u32 %v789, 16
    %v844 = vor.u32 %v841, %v842
    %v845 = vsel %vm211, %v833, %v844
    %v847 = vshrl.u32 %v790, 16
    %v849 = vrot.slane %v847, 7
    %v850 = vshll.u32 %v790, 16
    %v852 = vor.u32 %v849, %v850
    %v853 = vsel %vm211, %v841, %v852
    %v855 = vshrl.u32 %v791, 16
    %v857 = vrot.slane %v855, 7
    %v858 = vshll.u32 %v791, 16
    %v860 = vor.u32 %v857, %v858
    %v861 = vsel %vm211, %v849, %v860
    %v863 = vshrl.u32 %v792, 16
    %v865 = vrot.slane %v863, 7
    %v866 = vshll.u32 %v792, 16
    %v868 = vor.u32 %v865, %v866
    %v869 = vsel %vm211, %v857, %v868
    %v871 = vshrl.u32 %v793, 16
    %v873 = vrot.slane %v871, 7
    %v874 = vshll.u32 %v793, 16
    %v876 = vor.u32 %v873, %v874
    %v877 = vsel %vm211, %v865, %v876
    %888 = vst.msk [vmem:[#allocation4 + $0x18] sm:$0xff] %vm18, %v805
    %889 = vst.msk [vmem:[#allocation4 + $0x40] sm:$0xff] %vm18, %v813
    %890 = vst.msk [vmem:[#allocation4 + $0x68] sm:$0xff] %vm18, %v821
    %891 = vst.msk [vmem:[#allocation4 + $0x90] sm:$0xff] %vm18, %v829
    %892 = vst.msk [vmem:[#allocation4 + $0xb8] sm:$0xff] %vm18, %v837
    %893 = vst.msk [vmem:[#allocation4 + $0xe0] sm:$0xff] %vm18, %v845
    %894 = vst.msk [vmem:[#allocation4 + $0x108] sm:$0xff] %vm18, %v853
    %895 = vst.msk [vmem:[#allocation4 + $0x130] sm:$0xff] %vm18, %v861
    %896 = vst.msk [vmem:[#allocation4 + $0x158] sm:$0xff] %vm18, %v869
    %897 = vst.msk [vmem:[#allocation4 + $0x180] sm:$0xff] %vm18, %v877
    %v898 = vld [vmem:[#allocation2 + $0x18] sm:$0xff]
    %v899 = vld [vmem:[#allocation2 + $0x20] sm:$0xff]
    %v900 = vld [vmem:[#allocation2 + $0x28] sm:$0xff]
    %v901 = vld [vmem:[#allocation2 + $0x30] sm:$0xff]
    %v902 = vld [vmem:[#allocation2 + $0x38] sm:$0xff]
    %v903 = vld [vmem:[#allocation2 + $0x40] sm:$0xff]
    %v904 = vld [vmem:[#allocation2 + $0x48] sm:$0xff]
    %v905 = vld [vmem:[#allocation2 + $0x50] sm:$0xff]
    %v906 = vld [vmem:[#allocation2 + $0x58] sm:$0xff]
    %v907 = vld [vmem:[#allocation2 + $0x60] sm:$0xff]
    %918 = vrot.lane.b32.xlu0 %v898, 64
    %v919 = vpop.permute.xlu0 %918
    %920 = vrot.lane.b32.xlu0 %v899, 64
    %v921 = vpop.permute.xlu0 %920
    %922 = vrot.lane.b32.xlu0 %v900, 64
    %v923 = vpop.permute.xlu0 %922
    %924 = vrot.lane.b32.xlu0 %v901, 64
    %v925 = vpop.permute.xlu0 %924
    %926 = vrot.lane.b32.xlu0 %v902, 64
    %v927 = vpop.permute.xlu0 %926
    %928 = vrot.lane.b32.xlu0 %v903, 64
    %v929 = vpop.permute.xlu0 %928
    %930 = vrot.lane.b32.xlu0 %v904, 64
    %v931 = vpop.permute.xlu0 %930
    %932 = vrot.lane.b32.xlu0 %v905, 64
    %v933 = vpop.permute.xlu0 %932
    %934 = vrot.lane.b32.xlu0 %v906, 64
    %v935 = vpop.permute.xlu0 %934
    %936 = vrot.lane.b32.xlu0 %v907, 64
    %v937 = vpop.permute.xlu0 %936
    %948 = vst.msk [vmem:[#allocation4 + $0x18] sm:$0xff] %vm366, %v919
    %949 = vst.msk [vmem:[#allocation4 + $0x40] sm:$0xff] %vm366, %v921
    %950 = vst.msk [vmem:[#allocation4 + $0x68] sm:$0xff] %vm366, %v923
    %951 = vst.msk [vmem:[#allocation4 + $0x90] sm:$0xff] %vm366, %v925
    %952 = vst.msk [vmem:[#allocation4 + $0xb8] sm:$0xff] %vm366, %v927
    %953 = vst.msk [vmem:[#allocation4 + $0xe0] sm:$0xff] %vm366, %v929
    %954 = vst.msk [vmem:[#allocation4 + $0x108] sm:$0xff] %vm366, %v931
    %955 = vst.msk [vmem:[#allocation4 + $0x130] sm:$0xff] %vm366, %v933
    %956 = vst.msk [vmem:[#allocation4 + $0x158] sm:$0xff] %vm366, %v935
    %957 = vst.msk [vmem:[#allocation4 + $0x180] sm:$0xff] %vm366, %v937
    %v958 = vld [vmem:[#allocation2 + $0x18] sm:$0xff]
    %v959 = vld [vmem:[#allocation2 + $0x20] sm:$0xff]
    %v960 = vld [vmem:[#allocation2 + $0x28] sm:$0xff]
    %v961 = vld [vmem:[#allocation2 + $0x30] sm:$0xff]
    %v962 = vld [vmem:[#allocation2 + $0x38] sm:$0xff]
    %v963 = vld [vmem:[#allocation2 + $0x40] sm:$0xff]
    %v964 = vld [vmem:[#allocation2 + $0x48] sm:$0xff]
    %v965 = vld [vmem:[#allocation2 + $0x50] sm:$0xff]
    %v966 = vld [vmem:[#allocation2 + $0x58] sm:$0xff]
    %v967 = vld [vmem:[#allocation2 + $0x60] sm:$0xff]
    %v968 = vld [vmem:[#allocation2 + $0x68] sm:$0x1]
    %v970 = vshrl.u32 %v958, 16
    %v972 = vshll.u32 %v958, 16
    %v974 = vrot.slane %v972, 1
    %v975 = vor.u32 %v970, %v974
    %v977 = vshll.u32 %v959, 16
    %v979 = vrot.slane %v977, 1
    %v980 = vsel %vm388, %v975, %v979
    %v981 = vshrl.u32 %v959, 16
    %v983 = vor.u32 %v981, %v979
    %v985 = vshll.u32 %v960, 16
    %v987 = vrot.slane %v985, 1
    %v988 = vsel %vm388, %v983, %v987
    %v989 = vshrl.u32 %v960, 16
    %v991 = vor.u32 %v989, %v987
    %v993 = vshll.u32 %v961, 16
    %v995 = vrot.slane %v993, 1
    %v996 = vsel %vm388, %v991, %v995
    %v997 = vshrl.u32 %v961, 16
    %v999 = vor.u32 %v997, %v995
    %v1001 = vshll.u32 %v962, 16
    %v1003 = vrot.slane %v1001, 1
    %v1004 = vsel %vm388, %v999, %v1003
    %v1005 = vshrl.u32 %v962, 16
    %v1007 = vor.u32 %v1005, %v1003
    %v1009 = vshll.u32 %v963, 16
    %v1011 = vrot.slane %v1009, 1
    %v1012 = vsel %vm388, %v1007, %v1011
    %v1013 = vshrl.u32 %v963, 16
    %v1015 = vor.u32 %v1013, %v1011
    %v1017 = vshll.u32 %v964, 16
    %v1019 = vrot.slane %v1017, 1
    %v1020 = vsel %vm388, %v1015, %v1019
    %v1021 = vshrl.u32 %v964, 16
    %v1023 = vor.u32 %v1021, %v1019
    %v1025 = vshll.u32 %v965, 16
    %v1027 = vrot.slane %v1025, 1
    %v1028 = vsel %vm388, %v1023, %v1027
    %v1029 = vshrl.u32 %v965, 16
    %v1031 = vor.u32 %v1029, %v1027
    %v1033 = vshll.u32 %v966, 16
    %v1035 = vrot.slane %v1033, 1
    %v1036 = vsel %vm388, %v1031, %v1035
    %v1037 = vshrl.u32 %v966, 16
    %v1039 = vor.u32 %v1037, %v1035
    %v1041 = vshll.u32 %v967, 16
    %v1043 = vrot.slane %v1041, 1
    %v1044 = vsel %vm388, %v1039, %v1043
    %v1045 = vshrl.u32 %v967, 16
    %v1047 = vor.u32 %v1045, %v1043
    %v1049 = vshll.u32 %v968, 16
    %v1051 = vrot.slane %v1049, 1
    %v1052 = vsel %vm388, %v1047, %v1051
    %1063 = vst.msk [vmem:[#allocation4 + $0x20] sm:$0xff] %vm18, %v980
    %1064 = vst.msk [vmem:[#allocation4 + $0x48] sm:$0xff] %vm18, %v988
    %1065 = vst.msk [vmem:[#allocation4 + $0x70] sm:$0xff] %vm18, %v996
    %1066 = vst.msk [vmem:[#allocation4 + $0x98] sm:$0xff] %vm18, %v1004
    %1067 = vst.msk [vmem:[#allocation4 + $0xc0] sm:$0xff] %vm18, %v1012
    %1068 = vst.msk [vmem:[#allocation4 + $0xe8] sm:$0xff] %vm18, %v1020
    %1069 = vst.msk [vmem:[#allocation4 + $0x110] sm:$0xff] %vm18, %v1028
    %1070 = vst.msk [vmem:[#allocation4 + $0x138] sm:$0xff] %vm18, %v1036
    %1071 = vst.msk [vmem:[#allocation4 + $0x160] sm:$0xff] %vm18, %v1044
    %1072 = vst.msk [vmem:[#allocation4 + $0x188] sm:$0xff] %vm18, %v1052
    %v1073 = vld [vmem:[#allocation4] sm:$0xff]
    %v1074 = vld [vmem:[#allocation4 + $0x8] sm:$0xff]
    %v1075 = vld [vmem:[#allocation4 + $0x10] sm:$0xff]
    %v1076 = vld [vmem:[#allocation4 + $0x18] sm:$0xff]
    %v1077 = vld [vmem:[#allocation4 + $0x20] sm:$0xff]
    %v1078 = vld [vmem:[#allocation4 + $0x28] sm:$0xff]
    %v1079 = vld [vmem:[#allocation4 + $0x30] sm:$0xff]
    %v1080 = vld [vmem:[#allocation4 + $0x38] sm:$0xff]
    %v1081 = vld [vmem:[#allocation4 + $0x40] sm:$0xff]
    %v1082 = vld [vmem:[#allocation4 + $0x48] sm:$0xff]
    %v1083 = vld [vmem:[#allocation4 + $0x50] sm:$0xff]
    %v1084 = vld [vmem:[#allocation4 + $0x58] sm:$0xff]
    %v1085 = vld [vmem:[#allocation4 + $0x60] sm:$0xff]
    %v1086 = vld [vmem:[#allocation4 + $0x68] sm:$0xff]
    %v1087 = vld [vmem:[#allocation4 + $0x70] sm:$0xff]
    %v1088 = vld [vmem:[#allocation4 + $0x78] sm:$0xff]
    %v1089 = vld [vmem:[#allocation4 + $0x80] sm:$0xff]
    %v1090 = vld [vmem:[#allocation4 + $0x88] sm:$0xff]
    %v1091 = vld [vmem:[#allocation4 + $0x90] sm:$0xff]
    %v1092 = vld [vmem:[#allocation4 + $0x98] sm:$0xff]
    %v1093 = vld [vmem:[#allocation4 + $0xa0] sm:$0xff]
    %v1094 = vld [vmem:[#allocation4 + $0xa8] sm:$0xff]
    %v1095 = vld [vmem:[#allocation4 + $0xb0] sm:$0xff]
    %v1096 = vld [vmem:[#allocation4 + $0xb8] sm:$0xff]
    %v1097 = vld [vmem:[#allocation4 + $0xc0] sm:$0xff]
    %v1098 = vld [vmem:[#allocation4 + $0xc8] sm:$0xff]
    %v1099 = vld [vmem:[#allocation4 + $0xd0] sm:$0xff]
    %v1100 = vld [vmem:[#allocation4 + $0xd8] sm:$0xff]
    %v1101 = vld [vmem:[#allocation4 + $0xe0] sm:$0xff]
    %v1102 = vld [vmem:[#allocation4 + $0xe8] sm:$0xff]
    %v1103 = vld [vmem:[#allocation4 + $0xf0] sm:$0xff]
    %v1104 = vld [vmem:[#allocation4 + $0xf8] sm:$0xff]
    %v1105 = vld [vmem:[#allocation4 + $0x100] sm:$0xff]
    %v1106 = vld [vmem:[#allocation4 + $0x108] sm:$0xff]
    %v1107 = vld [vmem:[#allocation4 + $0x110] sm:$0xff]
    %v1108 = vld [vmem:[#allocation4 + $0x118] sm:$0xff]
    %v1109 = vld [vmem:[#allocation4 + $0x120] sm:$0xff]
    %v1110 = vld [vmem:[#allocation4 + $0x128] sm:$0xff]
    %v1111 = vld [vmem:[#allocation4 + $0x130] sm:$0xff]
    %v1112 = vld [vmem:[#allocation4 + $0x138] sm:$0xff]
    %v1113 = vld [vmem:[#allocation4 + $0x140] sm:$0xff]
    %v1114 = vld [vmem:[#allocation4 + $0x148] sm:$0xff]
    %v1115 = vld [vmem:[#allocation4 + $0x150] sm:$0xff]
    %v1116 = vld [vmem:[#allocation4 + $0x158] sm:$0xff]
    %v1117 = vld [vmem:[#allocation4 + $0x160] sm:$0xff]
    %v1118 = vld [vmem:[#allocation4 + $0x168] sm:$0xff]
    %v1119 = vld [vmem:[#allocation4 + $0x170] sm:$0xff]
    %v1120 = vld [vmem:[#allocation4 + $0x178] sm:$0xff]
    %v1121 = vld [vmem:[#allocation4 + $0x180] sm:$0xff]
    %v1122 = vld [vmem:[#allocation4 + $0x188] sm:$0xff]
    %v1124 = vlaneseq
    %v1125 = vshrl.u32 %v1124, 7
    %v1126 = vsub.s32 0, %v1125
    %v1127 = vrot.slane %v199, %v1126
    %v1201 = vunpack.c.l.b16 %v126
    %v1202 = vunpack.c.l.b16 %v127
    %v1203 = vunpack.c.l.b16 %v128
    %v1204 = vunpack.c.l.b16 %v129
    %v1205 = vunpack.c.l.b16 %v130
    %v1206 = vunpack.c.l.b16 %v131
    %v1207 = vunpack.c.l.b16 %v132
    %v1208 = vunpack.c.l.b16 %v133
    %v1209 = vunpack.c.l.b16 %v134
    %v1210 = vunpack.c.l.b16 %v135
    %v1211 = vunpack.c.l.b16 %v136
    %v1212 = vunpack.c.l.b16 %v137
    %v1213 = vunpack.c.l.b16 %v138
    %v1214 = vunpack.c.l.b16 %v139
    %v1215 = vunpack.c.l.b16 %v140
    %v1216 = vunpack.c.l.b16 %v141
    %v1217 = vunpack.c.l.b16 %v142
    %v1218 = vunpack.c.l.b16 %v143
    %v1219 = vunpack.c.l.b16 %v144
    %v1220 = vunpack.c.l.b16 %v145
    %v1221 = vunpack.c.l.b16 %v146
    %v1222 = vunpack.c.l.b16 %v147
    %v1223 = vunpack.c.l.b16 %v148
    %v1224 = vunpack.c.l.b16 %v149
    %v1225 = vunpack.c.l.b16 %v150
    %v1226 = vunpack.c.l.b16 %v151
    %v1227 = vunpack.c.l.b16 %v152
    %v1228 = vunpack.c.l.b16 %v153
    %v1229 = vunpack.c.l.b16 %v154
    %v1230 = vunpack.c.l.b16 %v155
    %v1231 = vunpack.c.l.b16 %v156
    %v1232 = vunpack.c.l.b16 %v157
    %v1233 = vunpack.c.l.b16 %v158
    %v1234 = vunpack.c.l.b16 %v159
    %v1235 = vunpack.c.l.b16 %v160
    %v1236 = vunpack.c.l.b16 %v161
    %v1237 = vunpack.c.l.b16 %v162
    %v1238 = vunpack.c.l.b16 %v163
    %v1239 = vunpack.c.l.b16 %v164
    %v1240 = vunpack.c.l.b16 %v165
    %v1241 = vunpack.c.l.b16 %v166
    %v1242 = vunpack.c.l.b16 %v167
    %v1243 = vunpack.c.l.b16 %v168
    %v1244 = vunpack.c.l.b16 %v169
    %v1245 = vunpack.c.l.b16 %v170
    %v1246 = vunpack.c.l.b16 %v171
    %v1247 = vunpack.c.l.b16 %v172
    %v1248 = vunpack.c.l.b16 %v173
    %v1249 = vunpack.c.l.b16 %v174
    %v1250 = vunpack.c.l.b16 %v175
    %v1251 = vunpack.c.l.b16 %v176
    %v1252 = vunpack.c.l.b16 %v177
    %v1253 = vunpack.c.l.b16 %v178
    %v1254 = vunpack.c.l.b16 %v179
    %v1255 = vunpack.c.l.b16 %v180
    %v1256 = vunpack.c.l.b16 %v181
    %v1257 = vunpack.c.l.b16 %v182
    %v1258 = vunpack.c.l.b16 %v183
    %v1259 = vunpack.c.l.b16 %v184
    %v1260 = vunpack.c.l.b16 %v185
    %v1261 = vunpack.c.l.b16 %v186
    %v1262 = vunpack.c.l.b16 %v187
    %v1263 = vunpack.c.l.b16 %v188
    %v1264 = vunpack.c.l.b16 %v189
    %v1265 = vunpack.c.l.b16 %v190
    %v1266 = vunpack.c.l.b16 %v191
    %v1267 = vunpack.c.l.b16 %v192
    %v1268 = vunpack.c.l.b16 %v193
    %v1269 = vunpack.c.l.b16 %v194
    %v1270 = vunpack.c.l.b16 %v195
    %v1271 = vunpack.c.l.b16 %v196
    %v1272 = vunpack.c.l.b16 %v197
    %v1273 = vpack.c.b16 %v1202, %v1201
    %v1274 = vpack.c.b16 %v1204, %v1203
    %v1275 = vpack.c.b16 %v1206, %v1205
    %v1276 = vpack.c.b16 %v1208, %v1207
    %v1277 = vpack.c.b16 %v1210, %v1209
    %v1278 = vpack.c.b16 %v1212, %v1211
    %v1279 = vpack.c.b16 %v1214, %v1213
    %v1280 = vpack.c.b16 %v1216, %v1215
    %v1281 = vpack.c.b16 %v1218, %v1217
    %v1282 = vpack.c.b16 %v1220, %v1219
    %v1283 = vpack.c.b16 %v1222, %v1221
    %v1284 = vpack.c.b16 %v1224, %v1223
    %v1285 = vpack.c.b16 %v1226, %v1225
    %v1286 = vpack.c.b16 %v1228, %v1227
    %v1287 = vpack.c.b16 %v1230, %v1229
    %v1288 = vpack.c.b16 %v1232, %v1231
    %v1289 = vpack.c.b16 %v1234, %v1233
    %v1290 = vpack.c.b16 %v1236, %v1235
    %v1291 = vpack.c.b16 %v1238, %v1237
    %v1292 = vpack.c.b16 %v1240, %v1239
    %v1293 = vpack.c.b16 %v1242, %v1241
    %v1294 = vpack.c.b16 %v1244, %v1243
    %v1295 = vpack.c.b16 %v1246, %v1245
    %v1296 = vpack.c.b16 %v1248, %v1247
    %v1297 = vpack.c.b16 %v1250, %v1249
    %v1298 = vpack.c.b16 %v1252, %v1251
    %v1299 = vpack.c.b16 %v1254, %v1253
    %v1300 = vpack.c.b16 %v1256, %v1255
    %v1301 = vpack.c.b16 %v1258, %v1257
    %v1302 = vpack.c.b16 %v1260, %v1259
    %v1303 = vpack.c.b16 %v1262, %v1261
    %v1304 = vpack.c.b16 %v1264, %v1263
    %v1305 = vpack.c.b16 %v1266, %v1265
    %v1306 = vpack.c.b16 %v1268, %v1267
    %v1307 = vpack.c.b16 %v1270, %v1269
    %v1308 = vpack.c.b16 %v1272, %v1271
    %v1346 = vsel %vm18, %v1077, 0
    %v1349 = vsel %vm18, %v1082, 0
    %v1352 = vsel %vm18, %v1087, 0
    %v1355 = vsel %vm18, %v1092, 0
    %v1358 = vsel %vm18, %v1097, 0
    %v1361 = vsel %vm18, %v1102, 0
    %v1364 = vsel %vm18, %v1107, 0
    %v1367 = vsel %vm18, %v1112, 0
    %v1370 = vsel %vm18, %v1117, 0
    %v1373 = vsel %vm18, %v1122, 0
    %1375 = vmatprep.subr.bf16.mxu0 0
    %1376 = vmatpush1.bf16.msra.mxu0 %v1273
    %1377 = vmatprep.subr.bf16.mxu0 0
    %1378 = vmatpush1.bf16.msra.mxu0 %v1274
    %1379 = vmatprep.subr.bf16.mxu0 0
    %1380 = vmatpush1.bf16.msra.mxu0 %v1275
    %1381 = vmatprep.subr.bf16.mxu0 0
    %1382 = vmatpush1.bf16.msra.mxu0 %v1276
    %1383 = vmatprep.subr.bf16.mxu0 0
    %1384 = vmatpush1.bf16.msra.mxu0 %v1277
    %1385 = vmatprep.subr.bf16.mxu0 0
    %1386 = vmatpush1.bf16.msra.mxu0 %v1278
    %1387 = vmatprep.subr.bf16.mxu0 0
    %1388 = vmatpush1.bf16.msra.mxu0 %v1279
    %1389 = vmatprep.subr.bf16.mxu0 0
    %1390 = vmatpush1.bf16.msra.mxu0 %v1280
    %1391 = vmatprep.subr.bf16.mxu0 0
    %1392 = vmatpush1.bf16.msra.mxu0 %v1281
    %1393 = vmatprep.subr.bf16.mxu0 0
    %1394 = vmatpush1.bf16.msra.mxu0 %v1282
    %1395 = vmatprep.subr.bf16.mxu0 0
    %1396 = vmatpush1.bf16.msra.mxu0 %v1283
    %1397 = vmatprep.subr.bf16.mxu0 0
    %1398 = vmatpush1.bf16.msra.mxu0 %v1284
    %1399 = vmatprep.subr.bf16.mxu0 0
    %1400 = vmatpush1.bf16.msra.mxu0 %v1285
    %1401 = vmatprep.subr.bf16.mxu0 0
    %1402 = vmatpush1.bf16.msra.mxu0 %v1286
    %1403 = vmatprep.subr.bf16.mxu0 0
    %1404 = vmatpush1.bf16.msra.mxu0 %v1287
    %1405 = vmatprep.subr.bf16.mxu0 0
    %1406 = vmatpush1.bf16.msra.mxu0 %v1288
    %1407 = vmatprep.mubr.bf16.mxu0 %v1074
    %1408 = vmatmul.mubr.bf16.gmra.mrb[0].mxu0 %v1073
    %v1409 = vpop.f32.mrb[0].mxu0
    %v1410 = vadd.f32 %v1127, %v1409
    %v1411 = vpop.f32.mrb[0].mxu0
    %v1412 = vpop.f32.mrb[0].mxu0
    %v1413 = vadd.f32 %v1127, %v1412
    %v1414 = vpop.f32.mrb[0].mxu0
    %1415 = vmatprep.mubr.bf16.mxu0 %v1079
    %1416 = vmatmul.mubr.bf16.gmra.mrb[0].mxu0 %v1078
    %v1417 = vpop.f32.mrb[0].mxu0
    %v1418 = vadd.f32 %v1127, %v1417
    %v1419 = vpop.f32.mrb[0].mxu0
    %v1420 = vpop.f32.mrb[0].mxu0
    %v1421 = vadd.f32 %v1127, %v1420
    %v1422 = vpop.f32.mrb[0].mxu0
    %1423 = vmatprep.mubr.bf16.mxu0 %v1084
    %1424 = vmatmul.mubr.bf16.gmra.mrb[0].mxu0 %v1083
    %v1425 = vpop.f32.mrb[0].mxu0
    %v1426 = vadd.f32 %v1127, %v1425
    %v1427 = vpop.f32.mrb[0].mxu0
    %v1428 = vpop.f32.mrb[0].mxu0
    %v1429 = vadd.f32 %v1127, %v1428
    %v1430 = vpop.f32.mrb[0].mxu0
    %1431 = vmatprep.mubr.bf16.mxu0 %v1089
    %1432 = vmatmul.mubr.bf16.gmra.mrb[0].mxu0 %v1088
    %v1433 = vpop.f32.mrb[0].mxu0
    %v1434 = vadd.f32 %v1127, %v1433
    %v1435 = vpop.f32.mrb[0].mxu0
    %v1436 = vpop.f32.mrb[0].mxu0
    %v1437 = vadd.f32 %v1127, %v1436
    %v1438 = vpop.f32.mrb[0].mxu0
    %1439 = vmatprep.mubr.bf16.mxu0 %v1094
    %1440 = vmatmul.mubr.bf16.gmra.mrb[0].mxu0 %v1093
    %v1441 = vpop.f32.mrb[0].mxu0
    %v1442 = vadd.f32 %v1127, %v1441
    %v1443 = vpop.f32.mrb[0].mxu0
    %v1444 = vpop.f32.mrb[0].mxu0
    %v1445 = vadd.f32 %v1127, %v1444
    %v1446 = vpop.f32.mrb[0].mxu0
    %1447 = vmatprep.mubr.bf16.mxu0 %v1099
    %1448 = vmatmul.mubr.bf16.gmra.mrb[0].mxu0 %v1098
    %v1449 = vpop.f32.mrb[0].mxu0
    %v1450 = vadd.f32 %v1127, %v1449
    %v1451 = vpop.f32.mrb[0].mxu0
    %v1452 = vpop.f32.mrb[0].mxu0
    %v1453 = vadd.f32 %v1127, %v1452
    %v1454 = vpop.f32.mrb[0].mxu0
    %1455 = vmatprep.mubr.bf16.mxu0 %v1104
    %1456 = vmatmul.mubr.bf16.gmra.mrb[0].mxu0 %v1103
    %v1457 = vpop.f32.mrb[0].mxu0
    %v1458 = vadd.f32 %v1127, %v1457
    %v1459 = vpop.f32.mrb[0].mxu0
    %v1460 = vpop.f32.mrb[0].mxu0
    %v1461 = vadd.f32 %v1127, %v1460
    %v1462 = vpop.f32.mrb[0].mxu0
    %1463 = vmatprep.mubr.bf16.mxu0 %v1109
    %1464 = vmatmul.mubr.bf16.gmra.mrb[0].mxu0 %v1108
    %v1465 = vpop.f32.mrb[0].mxu0
    %v1466 = vadd.f32 %v1127, %v1465
    %v1467 = vpop.f32.mrb[0].mxu0
    %v1468 = vpop.f32.mrb[0].mxu0
    %v1469 = vadd.f32 %v1127, %v1468
    %v1470 = vpop.f32.mrb[0].mxu0
    %1471 = vmatprep.mubr.bf16.mxu0 %v1114
    %1472 = vmatmul.mubr.bf16.gmra.mrb[0].mxu0 %v1113
    %v1473 = vpop.f32.mrb[0].mxu0
    %v1474 = vadd.f32 %v1127, %v1473
    %v1475 = vpop.f32.mrb[0].mxu0
    %v1476 = vpop.f32.mrb[0].mxu0
    %v1477 = vadd.f32 %v1127, %v1476
    %v1478 = vpop.f32.mrb[0].mxu0
    %1479 = vmatprep.mubr.bf16.mxu0 %v1119
    %1480 = vmatmul.mubr.bf16.gmra.mrb[0].mxu0 %v1118
    %v1481 = vpop.f32.mrb[0].mxu0
    %v1482 = vadd.f32 %v1127, %v1481
    %v1483 = vpop.f32.mrb[0].mxu0
    %v1484 = vpop.f32.mrb[0].mxu0
    %v1485 = vadd.f32 %v1127, %v1484
    %v1486 = vpop.f32.mrb[0].mxu0
    %1487 = vdwg.mxu0
    %1488 = vmatprep.subr.bf16.mxu0 0
    %1489 = vmatpush1.bf16.msra.mxu0 %v1289
    %1490 = vmatprep.subr.bf16.mxu0 0
    %1491 = vmatpush1.bf16.msra.mxu0 %v1290
    %1492 = vmatprep.subr.bf16.mxu0 0
    %1493 = vmatpush1.bf16.msra.mxu0 %v1291
    %1494 = vmatprep.subr.bf16.mxu0 0
    %1495 = vmatpush1.bf16.msra.mxu0 %v1292
    %1496 = vmatprep.subr.bf16.mxu0 0
    %1497 = vmatpush1.bf16.msra.mxu0 %v1293
    %1498 = vmatprep.subr.bf16.mxu0 0
    %1499 = vmatpush1.bf16.msra.mxu0 %v1294
    %1500 = vmatprep.subr.bf16.mxu0 0
    %1501 = vmatpush1.bf16.msra.mxu0 %v1295
    %1502 = vmatprep.subr.bf16.mxu0 0
    %1503 = vmatpush1.bf16.msra.mxu0 %v1296
    %1504 = vmatprep.subr.bf16.mxu0 0
    %1505 = vmatpush1.bf16.msra.mxu0 %v1297
    %1506 = vmatprep.subr.bf16.mxu0 0
    %1507 = vmatpush1.bf16.msra.mxu0 %v1298
    %1508 = vmatprep.subr.bf16.mxu0 0
    %1509 = vmatpush1.bf16.msra.mxu0 %v1299
    %1510 = vmatprep.subr.bf16.mxu0 0
    %1511 = vmatpush1.bf16.msra.mxu0 %v1300
    %1512 = vmatprep.subr.bf16.mxu0 0
    %1513 = vmatpush1.bf16.msra.mxu0 %v1301
    %1514 = vmatprep.subr.bf16.mxu0 0
    %1515 = vmatpush1.bf16.msra.mxu0 %v1302
    %1516 = vmatprep.subr.bf16.mxu0 0
    %1517 = vmatpush1.bf16.msra.mxu0 %v1303
    %1518 = vmatprep.subr.bf16.mxu0 0
    %1519 = vmatpush1.bf16.msra.mxu0 %v1304
    %1520 = vmatprep.mubr.bf16.mxu0 %v1076
    %1521 = vmatmul.mubr.bf16.gmra.mrb[0].mxu0 %v1075
    %v1522 = vpop.f32.mrb[0].mxu0
    %v1523 = vadd.f32 %v1410, %v1522
    %v1524 = vpop.f32.mrb[0].mxu0
    %v1525 = vpop.f32.mrb[0].mxu0
    %v1526 = vadd.f32 %v1413, %v1525
    %v1527 = vpop.f32.mrb[0].mxu0
    %1528 = vmatprep.mubr.bf16.mxu0 %v1081
    %1529 = vmatmul.mubr.bf16.gmra.mrb[0].mxu0 %v1080
    %v1530 = vpop.f32.mrb[0].mxu0
    %v1531 = vadd.f32 %v1418, %v1530
    %v1532 = vpop.f32.mrb[0].mxu0
    %v1533 = vpop.f32.mrb[0].mxu0
    %v1534 = vadd.f32 %v1421, %v1533
    %v1535 = vpop.f32.mrb[0].mxu0
    %1536 = vmatprep.mubr.bf16.mxu0 %v1086
    %1537 = vmatmul.mubr.bf16.gmra.mrb[0].mxu0 %v1085
    %v1538 = vpop.f32.mrb[0].mxu0
    %v1539 = vadd.f32 %v1426, %v1538
    %v1540 = vpop.f32.mrb[0].mxu0
    %v1541 = vpop.f32.mrb[0].mxu0
    %v1542 = vadd.f32 %v1429, %v1541
    %v1543 = vpop.f32.mrb[0].mxu0
    %1544 = vmatprep.mubr.bf16.mxu0 %v1091
    %1545 = vmatmul.mubr.bf16.gmra.mrb[0].mxu0 %v1090
    %v1546 = vpop.f32.mrb[0].mxu0
    %v1547 = vadd.f32 %v1434, %v1546
    %v1548 = vpop.f32.mrb[0].mxu0
    %v1549 = vpop.f32.mrb[0].mxu0
    %v1550 = vadd.f32 %v1437, %v1549
    %v1551 = vpop.f32.mrb[0].mxu0
    %1552 = vmatprep.mubr.bf16.mxu0 %v1096
    %1553 = vmatmul.mubr.bf16.gmra.mrb[0].mxu0 %v1095
    %v1554 = vpop.f32.mrb[0].mxu0
    %v1555 = vadd.f32 %v1442, %v1554
    %v1556 = vpop.f32.mrb[0].mxu0
    %v1557 = vpop.f32.mrb[0].mxu0
    %v1558 = vadd.f32 %v1445, %v1557
    %v1559 = vpop.f32.mrb[0].mxu0
    %1560 = vmatprep.mubr.bf16.mxu0 %v1101
    %1561 = vmatmul.mubr.bf16.gmra.mrb[0].mxu0 %v1100
    %v1562 = vpop.f32.mrb[0].mxu0
    %v1563 = vadd.f32 %v1450, %v1562
    %v1564 = vpop.f32.mrb[0].mxu0
    %v1565 = vpop.f32.mrb[0].mxu0
    %v1566 = vadd.f32 %v1453, %v1565
    %v1567 = vpop.f32.mrb[0].mxu0
    %1568 = vmatprep.mubr.bf16.mxu0 %v1106
    %1569 = vmatmul.mubr.bf16.gmra.mrb[0].mxu0 %v1105
    %v1570 = vpop.f32.mrb[0].mxu0
    %v1571 = vadd.f32 %v1458, %v1570
    %v1572 = vpop.f32.mrb[0].mxu0
    %v1573 = vpop.f32.mrb[0].mxu0
    %v1574 = vadd.f32 %v1461, %v1573
    %v1575 = vpop.f32.mrb[0].mxu0
    %1576 = vmatprep.mubr.bf16.mxu0 %v1111
    %1577 = vmatmul.mubr.bf16.gmra.mrb[0].mxu0 %v1110
    %v1578 = vpop.f32.mrb[0].mxu0
    %v1579 = vadd.f32 %v1466, %v1578
    %v1580 = vpop.f32.mrb[0].mxu0
    %v1581 = vpop.f32.mrb[0].mxu0
    %v1582 = vadd.f32 %v1469, %v1581
    %v1583 = vpop.f32.mrb[0].mxu0
    %1584 = vmatprep.mubr.bf16.mxu0 %v1116
    %1585 = vmatmul.mubr.bf16.gmra.mrb[0].mxu0 %v1115
    %v1586 = vpop.f32.mrb[0].mxu0
    %v1587 = vadd.f32 %v1474, %v1586
    %v1588 = vpop.f32.mrb[0].mxu0
    %v1589 = vpop.f32.mrb[0].mxu0
    %v1590 = vadd.f32 %v1477, %v1589
    %v1591 = vpop.f32.mrb[0].mxu0
    %1592 = vmatprep.mubr.bf16.mxu0 %v1121
    %1593 = vmatmul.mubr.bf16.gmra.mrb[0].mxu0 %v1120
    %v1594 = vpop.f32.mrb[0].mxu0
    %v1595 = vadd.f32 %v1482, %v1594
    %v1596 = vpop.f32.mrb[0].mxu0
    %v1597 = vpop.f32.mrb[0].mxu0
    %v1598 = vadd.f32 %v1485, %v1597
    %v1599 = vpop.f32.mrb[0].mxu0
    %1600 = vdwg.mxu0
    %1601 = vmatprep.subr.bf16.mxu0 0
    %1602 = vmatpush1.bf16.msra.mxu0 %v1305
    %1603 = vmatprep.subr.bf16.mxu0 0
    %1604 = vmatpush1.bf16.msra.mxu0 %v1306
    %1605 = vmatprep.subr.bf16.mxu0 0
    %1606 = vmatpush1.bf16.msra.mxu0 %v1307
    %1607 = vmatprep.subr.bf16.mxu0 0
    %1608 = vmatpush1.bf16.msra.mxu0 %v1308
    %1609 = vmatprep.subr.bf16.mxu0 0
    %1610 = vmatpush1.bf16.msra.mxu0 0
    %1611 = vmatprep.subr.bf16.mxu0 0
    %1612 = vmatpush1.bf16.msra.mxu0 0
    %1613 = vmatprep.subr.bf16.mxu0 0
    %1614 = vmatpush1.bf16.msra.mxu0 0
    %1615 = vmatprep.subr.bf16.mxu0 0
    %1616 = vmatpush1.bf16.msra.mxu0 0
    %1617 = vmatprep.subr.bf16.mxu0 0
    %1618 = vmatpush1.bf16.msra.mxu0 0
    %1619 = vmatprep.subr.bf16.mxu0 0
    %1620 = vmatpush1.bf16.msra.mxu0 0
    %1621 = vmatprep.subr.bf16.mxu0 0
    %1622 = vmatpush1.bf16.msra.mxu0 0
    %1623 = vmatprep.subr.bf16.mxu0 0
    %1624 = vmatpush1.bf16.msra.mxu0 0
    %1625 = vmatprep.subr.bf16.mxu0 0
    %1626 = vmatpush1.bf16.msra.mxu0 0
    %1627 = vmatprep.subr.bf16.mxu0 0
    %1628 = vmatpush1.bf16.msra.mxu0 0
    %1629 = vmatprep.subr.bf16.mxu0 0
    %1630 = vmatpush1.bf16.msra.mxu0 0
    %1631 = vmatprep.subr.bf16.mxu0 0
    %1632 = vmatpush1.bf16.msra.mxu0 0
    %1633 = vmatprep.mubr.bf16.mxu0 0
    %1634 = vmatmul.mubr.bf16.gmra.mrb[0].mxu0 %v1346
    %v1635 = vpop.f32.mrb[0].mxu0
    %v1636 = vadd.f32 %v1523, %v1635
    %v1637 = vpop.f32.mrb[0].mxu0
    %v1638 = vpop.f32.mrb[0].mxu0
    %v1639 = vadd.f32 %v1526, %v1638
    %v1640 = vpop.f32.mrb[0].mxu0
    %1641 = vmatprep.mubr.bf16.mxu0 0
    %1642 = vmatmul.mubr.bf16.gmra.mrb[0].mxu0 %v1349
    %v1643 = vpop.f32.mrb[0].mxu0
    %v1644 = vadd.f32 %v1531, %v1643
    %v1645 = vpop.f32.mrb[0].mxu0
    %v1646 = vpop.f32.mrb[0].mxu0
    %v1647 = vadd.f32 %v1534, %v1646
    %v1648 = vpop.f32.mrb[0].mxu0
    %1649 = vmatprep.mubr.bf16.mxu0 0
    %1650 = vmatmul.mubr.bf16.gmra.mrb[0].mxu0 %v1352
    %v1651 = vpop.f32.mrb[0].mxu0
    %v1652 = vadd.f32 %v1539, %v1651
    %v1653 = vpop.f32.mrb[0].mxu0
    %v1654 = vpop.f32.mrb[0].mxu0
    %v1655 = vadd.f32 %v1542, %v1654
    %v1656 = vpop.f32.mrb[0].mxu0
    %1657 = vmatprep.mubr.bf16.mxu0 0
    %1658 = vmatmul.mubr.bf16.gmra.mrb[0].mxu0 %v1355
    %v1659 = vpop.f32.mrb[0].mxu0
    %v1660 = vadd.f32 %v1547, %v1659
    %v1661 = vpop.f32.mrb[0].mxu0
    %v1662 = vpop.f32.mrb[0].mxu0
    %v1663 = vadd.f32 %v1550, %v1662
    %v1664 = vpop.f32.mrb[0].mxu0
    %1665 = vmatprep.mubr.bf16.mxu0 0
    %1666 = vmatmul.mubr.bf16.gmra.mrb[0].mxu0 %v1358
    %v1667 = vpop.f32.mrb[0].mxu0
    %v1668 = vadd.f32 %v1555, %v1667
    %v1669 = vpop.f32.mrb[0].mxu0
    %v1670 = vpop.f32.mrb[0].mxu0
    %v1671 = vadd.f32 %v1558, %v1670
    %v1672 = vpop.f32.mrb[0].mxu0
    %1673 = vmatprep.mubr.bf16.mxu0 0
    %1674 = vmatmul.mubr.bf16.gmra.mrb[0].mxu0 %v1361
    %v1675 = vpop.f32.mrb[0].mxu0
    %v1676 = vadd.f32 %v1563, %v1675
    %v1677 = vpop.f32.mrb[0].mxu0
    %v1678 = vpop.f32.mrb[0].mxu0
    %v1679 = vadd.f32 %v1566, %v1678
    %v1680 = vpop.f32.mrb[0].mxu0
    %1681 = vmatprep.mubr.bf16.mxu0 0
    %1682 = vmatmul.mubr.bf16.gmra.mrb[0].mxu0 %v1364
    %v1683 = vpop.f32.mrb[0].mxu0
    %v1684 = vadd.f32 %v1571, %v1683
    %v1685 = vpop.f32.mrb[0].mxu0
    %v1686 = vpop.f32.mrb[0].mxu0
    %v1687 = vadd.f32 %v1574, %v1686
    %v1688 = vpop.f32.mrb[0].mxu0
    %1689 = vmatprep.mubr.bf16.mxu0 0
    %1690 = vmatmul.mubr.bf16.gmra.mrb[0].mxu0 %v1367
    %v1691 = vpop.f32.mrb[0].mxu0
    %v1692 = vadd.f32 %v1579, %v1691
    %v1693 = vpop.f32.mrb[0].mxu0
    %v1694 = vpop.f32.mrb[0].mxu0
    %v1695 = vadd.f32 %v1582, %v1694
    %v1696 = vpop.f32.mrb[0].mxu0
    %1697 = vmatprep.mubr.bf16.mxu0 0
    %1698 = vmatmul.mubr.bf16.gmra.mrb[0].mxu0 %v1370
    %v1699 = vpop.f32.mrb[0].mxu0
    %v1700 = vadd.f32 %v1587, %v1699
    %v1701 = vpop.f32.mrb[0].mxu0
    %v1702 = vpop.f32.mrb[0].mxu0
    %v1703 = vadd.f32 %v1590, %v1702
    %v1704 = vpop.f32.mrb[0].mxu0
    %1705 = vmatprep.mubr.bf16.mxu0 0
    %1706 = vmatmul.mubr.bf16.gmra.mrb[0].mxu0 %v1373
    %v1707 = vpop.f32.mrb[0].mxu0
    %v1708 = vadd.f32 %v1595, %v1707
    %v1709 = vpop.f32.mrb[0].mxu0
    %v1710 = vpop.f32.mrb[0].mxu0
    %v1711 = vadd.f32 %v1598, %v1710
    %v1712 = vpop.f32.mrb[0].mxu0
    %1713 = vdwg.mxu0
    %v1714 = vmax.f32 %v1636, 0.0
    %v1715 = vmax.f32 %v1639, 0.0
    %v1716 = vmax.f32 %v1644, 0.0
    %v1717 = vmax.f32 %v1647, 0.0
    %v1718 = vmax.f32 %v1652, 0.0
    %v1719 = vmax.f32 %v1655, 0.0
    %v1720 = vmax.f32 %v1660, 0.0
    %v1721 = vmax.f32 %v1663, 0.0
    %v1722 = vmax.f32 %v1668, 0.0
    %v1723 = vmax.f32 %v1671, 0.0
    %v1724 = vmax.f32 %v1676, 0.0
    %v1725 = vmax.f32 %v1679, 0.0
    %v1726 = vmax.f32 %v1684, 0.0
    %v1727 = vmax.f32 %v1687, 0.0
    %v1728 = vmax.f32 %v1692, 0.0
    %v1729 = vmax.f32 %v1695, 0.0
    %v1730 = vmax.f32 %v1700, 0.0
    %v1731 = vmax.f32 %v1703, 0.0
    %v1732 = vmax.f32 %v1708, 0.0
    %v1733 = vmax.f32 %v1711, 0.0
    %v1734 = vld [vmem:[%s3] sm:$0xff]
    %v1735 = vld [vmem:[%s3 + $0x8] sm:$0xff]
    %v1736 = vld [vmem:[%s3 + $0x10] sm:$0xff]
    %v1737 = vld [vmem:[%s3 + $0x18] sm:$0xff]
    %v1738 = vld [vmem:[%s3 + $0x20] sm:$0xff]
    %v1739 = vld [vmem:[%s3 + $0x28] sm:$0xff]
    %v1740 = vld [vmem:[%s3 + $0x30] sm:$0xff]
    %v1741 = vld [vmem:[%s3 + $0x38] sm:$0xff]
    %v1742 = vld [vmem:[%s3 + $0x40] sm:$0xff]
    %v1743 = vld [vmem:[%s3 + $0x48] sm:$0xff]
    %v1744 = vld [vmem:[%s3 + $0x50] sm:$0xff]
    %v1745 = vld [vmem:[%s3 + $0x58] sm:$0xff]
    %v1746 = vld [vmem:[%s3 + $0x60] sm:$0xff]
    %v1747 = vld [vmem:[%s3 + $0x68] sm:$0xff]
    %v1748 = vld [vmem:[%s3 + $0x70] sm:$0xff]
    %v1749 = vld [vmem:[%s3 + $0x78] sm:$0xff]
    %v1750 = vld [vmem:[%s3 + $0x80] sm:$0xff]
    %v1751 = vld [vmem:[%s3 + $0x88] sm:$0xff]
    %v1752 = vld [vmem:[%s3 + $0x90] sm:$0xff]
    %v1753 = vld [vmem:[%s3 + $0x98] sm:$0xff]
    %1755 = vset.pattern.permute.xlu0 0
    %1756 = vperm.xlu0 %1755, %v1734
    %v1757 = vpop.permute.xlu0 %1756
    %1760 = vset.pattern.permute.xlu0 0
    %1761 = vperm.xlu0 %1760, %v1735
    %v1762 = vpop.permute.xlu0 %1761
    %1765 = vset.pattern.permute.xlu0 0
    %1766 = vperm.xlu0 %1765, %v1736
    %v1767 = vpop.permute.xlu0 %1766
    %1770 = vset.pattern.permute.xlu0 0
    %1771 = vperm.xlu0 %1770, %v1737
    %v1772 = vpop.permute.xlu0 %1771
    %1775 = vset.pattern.permute.xlu0 0
    %1776 = vperm.xlu0 %1775, %v1738
    %v1777 = vpop.permute.xlu0 %1776
    %1780 = vset.pattern.permute.xlu0 0
    %1781 = vperm.xlu0 %1780, %v1739
    %v1782 = vpop.permute.xlu0 %1781
    %1785 = vset.pattern.permute.xlu0 0
    %1786 = vperm.xlu0 %1785, %v1740
    %v1787 = vpop.permute.xlu0 %1786
    %1790 = vset.pattern.permute.xlu0 0
    %1791 = vperm.xlu0 %1790, %v1741
    %v1792 = vpop.permute.xlu0 %1791
    %1795 = vset.pattern.permute.xlu0 0
    %1796 = vperm.xlu0 %1795, %v1742
    %v1797 = vpop.permute.xlu0 %1796
    %1800 = vset.pattern.permute.xlu0 0
    %1801 = vperm.xlu0 %1800, %v1743
    %v1802 = vpop.permute.xlu0 %1801
    %1805 = vset.pattern.permute.xlu0 0
    %1806 = vperm.xlu0 %1805, %v1744
    %v1807 = vpop.permute.xlu0 %1806
    %1810 = vset.pattern.permute.xlu0 0
    %1811 = vperm.xlu0 %1810, %v1745
    %v1812 = vpop.permute.xlu0 %1811
    %1815 = vset.pattern.permute.xlu0 0
    %1816 = vperm.xlu0 %1815, %v1746
    %v1817 = vpop.permute.xlu0 %1816
    %1820 = vset.pattern.permute.xlu0 0
    %1821 = vperm.xlu0 %1820, %v1747
    %v1822 = vpop.permute.xlu0 %1821
    %1825 = vset.pattern.permute.xlu0 0
    %1826 = vperm.xlu0 %1825, %v1748
    %v1827 = vpop.permute.xlu0 %1826
    %1830 = vset.pattern.permute.xlu0 0
    %1831 = vperm.xlu0 %1830, %v1749
    %v1832 = vpop.permute.xlu0 %1831
    %1835 = vset.pattern.permute.xlu0 0
    %1836 = vperm.xlu0 %1835, %v1750
    %v1837 = vpop.permute.xlu0 %1836
    %1840 = vset.pattern.permute.xlu0 0
    %1841 = vperm.xlu0 %1840, %v1751
    %v1842 = vpop.permute.xlu0 %1841
    %1845 = vset.pattern.permute.xlu0 0
    %1846 = vperm.xlu0 %1845, %v1752
    %v1847 = vpop.permute.xlu0 %1846
    %1850 = vset.pattern.permute.xlu0 0
    %1851 = vperm.xlu0 %1850, %v1753
    %v1852 = vpop.permute.xlu0 %1851
    %v1854 = vmul.f32 %v1714, %v1757
    %v1855 = vmul.f32 %v1715, %v1762
    %v1856 = vmul.f32 %v1716, %v1767
    %v1857 = vmul.f32 %v1717, %v1772
    %v1858 = vmul.f32 %v1718, %v1777
    %v1859 = vmul.f32 %v1719, %v1782
    %v1860 = vmul.f32 %v1720, %v1787
    %v1861 = vmul.f32 %v1721, %v1792
    %v1862 = vmul.f32 %v1722, %v1797
    %v1863 = vmul.f32 %v1723, %v1802
    %v1864 = vmul.f32 %v1724, %v1807
    %v1865 = vmul.f32 %v1725, %v1812
    %v1866 = vmul.f32 %v1726, %v1817
    %v1867 = vmul.f32 %v1727, %v1822
    %v1868 = vmul.f32 %v1728, %v1827
    %v1869 = vmul.f32 %v1729, %v1832
    %v1870 = vmul.f32 %v1730, %v1837
    %v1871 = vmul.f32 %v1731, %v1842
    %v1872 = vmul.f32 %v1732, %v1847
    %v1873 = vmul.f32 %v1733, %v1852
    %v1874 = vpack.c.bf16 %v1855, %v1854
    %v1875 = vpack.c.bf16 %v1857, %v1856
    %v1876 = vpack.c.bf16 %v1859, %v1858
    %v1877 = vpack.c.bf16 %v1861, %v1860
    %v1878 = vpack.c.bf16 %v1863, %v1862
    %v1879 = vpack.c.bf16 %v1865, %v1864
    %v1880 = vpack.c.bf16 %v1867, %v1866
    %v1881 = vpack.c.bf16 %v1869, %v1868
    %v1882 = vpack.c.bf16 %v1871, %v1870
    %v1883 = vpack.c.bf16 %v1873, %v1872
    %1884 = vst.msk [vmem:[#allocation3 + $0x10] sm:$0xff] %vm18, %v1874
    %1885 = vst.msk [vmem:[#allocation3 + $0x18] sm:$0xff] %vm18, %v1875
    %1886 = vst.msk [vmem:[#allocation3 + $0x20] sm:$0xff] %vm18, %v1876
    %1887 = vst.msk [vmem:[#allocation3 + $0x28] sm:$0xff] %vm18, %v1877
    %1888 = vst.msk [vmem:[#allocation3 + $0x30] sm:$0xff] %vm18, %v1878
    %1889 = vst.msk [vmem:[#allocation3 + $0x38] sm:$0xff] %vm18, %v1879
    %1890 = vst.msk [vmem:[#allocation3 + $0x40] sm:$0xff] %vm18, %v1880
    %1891 = vst.msk [vmem:[#allocation3 + $0x48] sm:$0xff] %vm18, %v1881
    %1892 = vst.msk [vmem:[#allocation3 + $0x50] sm:$0xff] %vm18, %v1882
    %1893 = vst.msk [vmem:[#allocation3 + $0x58] sm:$0xff] %vm18, %v1883
    %v1894 = vld [vmem:[#allocation3] sm:$0x80]
    %v1895 = vld [vmem:[#allocation3 + $0x8] sm:$0xff]
    %v1896 = vld [vmem:[#allocation3 + $0x10] sm:$0xff]
    %v1897 = vld [vmem:[#allocation3 + $0x18] sm:$0xff]
    %v1898 = vld [vmem:[#allocation3 + $0x20] sm:$0xff]
    %v1899 = vld [vmem:[#allocation3 + $0x28] sm:$0xff]
    %v1900 = vld [vmem:[#allocation3 + $0x30] sm:$0xff]
    %v1901 = vld [vmem:[#allocation3 + $0x38] sm:$0xff]
    %v1902 = vld [vmem:[#allocation3 + $0x40] sm:$0xff]
    %v1903 = vld [vmem:[#allocation3 + $0x48] sm:$0xff]
    %v1904 = vld [vmem:[#allocation3 + $0x50] sm:$0xff]
    %v1906 = vshrl.u32 %v1894, 16
    %v1908 = vrot.slane %v1906, 7
    %v1910 = vshrl.u32 %v1895, 16
    %v1912 = vrot.slane %v1910, 7
    %v1913 = vshll.u32 %v1895, 16
    %v1915 = vor.u32 %v1912, %v1913
    %v1916 = vsel %vm211, %v1908, %v1915
    %v1918 = vshrl.u32 %v1896, 16
    %v1920 = vrot.slane %v1918, 7
    %v1921 = vshll.u32 %v1896, 16
    %v1923 = vor.u32 %v1920, %v1921
    %v1924 = vsel %vm211, %v1912, %v1923
    %v1926 = vshrl.u32 %v1897, 16
    %v1928 = vrot.slane %v1926, 7
    %v1929 = vshll.u32 %v1897, 16
    %v1931 = vor.u32 %v1928, %v1929
    %v1932 = vsel %vm211, %v1920, %v1931
    %v1934 = vshrl.u32 %v1898, 16
    %v1936 = vrot.slane %v1934, 7
    %v1937 = vshll.u32 %v1898, 16
    %v1939 = vor.u32 %v1936, %v1937
    %v1940 = vsel %vm211, %v1928, %v1939
    %v1942 = vshrl.u32 %v1899, 16
    %v1944 = vrot.slane %v1942, 7
    %v1945 = vshll.u32 %v1899, 16
    %v1947 = vor.u32 %v1944, %v1945
    %v1948 = vsel %vm211, %v1936, %v1947
    %v1950 = vshrl.u32 %v1900, 16
    %v1952 = vrot.slane %v1950, 7
    %v1953 = vshll.u32 %v1900, 16
    %v1955 = vor.u32 %v1952, %v1953
    %v1956 = vsel %vm211, %v1944, %v1955
    %v1958 = vshrl.u32 %v1901, 16
    %v1960 = vrot.slane %v1958, 7
    %v1961 = vshll.u32 %v1901, 16
    %v1963 = vor.u32 %v1960, %v1961
    %v1964 = vsel %vm211, %v1952, %v1963
    %v1966 = vshrl.u32 %v1902, 16
    %v1968 = vrot.slane %v1966, 7
    %v1969 = vshll.u32 %v1902, 16
    %v1971 = vor.u32 %v1968, %v1969
    %v1972 = vsel %vm211, %v1960, %v1971
    %v1974 = vshrl.u32 %v1903, 16
    %v1976 = vrot.slane %v1974, 7
    %v1977 = vshll.u32 %v1903, 16
    %v1979 = vor.u32 %v1976, %v1977
    %v1980 = vsel %vm211, %v1968, %v1979
    %v1982 = vshrl.u32 %v1904, 16
    %v1984 = vrot.slane %v1982, 7
    %v1985 = vshll.u32 %v1904, 16
    %v1987 = vor.u32 %v1984, %v1985
    %v1988 = vsel %vm211, %v1976, %v1987
    %1999 = vst.msk [vmem:[#allocation4] sm:$0xff] %vm18, %v1916
    %2000 = vst.msk [vmem:[#allocation4 + $0x28] sm:$0xff] %vm18, %v1924
    %2001 = vst.msk [vmem:[#allocation4 + $0x50] sm:$0xff] %vm18, %v1932
    %2002 = vst.msk [vmem:[#allocation4 + $0x78] sm:$0xff] %vm18, %v1940
    %2003 = vst.msk [vmem:[#allocation4 + $0xa0] sm:$0xff] %vm18, %v1948
    %2004 = vst.msk [vmem:[#allocation4 + $0xc8] sm:$0xff] %vm18, %v1956
    %2005 = vst.msk [vmem:[#allocation4 + $0xf0] sm:$0xff] %vm18, %v1964
    %2006 = vst.msk [vmem:[#allocation4 + $0x118] sm:$0xff] %vm18, %v1972
    %2007 = vst.msk [vmem:[#allocation4 + $0x140] sm:$0xff] %vm18, %v1980
    %2008 = vst.msk [vmem:[#allocation4 + $0x168] sm:$0xff] %vm18, %v1988
    %v2009 = vld [vmem:[#allocation3 + $0x8] sm:$0xff]
    %v2010 = vld [vmem:[#allocation3 + $0x10] sm:$0xff]
    %v2011 = vld [vmem:[#allocation3 + $0x18] sm:$0xff]
    %v2012 = vld [vmem:[#allocation3 + $0x20] sm:$0xff]
    %v2013 = vld [vmem:[#allocation3 + $0x28] sm:$0xff]
    %v2014 = vld [vmem:[#allocation3 + $0x30] sm:$0xff]
    %v2015 = vld [vmem:[#allocation3 + $0x38] sm:$0xff]
    %v2016 = vld [vmem:[#allocation3 + $0x40] sm:$0xff]
    %v2017 = vld [vmem:[#allocation3 + $0x48] sm:$0xff]
    %v2018 = vld [vmem:[#allocation3 + $0x50] sm:$0xff]
    %2029 = vrot.lane.b32.xlu0 %v2009, 64
    %v2030 = vpop.permute.xlu0 %2029
    %2031 = vrot.lane.b32.xlu0 %v2010, 64
    %v2032 = vpop.permute.xlu0 %2031
    %2033 = vrot.lane.b32.xlu0 %v2011, 64
    %v2034 = vpop.permute.xlu0 %2033
    %2035 = vrot.lane.b32.xlu0 %v2012, 64
    %v2036 = vpop.permute.xlu0 %2035
    %2037 = vrot.lane.b32.xlu0 %v2013, 64
    %v2038 = vpop.permute.xlu0 %2037
    %2039 = vrot.lane.b32.xlu0 %v2014, 64
    %v2040 = vpop.permute.xlu0 %2039
    %2041 = vrot.lane.b32.xlu0 %v2015, 64
    %v2042 = vpop.permute.xlu0 %2041
    %2043 = vrot.lane.b32.xlu0 %v2016, 64
    %v2044 = vpop.permute.xlu0 %2043
    %2045 = vrot.lane.b32.xlu0 %v2017, 64
    %v2046 = vpop.permute.xlu0 %2045
    %2047 = vrot.lane.b32.xlu0 %v2018, 64
    %v2048 = vpop.permute.xlu0 %2047
    %2059 = vst.msk [vmem:[#allocation4] sm:$0xff] %vm366, %v2030
    %2060 = vst.msk [vmem:[#allocation4 + $0x28] sm:$0xff] %vm366, %v2032
    %2061 = vst.msk [vmem:[#allocation4 + $0x50] sm:$0xff] %vm366, %v2034
    %2062 = vst.msk [vmem:[#allocation4 + $0x78] sm:$0xff] %vm366, %v2036
    %2063 = vst.msk [vmem:[#allocation4 + $0xa0] sm:$0xff] %vm366, %v2038
    %2064 = vst.msk [vmem:[#allocation4 + $0xc8] sm:$0xff] %vm366, %v2040
    %2065 = vst.msk [vmem:[#allocation4 + $0xf0] sm:$0xff] %vm366, %v2042
    %2066 = vst.msk [vmem:[#allocation4 + $0x118] sm:$0xff] %vm366, %v2044
    %2067 = vst.msk [vmem:[#allocation4 + $0x140] sm:$0xff] %vm366, %v2046
    %2068 = vst.msk [vmem:[#allocation4 + $0x168] sm:$0xff] %vm366, %v2048
    %v2069 = vld [vmem:[#allocation3 + $0x8] sm:$0xff]
    %v2070 = vld [vmem:[#allocation3 + $0x10] sm:$0xff]
    %v2071 = vld [vmem:[#allocation3 + $0x18] sm:$0xff]
    %v2072 = vld [vmem:[#allocation3 + $0x20] sm:$0xff]
    %v2073 = vld [vmem:[#allocation3 + $0x28] sm:$0xff]
    %v2074 = vld [vmem:[#allocation3 + $0x30] sm:$0xff]
    %v2075 = vld [vmem:[#allocation3 + $0x38] sm:$0xff]
    %v2076 = vld [vmem:[#allocation3 + $0x40] sm:$0xff]
    %v2077 = vld [vmem:[#allocation3 + $0x48] sm:$0xff]
    %v2078 = vld [vmem:[#allocation3 + $0x50] sm:$0xff]
    %v2079 = vld [vmem:[#allocation3 + $0x58] sm:$0x1]
    %v2081 = vshrl.u32 %v2069, 16
    %v2083 = vshll.u32 %v2069, 16
    %v2085 = vrot.slane %v2083, 1
    %v2086 = vor.u32 %v2081, %v2085
    %v2088 = vshll.u32 %v2070, 16
    %v2090 = vrot.slane %v2088, 1
    %v2091 = vsel %vm388, %v2086, %v2090
    %v2092 = vshrl.u32 %v2070, 16
    %v2094 = vor.u32 %v2092, %v2090
    %v2096 = vshll.u32 %v2071, 16
    %v2098 = vrot.slane %v2096, 1
    %v2099 = vsel %vm388, %v2094, %v2098
    %v2100 = vshrl.u32 %v2071, 16
    %v2102 = vor.u32 %v2100, %v2098
    %v2104 = vshll.u32 %v2072, 16
    %v2106 = vrot.slane %v2104, 1
    %v2107 = vsel %vm388, %v2102, %v2106
    %v2108 = vshrl.u32 %v2072, 16
    %v2110 = vor.u32 %v2108, %v2106
    %v2112 = vshll.u32 %v2073, 16
    %v2114 = vrot.slane %v2112, 1
    %v2115 = vsel %vm388, %v2110, %v2114
    %v2116 = vshrl.u32 %v2073, 16
    %v2118 = vor.u32 %v2116, %v2114
    %v2120 = vshll.u32 %v2074, 16
    %v2122 = vrot.slane %v2120, 1
    %v2123 = vsel %vm388, %v2118, %v2122
    %v2124 = vshrl.u32 %v2074, 16
    %v2126 = vor.u32 %v2124, %v2122
    %v2128 = vshll.u32 %v2075, 16
    %v2130 = vrot.slane %v2128, 1
    %v2131 = vsel %vm388, %v2126, %v2130
    %v2132 = vshrl.u32 %v2075, 16
    %v2134 = vor.u32 %v2132, %v2130
    %v2136 = vshll.u32 %v2076, 16
    %v2138 = vrot.slane %v2136, 1
    %v2139 = vsel %vm388, %v2134, %v2138
    %v2140 = vshrl.u32 %v2076, 16
    %v2142 = vor.u32 %v2140, %v2138
    %v2144 = vshll.u32 %v2077, 16
    %v2146 = vrot.slane %v2144, 1
    %v2147 = vsel %vm388, %v2142, %v2146
    %v2148 = vshrl.u32 %v2077, 16
    %v2150 = vor.u32 %v2148, %v2146
    %v2152 = vshll.u32 %v2078, 16
    %v2154 = vrot.slane %v2152, 1
    %v2155 = vsel %vm388, %v2150, %v2154
    %v2156 = vshrl.u32 %v2078, 16
    %v2158 = vor.u32 %v2156, %v2154
    %v2160 = vshll.u32 %v2079, 16
    %v2162 = vrot.slane %v2160, 1
    %v2163 = vsel %vm388, %v2158, %v2162
    %2174 = vst.msk [vmem:[#allocation4 + $0x8] sm:$0xff] %vm18, %v2091
    %2175 = vst.msk [vmem:[#allocation4 + $0x30] sm:$0xff] %vm18, %v2099
    %2176 = vst.msk [vmem:[#allocation4 + $0x58] sm:$0xff] %vm18, %v2107
    %2177 = vst.msk [vmem:[#allocation4 + $0x80] sm:$0xff] %vm18, %v2115
    %2178 = vst.msk [vmem:[#allocation4 + $0xa8] sm:$0xff] %vm18, %v2123
    %2179 = vst.msk [vmem:[#allocation4 + $0xd0] sm:$0xff] %vm18, %v2131
    %2180 = vst.msk [vmem:[#allocation4 + $0xf8] sm:$0xff] %vm18, %v2139
    %2181 = vst.msk [vmem:[#allocation4 + $0x120] sm:$0xff] %vm18, %v2147
    %2182 = vst.msk [vmem:[#allocation4 + $0x148] sm:$0xff] %vm18, %v2155
    %2183 = vst.msk [vmem:[#allocation4 + $0x170] sm:$0xff] %vm18, %v2163
    %v2184 = vld [vmem:[#allocation3 + $0x8] sm:$0x80]
    %v2185 = vld [vmem:[#allocation3 + $0x10] sm:$0xff]
    %v2186 = vld [vmem:[#allocation3 + $0x18] sm:$0xff]
    %v2187 = vld [vmem:[#allocation3 + $0x20] sm:$0xff]
    %v2188 = vld [vmem:[#allocation3 + $0x28] sm:$0xff]
    %v2189 = vld [vmem:[#allocation3 + $0x30] sm:$0xff]
    %v2190 = vld [vmem:[#allocation3 + $0x38] sm:$0xff]
    %v2191 = vld [vmem:[#allocation3 + $0x40] sm:$0xff]
    %v2192 = vld [vmem:[#allocation3 + $0x48] sm:$0xff]
    %v2193 = vld [vmem:[#allocation3 + $0x50] sm:$0xff]
    %v2194 = vld [vmem:[#allocation3 + $0x58] sm:$0xff]
    %v2196 = vshrl.u32 %v2184, 16
    %v2198 = vrot.slane %v2196, 7
    %v2200 = vshrl.u32 %v2185, 16
    %v2202 = vrot.slane %v2200, 7
    %v2203 = vshll.u32 %v2185, 16
    %v2205 = vor.u32 %v2202, %v2203
    %v2206 = vsel %vm211, %v2198, %v2205
    %v2208 = vshrl.u32 %v2186, 16
    %v2210 = vrot.slane %v2208, 7
    %v2211 = vshll.u32 %v2186, 16
    %v2213 = vor.u32 %v2210, %v2211
    %v2214 = vsel %vm211, %v2202, %v2213
    %v2216 = vshrl.u32 %v2187, 16
    %v2218 = vrot.slane %v2216, 7
    %v2219 = vshll.u32 %v2187, 16
    %v2221 = vor.u32 %v2218, %v2219
    %v2222 = vsel %vm211, %v2210, %v2221
    %v2224 = vshrl.u32 %v2188, 16
    %v2226 = vrot.slane %v2224, 7
    %v2227 = vshll.u32 %v2188, 16
    %v2229 = vor.u32 %v2226, %v2227
    %v2230 = vsel %vm211, %v2218, %v2229
    %v2232 = vshrl.u32 %v2189, 16
    %v2234 = vrot.slane %v2232, 7
    %v2235 = vshll.u32 %v2189, 16
    %v2237 = vor.u32 %v2234, %v2235
    %v2238 = vsel %vm211, %v2226, %v2237
    %v2240 = vshrl.u32 %v2190, 16
    %v2242 = vrot.slane %v2240, 7
    %v2243 = vshll.u32 %v2190, 16
    %v2245 = vor.u32 %v2242, %v2243
    %v2246 = vsel %vm211, %v2234, %v2245
    %v2248 = vshrl.u32 %v2191, 16
    %v2250 = vrot.slane %v2248, 7
    %v2251 = vshll.u32 %v2191, 16
    %v2253 = vor.u32 %v2250, %v2251
    %v2254 = vsel %vm211, %v2242, %v2253
    %v2256 = vshrl.u32 %v2192, 16
    %v2258 = vrot.slane %v2256, 7
    %v2259 = vshll.u32 %v2192, 16
    %v2261 = vor.u32 %v2258, %v2259
    %v2262 = vsel %vm211, %v2250, %v2261
    %v2264 = vshrl.u32 %v2193, 16
    %v2266 = vrot.slane %v2264, 7
    %v2267 = vshll.u32 %v2193, 16
    %v2269 = vor.u32 %v2266, %v2267
    %v2270 = vsel %vm211, %v2258, %v2269
    %v2272 = vshrl.u32 %v2194, 16
    %v2274 = vrot.slane %v2272, 7
    %v2275 = vshll.u32 %v2194, 16
    %v2277 = vor.u32 %v2274, %v2275
    %v2278 = vsel %vm211, %v2266, %v2277
    %2279 = vrot.lane.b32.xlu0 %v2206, 64
    %v2280 = vpop.permute.xlu0 %2279
    %2281 = vrot.lane.b32.xlu0 %v2214, 64
    %v2282 = vpop.permute.xlu0 %2281
    %2283 = vrot.lane.b32.xlu0 %v2222, 64
    %v2284 = vpop.permute.xlu0 %2283
    %2285 = vrot.lane.b32.xlu0 %v2230, 64
    %v2286 = vpop.permute.xlu0 %2285
    %2287 = vrot.lane.b32.xlu0 %v2238, 64
    %v2288 = vpop.permute.xlu0 %2287
    %2289 = vrot.lane.b32.xlu0 %v2246, 64
    %v2290 = vpop.permute.xlu0 %2289
    %2291 = vrot.lane.b32.xlu0 %v2254, 64
    %v2292 = vpop.permute.xlu0 %2291
    %2293 = vrot.lane.b32.xlu0 %v2262, 64
    %v2294 = vpop.permute.xlu0 %2293
    %2295 = vrot.lane.b32.xlu0 %v2270, 64
    %v2296 = vpop.permute.xlu0 %2295
    %2297 = vrot.lane.b32.xlu0 %v2278, 64
    %v2298 = vpop.permute.xlu0 %2297
    %2309 = vst.msk [vmem:[#allocation4 + $0x8] sm:$0xff] %vm366, %v2280
    %2310 = vst.msk [vmem:[#allocation4 + $0x30] sm:$0xff] %vm366, %v2282
    %2311 = vst.msk [vmem:[#allocation4 + $0x58] sm:$0xff] %vm366, %v2284
    %2312 = vst.msk [vmem:[#allocation4 + $0x80] sm:$0xff] %vm366, %v2286
    %2313 = vst.msk [vmem:[#allocation4 + $0xa8] sm:$0xff] %vm366, %v2288
    %2314 = vst.msk [vmem:[#allocation4 + $0xd0] sm:$0xff] %vm366, %v2290
    %2315 = vst.msk [vmem:[#allocation4 + $0xf8] sm:$0xff] %vm366, %v2292
    %2316 = vst.msk [vmem:[#allocation4 + $0x120] sm:$0xff] %vm366, %v2294
    %2317 = vst.msk [vmem:[#allocation4 + $0x148] sm:$0xff] %vm366, %v2296
    %2318 = vst.msk [vmem:[#allocation4 + $0x170] sm:$0xff] %vm366, %v2298
    %v2319 = vld [vmem:[#allocation3 + $0x10] sm:$0xff]
    %v2320 = vld [vmem:[#allocation3 + $0x18] sm:$0xff]
    %v2321 = vld [vmem:[#allocation3 + $0x20] sm:$0xff]
    %v2322 = vld [vmem:[#allocation3 + $0x28] sm:$0xff]
    %v2323 = vld [vmem:[#allocation3 + $0x30] sm:$0xff]
    %v2324 = vld [vmem:[#allocation3 + $0x38] sm:$0xff]
    %v2325 = vld [vmem:[#allocation3 + $0x40] sm:$0xff]
    %v2326 = vld [vmem:[#allocation3 + $0x48] sm:$0xff]
    %v2327 = vld [vmem:[#allocation3 + $0x50] sm:$0xff]
    %v2328 = vld [vmem:[#allocation3 + $0x58] sm:$0xff]
    %2329 = vst.msk [vmem:[#allocation4 + $0x10] sm:$0xff] %vm18, %v2319
    %2330 = vst.msk [vmem:[#allocation4 + $0x38] sm:$0xff] %vm18, %v2320
    %2331 = vst.msk [vmem:[#allocation4 + $0x60] sm:$0xff] %vm18, %v2321
    %2332 = vst.msk [vmem:[#allocation4 + $0x88] sm:$0xff] %vm18, %v2322
    %2333 = vst.msk [vmem:[#allocation4 + $0xb0] sm:$0xff] %vm18, %v2323
    %2334 = vst.msk [vmem:[#allocation4 + $0xd8] sm:$0xff] %vm18, %v2324
    %2335 = vst.msk [vmem:[#allocation4 + $0x100] sm:$0xff] %vm18, %v2325
    %2336 = vst.msk [vmem:[#allocation4 + $0x128] sm:$0xff] %vm18, %v2326
    %2337 = vst.msk [vmem:[#allocation4 + $0x150] sm:$0xff] %vm18, %v2327
    %2338 = vst.msk [vmem:[#allocation4 + $0x178] sm:$0xff] %vm18, %v2328
    %v2339 = vld [vmem:[#allocation3 + $0x10] sm:$0xff]
    %v2340 = vld [vmem:[#allocation3 + $0x18] sm:$0xff]
    %v2341 = vld [vmem:[#allocation3 + $0x20] sm:$0xff]
    %v2342 = vld [vmem:[#allocation3 + $0x28] sm:$0xff]
    %v2343 = vld [vmem:[#allocation3 + $0x30] sm:$0xff]
    %v2344 = vld [vmem:[#allocation3 + $0x38] sm:$0xff]
    %v2345 = vld [vmem:[#allocation3 + $0x40] sm:$0xff]
    %v2346 = vld [vmem:[#allocation3 + $0x48] sm:$0xff]
    %v2347 = vld [vmem:[#allocation3 + $0x50] sm:$0xff]
    %v2348 = vld [vmem:[#allocation3 + $0x58] sm:$0xff]
    %v2349 = vld [vmem:[#allocation3 + $0x60] sm:$0x1]
    %v2351 = vshrl.u32 %v2339, 16
    %v2353 = vshll.u32 %v2339, 16
    %v2355 = vrot.slane %v2353, 1
    %v2356 = vor.u32 %v2351, %v2355
    %v2358 = vshll.u32 %v2340, 16
    %v2360 = vrot.slane %v2358, 1
    %v2361 = vsel %vm388, %v2356, %v2360
    %v2362 = vshrl.u32 %v2340, 16
    %v2364 = vor.u32 %v2362, %v2360
    %v2366 = vshll.u32 %v2341, 16
    %v2368 = vrot.slane %v2366, 1
    %v2369 = vsel %vm388, %v2364, %v2368
    %v2370 = vshrl.u32 %v2341, 16
    %v2372 = vor.u32 %v2370, %v2368
    %v2374 = vshll.u32 %v2342, 16
    %v2376 = vrot.slane %v2374, 1
    %v2377 = vsel %vm388, %v2372, %v2376
    %v2378 = vshrl.u32 %v2342, 16
    %v2380 = vor.u32 %v2378, %v2376
    %v2382 = vshll.u32 %v2343, 16
    %v2384 = vrot.slane %v2382, 1
    %v2385 = vsel %vm388, %v2380, %v2384
    %v2386 = vshrl.u32 %v2343, 16
    %v2388 = vor.u32 %v2386, %v2384
    %v2390 = vshll.u32 %v2344, 16
    %v2392 = vrot.slane %v2390, 1
    %v2393 = vsel %vm388, %v2388, %v2392
    %v2394 = vshrl.u32 %v2344, 16
    %v2396 = vor.u32 %v2394, %v2392
    %v2398 = vshll.u32 %v2345, 16
    %v2400 = vrot.slane %v2398, 1
    %v2401 = vsel %vm388, %v2396, %v2400
    %v2402 = vshrl.u32 %v2345, 16
    %v2404 = vor.u32 %v2402, %v2400
    %v2406 = vshll.u32 %v2346, 16
    %v2408 = vrot.slane %v2406, 1
    %v2409 = vsel %vm388, %v2404, %v2408
    %v2410 = vshrl.u32 %v2346, 16
    %v2412 = vor.u32 %v2410, %v2408
    %v2414 = vshll.u32 %v2347, 16
    %v2416 = vrot.slane %v2414, 1
    %v2417 = vsel %vm388, %v2412, %v2416
    %v2418 = vshrl.u32 %v2347, 16
    %v2420 = vor.u32 %v2418, %v2416
    %v2422 = vshll.u32 %v2348, 16
    %v2424 = vrot.slane %v2422, 1
    %v2425 = vsel %vm388, %v2420, %v2424
    %v2426 = vshrl.u32 %v2348, 16
    %v2428 = vor.u32 %v2426, %v2424
    %v2430 = vshll.u32 %v2349, 16
    %v2432 = vrot.slane %v2430, 1
    %v2433 = vsel %vm388, %v2428, %v2432
    %2434 = vrot.lane.b32.xlu0 %v2361, 64
    %v2435 = vpop.permute.xlu0 %2434
    %2436 = vrot.lane.b32.xlu0 %v2369, 64
    %v2437 = vpop.permute.xlu0 %2436
    %2438 = vrot.lane.b32.xlu0 %v2377, 64
    %v2439 = vpop.permute.xlu0 %2438
    %2440 = vrot.lane.b32.xlu0 %v2385, 64
    %v2441 = vpop.permute.xlu0 %2440
    %2442 = vrot.lane.b32.xlu0 %v2393, 64
    %v2443 = vpop.permute.xlu0 %2442
    %2444 = vrot.lane.b32.xlu0 %v2401, 64
    %v2445 = vpop.permute.xlu0 %2444
    %2446 = vrot.lane.b32.xlu0 %v2409, 64
    %v2447 = vpop.permute.xlu0 %2446
    %2448 = vrot.lane.b32.xlu0 %v2417, 64
    %v2449 = vpop.permute.xlu0 %2448
    %2450 = vrot.lane.b32.xlu0 %v2425, 64
    %v2451 = vpop.permute.xlu0 %2450
    %2452 = vrot.lane.b32.xlu0 %v2433, 64
    %v2453 = vpop.permute.xlu0 %2452
    %2464 = vst.msk [vmem:[#allocation4 + $0x10] sm:$0xff] %vm366, %v2435
    %2465 = vst.msk [vmem:[#allocation4 + $0x38] sm:$0xff] %vm366, %v2437
    %2466 = vst.msk [vmem:[#allocation4 + $0x60] sm:$0xff] %vm366, %v2439
    %2467 = vst.msk [vmem:[#allocation4 + $0x88] sm:$0xff] %vm366, %v2441
    %2468 = vst.msk [vmem:[#allocation4 + $0xb0] sm:$0xff] %vm366, %v2443
    %2469 = vst.msk [vmem:[#allocation4 + $0xd8] sm:$0xff] %vm366, %v2445
    %2470 = vst.msk [vmem:[#allocation4 + $0x100] sm:$0xff] %vm366, %v2447
    %2471 = vst.msk [vmem:[#allocation4 + $0x128] sm:$0xff] %vm366, %v2449
    %2472 = vst.msk [vmem:[#allocation4 + $0x150] sm:$0xff] %vm366, %v2451
    %2473 = vst.msk [vmem:[#allocation4 + $0x178] sm:$0xff] %vm366, %v2453
    %v2474 = vld [vmem:[#allocation3 + $0x10] sm:$0x80]
    %v2475 = vld [vmem:[#allocation3 + $0x18] sm:$0xff]
    %v2476 = vld [vmem:[#allocation3 + $0x20] sm:$0xff]
    %v2477 = vld [vmem:[#allocation3 + $0x28] sm:$0xff]
    %v2478 = vld [vmem:[#allocation3 + $0x30] sm:$0xff]
    %v2479 = vld [vmem:[#allocation3 + $0x38] sm:$0xff]
    %v2480 = vld [vmem:[#allocation3 + $0x40] sm:$0xff]
    %v2481 = vld [vmem:[#allocation3 + $0x48] sm:$0xff]
    %v2482 = vld [vmem:[#allocation3 + $0x50] sm:$0xff]
    %v2483 = vld [vmem:[#allocation3 + $0x58] sm:$0xff]
    %v2484 = vld [vmem:[#allocation3 + $0x60] sm:$0xff]
    %v2486 = vshrl.u32 %v2474, 16
    %v2488 = vrot.slane %v2486, 7
    %v2490 = vshrl.u32 %v2475, 16
    %v2492 = vrot.slane %v2490, 7
    %v2493 = vshll.u32 %v2475, 16
    %v2495 = vor.u32 %v2492, %v2493
    %v2496 = vsel %vm211, %v2488, %v2495
    %v2498 = vshrl.u32 %v2476, 16
    %v2500 = vrot.slane %v2498, 7
    %v2501 = vshll.u32 %v2476, 16
    %v2503 = vor.u32 %v2500, %v2501
    %v2504 = vsel %vm211, %v2492, %v2503
    %v2506 = vshrl.u32 %v2477, 16
    %v2508 = vrot.slane %v2506, 7
    %v2509 = vshll.u32 %v2477, 16
    %v2511 = vor.u32 %v2508, %v2509
    %v2512 = vsel %vm211, %v2500, %v2511
    %v2514 = vshrl.u32 %v2478, 16
    %v2516 = vrot.slane %v2514, 7
    %v2517 = vshll.u32 %v2478, 16
    %v2519 = vor.u32 %v2516, %v2517
    %v2520 = vsel %vm211, %v2508, %v2519
    %v2522 = vshrl.u32 %v2479, 16
    %v2524 = vrot.slane %v2522, 7
    %v2525 = vshll.u32 %v2479, 16
    %v2527 = vor.u32 %v2524, %v2525
    %v2528 = vsel %vm211, %v2516, %v2527
    %v2530 = vshrl.u32 %v2480, 16
    %v2532 = vrot.slane %v2530, 7
    %v2533 = vshll.u32 %v2480, 16
    %v2535 = vor.u32 %v2532, %v2533
    %v2536 = vsel %vm211, %v2524, %v2535
    %v2538 = vshrl.u32 %v2481, 16
    %v2540 = vrot.slane %v2538, 7
    %v2541 = vshll.u32 %v2481, 16
    %v2543 = vor.u32 %v2540, %v2541
    %v2544 = vsel %vm211, %v2532, %v2543
    %v2546 = vshrl.u32 %v2482, 16
    %v2548 = vrot.slane %v2546, 7
    %v2549 = vshll.u32 %v2482, 16
    %v2551 = vor.u32 %v2548, %v2549
    %v2552 = vsel %vm211, %v2540, %v2551
    %v2554 = vshrl.u32 %v2483, 16
    %v2556 = vrot.slane %v2554, 7
    %v2557 = vshll.u32 %v2483, 16
    %v2559 = vor.u32 %v2556, %v2557
    %v2560 = vsel %vm211, %v2548, %v2559
    %v2562 = vshrl.u32 %v2484, 16
    %v2564 = vrot.slane %v2562, 7
    %v2565 = vshll.u32 %v2484, 16
    %v2567 = vor.u32 %v2564, %v2565
    %v2568 = vsel %vm211, %v2556, %v2567
    %2579 = vst.msk [vmem:[#allocation4 + $0x18] sm:$0xff] %vm18, %v2496
    %2580 = vst.msk [vmem:[#allocation4 + $0x40] sm:$0xff] %vm18, %v2504
    %2581 = vst.msk [vmem:[#allocation4 + $0x68] sm:$0xff] %vm18, %v2512
    %2582 = vst.msk [vmem:[#allocation4 + $0x90] sm:$0xff] %vm18, %v2520
    %2583 = vst.msk [vmem:[#allocation4 + $0xb8] sm:$0xff] %vm18, %v2528
    %2584 = vst.msk [vmem:[#allocation4 + $0xe0] sm:$0xff] %vm18, %v2536
    %2585 = vst.msk [vmem:[#allocation4 + $0x108] sm:$0xff] %vm18, %v2544
    %2586 = vst.msk [vmem:[#allocation4 + $0x130] sm:$0xff] %vm18, %v2552
    %2587 = vst.msk [vmem:[#allocation4 + $0x158] sm:$0xff] %vm18, %v2560
    %2588 = vst.msk [vmem:[#allocation4 + $0x180] sm:$0xff] %vm18, %v2568
    %v2589 = vld [vmem:[#allocation3 + $0x18] sm:$0xff]
    %v2590 = vld [vmem:[#allocation3 + $0x20] sm:$0xff]
    %v2591 = vld [vmem:[#allocation3 + $0x28] sm:$0xff]
    %v2592 = vld [vmem:[#allocation3 + $0x30] sm:$0xff]
    %v2593 = vld [vmem:[#allocation3 + $0x38] sm:$0xff]
    %v2594 = vld [vmem:[#allocation3 + $0x40] sm:$0xff]
    %v2595 = vld [vmem:[#allocation3 + $0x48] sm:$0xff]
    %v2596 = vld [vmem:[#allocation3 + $0x50] sm:$0xff]
    %v2597 = vld [vmem:[#allocation3 + $0x58] sm:$0xff]
    %v2598 = vld [vmem:[#allocation3 + $0x60] sm:$0xff]
    %2609 = vrot.lane.b32.xlu0 %v2589, 64
    %v2610 = vpop.permute.xlu0 %2609
    %2611 = vrot.lane.b32.xlu0 %v2590, 64
    %v2612 = vpop.permute.xlu0 %2611
    %2613 = vrot.lane.b32.xlu0 %v2591, 64
    %v2614 = vpop.permute.xlu0 %2613
    %2615 = vrot.lane.b32.xlu0 %v2592, 64
    %v2616 = vpop.permute.xlu0 %2615
    %2617 = vrot.lane.b32.xlu0 %v2593, 64
    %v2618 = vpop.permute.xlu0 %2617
    %2619 = vrot.lane.b32.xlu0 %v2594, 64
    %v2620 = vpop.permute.xlu0 %2619
    %2621 = vrot.lane.b32.xlu0 %v2595, 64
    %v2622 = vpop.permute.xlu0 %2621
    %2623 = vrot.lane.b32.xlu0 %v2596, 64
    %v2624 = vpop.permute.xlu0 %2623
    %2625 = vrot.lane.b32.xlu0 %v2597, 64
    %v2626 = vpop.permute.xlu0 %2625
    %2627 = vrot.lane.b32.xlu0 %v2598, 64
    %v2628 = vpop.permute.xlu0 %2627
    %2639 = vst.msk [vmem:[#allocation4 + $0x18] sm:$0xff] %vm366, %v2610
    %2640 = vst.msk [vmem:[#allocation4 + $0x40] sm:$0xff] %vm366, %v2612
    %2641 = vst.msk [vmem:[#allocation4 + $0x68] sm:$0xff] %vm366, %v2614
    %2642 = vst.msk [vmem:[#allocation4 + $0x90] sm:$0xff] %vm366, %v2616
    %2643 = vst.msk [vmem:[#allocation4 + $0xb8] sm:$0xff] %vm366, %v2618
    %2644 = vst.msk [vmem:[#allocation4 + $0xe0] sm:$0xff] %vm366, %v2620
    %2645 = vst.msk [vmem:[#allocation4 + $0x108] sm:$0xff] %vm366, %v2622
    %2646 = vst.msk [vmem:[#allocation4 + $0x130] sm:$0xff] %vm366, %v2624
    %2647 = vst.msk [vmem:[#allocation4 + $0x158] sm:$0xff] %vm366, %v2626
    %2648 = vst.msk [vmem:[#allocation4 + $0x180] sm:$0xff] %vm366, %v2628
    %v2649 = vld [vmem:[#allocation3 + $0x18] sm:$0xff]
    %v2650 = vld [vmem:[#allocation3 + $0x20] sm:$0xff]
    %v2651 = vld [vmem:[#allocation3 + $0x28] sm:$0xff]
    %v2652 = vld [vmem:[#allocation3 + $0x30] sm:$0xff]
    %v2653 = vld [vmem:[#allocation3 + $0x38] sm:$0xff]
    %v2654 = vld [vmem:[#allocation3 + $0x40] sm:$0xff]
    %v2655 = vld [vmem:[#allocation3 + $0x48] sm:$0xff]
    %v2656 = vld [vmem:[#allocation3 + $0x50] sm:$0xff]
    %v2657 = vld [vmem:[#allocation3 + $0x58] sm:$0xff]
    %v2658 = vld [vmem:[#allocation3 + $0x60] sm:$0xff]
    %v2659 = vld [vmem:[#allocation3 + $0x68] sm:$0x1]
    %v2661 = vshrl.u32 %v2649, 16
    %v2663 = vshll.u32 %v2649, 16
    %v2665 = vrot.slane %v2663, 1
    %v2666 = vor.u32 %v2661, %v2665
    %v2668 = vshll.u32 %v2650, 16
    %v2670 = vrot.slane %v2668, 1
    %v2671 = vsel %vm388, %v2666, %v2670
    %v2672 = vshrl.u32 %v2650, 16
    %v2674 = vor.u32 %v2672, %v2670
    %v2676 = vshll.u32 %v2651, 16
    %v2678 = vrot.slane %v2676, 1
    %v2679 = vsel %vm388, %v2674, %v2678
    %v2680 = vshrl.u32 %v2651, 16
    %v2682 = vor.u32 %v2680, %v2678
    %v2684 = vshll.u32 %v2652, 16
    %v2686 = vrot.slane %v2684, 1
    %v2687 = vsel %vm388, %v2682, %v2686
    %v2688 = vshrl.u32 %v2652, 16
    %v2690 = vor.u32 %v2688, %v2686
    %v2692 = vshll.u32 %v2653, 16
    %v2694 = vrot.slane %v2692, 1
    %v2695 = vsel %vm388, %v2690, %v2694
    %v2696 = vshrl.u32 %v2653, 16
    %v2698 = vor.u32 %v2696, %v2694
    %v2700 = vshll.u32 %v2654, 16
    %v2702 = vrot.slane %v2700, 1
    %v2703 = vsel %vm388, %v2698, %v2702
    %v2704 = vshrl.u32 %v2654, 16
    %v2706 = vor.u32 %v2704, %v2702
    %v2708 = vshll.u32 %v2655, 16
    %v2710 = vrot.slane %v2708, 1
    %v2711 = vsel %vm388, %v2706, %v2710
    %v2712 = vshrl.u32 %v2655, 16
    %v2714 = vor.u32 %v2712, %v2710
    %v2716 = vshll.u32 %v2656, 16
    %v2718 = vrot.slane %v2716, 1
    %v2719 = vsel %vm388, %v2714, %v2718
    %v2720 = vshrl.u32 %v2656, 16
    %v2722 = vor.u32 %v2720, %v2718
    %v2724 = vshll.u32 %v2657, 16
    %v2726 = vrot.slane %v2724, 1
    %v2727 = vsel %vm388, %v2722, %v2726
    %v2728 = vshrl.u32 %v2657, 16
    %v2730 = vor.u32 %v2728, %v2726
    %v2732 = vshll.u32 %v2658, 16
    %v2734 = vrot.slane %v2732, 1
    %v2735 = vsel %vm388, %v2730, %v2734
    %v2736 = vshrl.u32 %v2658, 16
    %v2738 = vor.u32 %v2736, %v2734
    %v2740 = vshll.u32 %v2659, 16
    %v2742 = vrot.slane %v2740, 1
    %v2743 = vsel %vm388, %v2738, %v2742
    %2754 = vst.msk [vmem:[#allocation4 + $0x20] sm:$0xff] %vm18, %v2671
    %2755 = vst.msk [vmem:[#allocation4 + $0x48] sm:$0xff] %vm18, %v2679
    %2756 = vst.msk [vmem:[#allocation4 + $0x70] sm:$0xff] %vm18, %v2687
    %2757 = vst.msk [vmem:[#allocation4 + $0x98] sm:$0xff] %vm18, %v2695
    %2758 = vst.msk [vmem:[#allocation4 + $0xc0] sm:$0xff] %vm18, %v2703
    %2759 = vst.msk [vmem:[#allocation4 + $0xe8] sm:$0xff] %vm18, %v2711
    %2760 = vst.msk [vmem:[#allocation4 + $0x110] sm:$0xff] %vm18, %v2719
    %2761 = vst.msk [vmem:[#allocation4 + $0x138] sm:$0xff] %vm18, %v2727
    %2762 = vst.msk [vmem:[#allocation4 + $0x160] sm:$0xff] %vm18, %v2735
    %2763 = vst.msk [vmem:[#allocation4 + $0x188] sm:$0xff] %vm18, %v2743
    %v2764 = vld [vmem:[#allocation4] sm:$0xff]
    %v2765 = vld [vmem:[#allocation4 + $0x8] sm:$0xff]
    %v2766 = vld [vmem:[#allocation4 + $0x10] sm:$0xff]
    %v2767 = vld [vmem:[#allocation4 + $0x18] sm:$0xff]
    %v2768 = vld [vmem:[#allocation4 + $0x20] sm:$0xff]
    %v2769 = vld [vmem:[#allocation4 + $0x28] sm:$0xff]
    %v2770 = vld [vmem:[#allocation4 + $0x30] sm:$0xff]
    %v2771 = vld [vmem:[#allocation4 + $0x38] sm:$0xff]
    %v2772 = vld [vmem:[#allocation4 + $0x40] sm:$0xff]
    %v2773 = vld [vmem:[#allocation4 + $0x48] sm:$0xff]
    %v2774 = vld [vmem:[#allocation4 + $0x50] sm:$0xff]
    %v2775 = vld [vmem:[#allocation4 + $0x58] sm:$0xff]
    %v2776 = vld [vmem:[#allocation4 + $0x60] sm:$0xff]
    %v2777 = vld [vmem:[#allocation4 + $0x68] sm:$0xff]
    %v2778 = vld [vmem:[#allocation4 + $0x70] sm:$0xff]
    %v2779 = vld [vmem:[#allocation4 + $0x78] sm:$0xff]
    %v2780 = vld [vmem:[#allocation4 + $0x80] sm:$0xff]
    %v2781 = vld [vmem:[#allocation4 + $0x88] sm:$0xff]
    %v2782 = vld [vmem:[#allocation4 + $0x90] sm:$0xff]
    %v2783 = vld [vmem:[#allocation4 + $0x98] sm:$0xff]
    %v2784 = vld [vmem:[#allocation4 + $0xa0] sm:$0xff]
    %v2785 = vld [vmem:[#allocation4 + $0xa8] sm:$0xff]
    %v2786 = vld [vmem:[#allocation4 + $0xb0] sm:$0xff]
    %v2787 = vld [vmem:[#allocation4 + $0xb8] sm:$0xff]
    %v2788 = vld [vmem:[#allocation4 + $0xc0] sm:$0xff]
    %v2789 = vld [vmem:[#allocation4 + $0xc8] sm:$0xff]
    %v2790 = vld [vmem:[#allocation4 + $0xd0] sm:$0xff]
    %v2791 = vld [vmem:[#allocation4 + $0xd8] sm:$0xff]
    %v2792 = vld [vmem:[#allocation4 + $0xe0] sm:$0xff]
    %v2793 = vld [vmem:[#allocation4 + $0xe8] sm:$0xff]
    %v2794 = vld [vmem:[#allocation4 + $0xf0] sm:$0xff]
    %v2795 = vld [vmem:[#allocation4 + $0xf8] sm:$0xff]
    %v2796 = vld [vmem:[#allocation4 + $0x100] sm:$0xff]
    %v2797 = vld [vmem:[#allocation4 + $0x108] sm:$0xff]
    %v2798 = vld [vmem:[#allocation4 + $0x110] sm:$0xff]
    %v2799 = vld [vmem:[#allocation4 + $0x118] sm:$0xff]
    %v2800 = vld [vmem:[#allocation4 + $0x120] sm:$0xff]
    %v2801 = vld [vmem:[#allocation4 + $0x128] sm:$0xff]
    %v2802 = vld [vmem:[#allocation4 + $0x130] sm:$0xff]
    %v2803 = vld [vmem:[#allocation4 + $0x138] sm:$0xff]
    %v2804 = vld [vmem:[#allocation4 + $0x140] sm:$0xff]
    %v2805 = vld [vmem:[#allocation4 + $0x148] sm:$0xff]
    %v2806 = vld [vmem:[#allocation4 + $0x150] sm:$0xff]
    %v2807 = vld [vmem:[#allocation4 + $0x158] sm:$0xff]
    %v2808 = vld [vmem:[#allocation4 + $0x160] sm:$0xff]
    %v2809 = vld [vmem:[#allocation4 + $0x168] sm:$0xff]
    %v2810 = vld [vmem:[#allocation4 + $0x170] sm:$0xff]
    %v2811 = vld [vmem:[#allocation4 + $0x178] sm:$0xff]
    %v2812 = vld [vmem:[#allocation4 + $0x180] sm:$0xff]
    %v2813 = vld [vmem:[#allocation4 + $0x188] sm:$0xff]
    %v2815 = vsel %vm18, %v2768, 0
    %v2818 = vsel %vm18, %v2773, 0
    %v2821 = vsel %vm18, %v2778, 0
    %v2824 = vsel %vm18, %v2783, 0
    %v2827 = vsel %vm18, %v2788, 0
    %v2830 = vsel %vm18, %v2793, 0
    %v2833 = vsel %vm18, %v2798, 0
    %v2836 = vsel %vm18, %v2803, 0
    %v2839 = vsel %vm18, %v2808, 0
    %v2842 = vsel %vm18, %v2813, 0
    %2844 = vmatprep.subr.bf16.mxu0 0
    %2845 = vmatpush1.bf16.msra.mxu0 %v1273
    %2846 = vmatprep.subr.bf16.mxu0 0
    %2847 = vmatpush1.bf16.msra.mxu0 %v1274
    %2848 = vmatprep.subr.bf16.mxu0 0
    %2849 = vmatpush1.bf16.msra.mxu0 %v1275
    %2850 = vmatprep.subr.bf16.mxu0 0
    %2851 = vmatpush1.bf16.msra.mxu0 %v1276
    %2852 = vmatprep.subr.bf16.mxu0 0
    %2853 = vmatpush1.bf16.msra.mxu0 %v1277
    %2854 = vmatprep.subr.bf16.mxu0 0
    %2855 = vmatpush1.bf16.msra.mxu0 %v1278
    %2856 = vmatprep.subr.bf16.mxu0 0
    %2857 = vmatpush1.bf16.msra.mxu0 %v1279
    %2858 = vmatprep.subr.bf16.mxu0 0
    %2859 = vmatpush1.bf16.msra.mxu0 %v1280
    %2860 = vmatprep.subr.bf16.mxu0 0
    %2861 = vmatpush1.bf16.msra.mxu0 %v1281
    %2862 = vmatprep.subr.bf16.mxu0 0
    %2863 = vmatpush1.bf16.msra.mxu0 %v1282
    %2864 = vmatprep.subr.bf16.mxu0 0
    %2865 = vmatpush1.bf16.msra.mxu0 %v1283
    %2866 = vmatprep.subr.bf16.mxu0 0
    %2867 = vmatpush1.bf16.msra.mxu0 %v1284
    %2868 = vmatprep.subr.bf16.mxu0 0
    %2869 = vmatpush1.bf16.msra.mxu0 %v1285
    %2870 = vmatprep.subr.bf16.mxu0 0
    %2871 = vmatpush1.bf16.msra.mxu0 %v1286
    %2872 = vmatprep.subr.bf16.mxu0 0
    %2873 = vmatpush1.bf16.msra.mxu0 %v1287
    %2874 = vmatprep.subr.bf16.mxu0 0
    %2875 = vmatpush1.bf16.msra.mxu0 %v1288
    %2876 = vmatprep.mubr.bf16.mxu0 %v2765
    %2877 = vmatmul.mubr.bf16.gmra.mrb[0].mxu0 %v2764
    %v2878 = vpop.f32.mrb[0].mxu0
    %v2879 = vadd.f32 %v1127, %v2878
    %v2880 = vpop.f32.mrb[0].mxu0
    %v2881 = vpop.f32.mrb[0].mxu0
    %v2882 = vadd.f32 %v1127, %v2881
    %v2883 = vpop.f32.mrb[0].mxu0
    %2884 = vmatprep.mubr.bf16.mxu0 %v2770
    %2885 = vmatmul.mubr.bf16.gmra.mrb[0].mxu0 %v2769
    %v2886 = vpop.f32.mrb[0].mxu0
    %v2887 = vadd.f32 %v1127, %v2886
    %v2888 = vpop.f32.mrb[0].mxu0
    %v2889 = vpop.f32.mrb[0].mxu0
    %v2890 = vadd.f32 %v1127, %v2889
    %v2891 = vpop.f32.mrb[0].mxu0
    %2892 = vmatprep.mubr.bf16.mxu0 %v2775
    %2893 = vmatmul.mubr.bf16.gmra.mrb[0].mxu0 %v2774
    %v2894 = vpop.f32.mrb[0].mxu0
    %v2895 = vadd.f32 %v1127, %v2894
    %v2896 = vpop.f32.mrb[0].mxu0
    %v2897 = vpop.f32.mrb[0].mxu0
    %v2898 = vadd.f32 %v1127, %v2897
    %v2899 = vpop.f32.mrb[0].mxu0
    %2900 = vmatprep.mubr.bf16.mxu0 %v2780
    %2901 = vmatmul.mubr.bf16.gmra.mrb[0].mxu0 %v2779
    %v2902 = vpop.f32.mrb[0].mxu0
    %v2903 = vadd.f32 %v1127, %v2902
    %v2904 = vpop.f32.mrb[0].mxu0
    %v2905 = vpop.f32.mrb[0].mxu0
    %v2906 = vadd.f32 %v1127, %v2905
    %v2907 = vpop.f32.mrb[0].mxu0
    %2908 = vmatprep.mubr.bf16.mxu0 %v2785
    %2909 = vmatmul.mubr.bf16.gmra.mrb[0].mxu0 %v2784
    %v2910 = vpop.f32.mrb[0].mxu0
    %v2911 = vadd.f32 %v1127, %v2910
    %v2912 = vpop.f32.mrb[0].mxu0
    %v2913 = vpop.f32.mrb[0].mxu0
    %v2914 = vadd.f32 %v1127, %v2913
    %v2915 = vpop.f32.mrb[0].mxu0
    %2916 = vmatprep.mubr.bf16.mxu0 %v2790
    %2917 = vmatmul.mubr.bf16.gmra.mrb[0].mxu0 %v2789
    %v2918 = vpop.f32.mrb[0].mxu0
    %v2919 = vadd.f32 %v1127, %v2918
    %v2920 = vpop.f32.mrb[0].mxu0
    %v2921 = vpop.f32.mrb[0].mxu0
    %v2922 = vadd.f32 %v1127, %v2921
    %v2923 = vpop.f32.mrb[0].mxu0
    %2924 = vmatprep.mubr.bf16.mxu0 %v2795
    %2925 = vmatmul.mubr.bf16.gmra.mrb[0].mxu0 %v2794
    %v2926 = vpop.f32.mrb[0].mxu0
    %v2927 = vadd.f32 %v1127, %v2926
    %v2928 = vpop.f32.mrb[0].mxu0
    %v2929 = vpop.f32.mrb[0].mxu0
    %v2930 = vadd.f32 %v1127, %v2929
    %v2931 = vpop.f32.mrb[0].mxu0
    %2932 = vmatprep.mubr.bf16.mxu0 %v2800
    %2933 = vmatmul.mubr.bf16.gmra.mrb[0].mxu0 %v2799
    %v2934 = vpop.f32.mrb[0].mxu0
    %v2935 = vadd.f32 %v1127, %v2934
    %v2936 = vpop.f32.mrb[0].mxu0
    %v2937 = vpop.f32.mrb[0].mxu0
    %v2938 = vadd.f32 %v1127, %v2937
    %v2939 = vpop.f32.mrb[0].mxu0
    %2940 = vmatprep.mubr.bf16.mxu0 %v2805
    %2941 = vmatmul.mubr.bf16.gmra.mrb[0].mxu0 %v2804
    %v2942 = vpop.f32.mrb[0].mxu0
    %v2943 = vadd.f32 %v1127, %v2942
    %v2944 = vpop.f32.mrb[0].mxu0
    %v2945 = vpop.f32.mrb[0].mxu0
    %v2946 = vadd.f32 %v1127, %v2945
    %v2947 = vpop.f32.mrb[0].mxu0
    %2948 = vmatprep.mubr.bf16.mxu0 %v2810
    %2949 = vmatmul.mubr.bf16.gmra.mrb[0].mxu0 %v2809
    %v2950 = vpop.f32.mrb[0].mxu0
    %v2951 = vadd.f32 %v1127, %v2950
    %v2952 = vpop.f32.mrb[0].mxu0
    %v2953 = vpop.f32.mrb[0].mxu0
    %v2954 = vadd.f32 %v1127, %v2953
    %v2955 = vpop.f32.mrb[0].mxu0
    %2956 = vdwg.mxu0
    %2957 = vmatprep.subr.bf16.mxu0 0
    %2958 = vmatpush1.bf16.msra.mxu0 %v1289
    %2959 = vmatprep.subr.bf16.mxu0 0
    %2960 = vmatpush1.bf16.msra.mxu0 %v1290
    %2961 = vmatprep.subr.bf16.mxu0 0
    %2962 = vmatpush1.bf16.msra.mxu0 %v1291
    %2963 = vmatprep.subr.bf16.mxu0 0
    %2964 = vmatpush1.bf16.msra.mxu0 %v1292
    %2965 = vmatprep.subr.bf16.mxu0 0
    %2966 = vmatpush1.bf16.msra.mxu0 %v1293
    %2967 = vmatprep.subr.bf16.mxu0 0
    %2968 = vmatpush1.bf16.msra.mxu0 %v1294
    %2969 = vmatprep.subr.bf16.mxu0 0
    %2970 = vmatpush1.bf16.msra.mxu0 %v1295
    %2971 = vmatprep.subr.bf16.mxu0 0
    %2972 = vmatpush1.bf16.msra.mxu0 %v1296
    %2973 = vmatprep.subr.bf16.mxu0 0
    %2974 = vmatpush1.bf16.msra.mxu0 %v1297
    %2975 = vmatprep.subr.bf16.mxu0 0
    %2976 = vmatpush1.bf16.msra.mxu0 %v1298
    %2977 = vmatprep.subr.bf16.mxu0 0
    %2978 = vmatpush1.bf16.msra.mxu0 %v1299
    %2979 = vmatprep.subr.bf16.mxu0 0
    %2980 = vmatpush1.bf16.msra.mxu0 %v1300
    %2981 = vmatprep.subr.bf16.mxu0 0
    %2982 = vmatpush1.bf16.msra.mxu0 %v1301
    %2983 = vmatprep.subr.bf16.mxu0 0
    %2984 = vmatpush1.bf16.msra.mxu0 %v1302
    %2985 = vmatprep.subr.bf16.mxu0 0
    %2986 = vmatpush1.bf16.msra.mxu0 %v1303
    %2987 = vmatprep.subr.bf16.mxu0 0
    %2988 = vmatpush1.bf16.msra.mxu0 %v1304
    %2989 = vmatprep.mubr.bf16.mxu0 %v2767
    %2990 = vmatmul.mubr.bf16.gmra.mrb[0].mxu0 %v2766
    %v2991 = vpop.f32.mrb[0].mxu0
    %v2992 = vadd.f32 %v2879, %v2991
    %v2993 = vpop.f32.mrb[0].mxu0
    %v2994 = vpop.f32.mrb[0].mxu0
    %v2995 = vadd.f32 %v2882, %v2994
    %v2996 = vpop.f32.mrb[0].mxu0
    %2997 = vmatprep.mubr.bf16.mxu0 %v2772
    %2998 = vmatmul.mubr.bf16.gmra.mrb[0].mxu0 %v2771
    %v2999 = vpop.f32.mrb[0].mxu0
    %v3000 = vadd.f32 %v2887, %v2999
    %v3001 = vpop.f32.mrb[0].mxu0
    %v3002 = vpop.f32.mrb[0].mxu0
    %v3003 = vadd.f32 %v2890, %v3002
    %v3004 = vpop.f32.mrb[0].mxu0
    %3005 = vmatprep.mubr.bf16.mxu0 %v2777
    %3006 = vmatmul.mubr.bf16.gmra.mrb[0].mxu0 %v2776
    %v3007 = vpop.f32.mrb[0].mxu0
    %v3008 = vadd.f32 %v2895, %v3007
    %v3009 = vpop.f32.mrb[0].mxu0
    %v3010 = vpop.f32.mrb[0].mxu0
    %v3011 = vadd.f32 %v2898, %v3010
    %v3012 = vpop.f32.mrb[0].mxu0
    %3013 = vmatprep.mubr.bf16.mxu0 %v2782
    %3014 = vmatmul.mubr.bf16.gmra.mrb[0].mxu0 %v2781
    %v3015 = vpop.f32.mrb[0].mxu0
    %v3016 = vadd.f32 %v2903, %v3015
    %v3017 = vpop.f32.mrb[0].mxu0
    %v3018 = vpop.f32.mrb[0].mxu0
    %v3019 = vadd.f32 %v2906, %v3018
    %v3020 = vpop.f32.mrb[0].mxu0
    %3021 = vmatprep.mubr.bf16.mxu0 %v2787
    %3022 = vmatmul.mubr.bf16.gmra.mrb[0].mxu0 %v2786
    %v3023 = vpop.f32.mrb[0].mxu0
    %v3024 = vadd.f32 %v2911, %v3023
    %v3025 = vpop.f32.mrb[0].mxu0
    %v3026 = vpop.f32.mrb[0].mxu0
    %v3027 = vadd.f32 %v2914, %v3026
    %v3028 = vpop.f32.mrb[0].mxu0
    %3029 = vmatprep.mubr.bf16.mxu0 %v2792
    %3030 = vmatmul.mubr.bf16.gmra.mrb[0].mxu0 %v2791
    %v3031 = vpop.f32.mrb[0].mxu0
    %v3032 = vadd.f32 %v2919, %v3031
    %v3033 = vpop.f32.mrb[0].mxu0
    %v3034 = vpop.f32.mrb[0].mxu0
    %v3035 = vadd.f32 %v2922, %v3034
    %v3036 = vpop.f32.mrb[0].mxu0
    %3037 = vmatprep.mubr.bf16.mxu0 %v2797
    %3038 = vmatmul.mubr.bf16.gmra.mrb[0].mxu0 %v2796
    %v3039 = vpop.f32.mrb[0].mxu0
    %v3040 = vadd.f32 %v2927, %v3039
    %v3041 = vpop.f32.mrb[0].mxu0
    %v3042 = vpop.f32.mrb[0].mxu0
    %v3043 = vadd.f32 %v2930, %v3042
    %v3044 = vpop.f32.mrb[0].mxu0
    %3045 = vmatprep.mubr.bf16.mxu0 %v2802
    %3046 = vmatmul.mubr.bf16.gmra.mrb[0].mxu0 %v2801
    %v3047 = vpop.f32.mrb[0].mxu0
    %v3048 = vadd.f32 %v2935, %v3047
    %v3049 = vpop.f32.mrb[0].mxu0
    %v3050 = vpop.f32.mrb[0].mxu0
    %v3051 = vadd.f32 %v2938, %v3050
    %v3052 = vpop.f32.mrb[0].mxu0
    %3053 = vmatprep.mubr.bf16.mxu0 %v2807
    %3054 = vmatmul.mubr.bf16.gmra.mrb[0].mxu0 %v2806
    %v3055 = vpop.f32.mrb[0].mxu0
    %v3056 = vadd.f32 %v2943, %v3055
    %v3057 = vpop.f32.mrb[0].mxu0
    %v3058 = vpop.f32.mrb[0].mxu0
    %v3059 = vadd.f32 %v2946, %v3058
    %v3060 = vpop.f32.mrb[0].mxu0
    %3061 = vmatprep.mubr.bf16.mxu0 %v2812
    %3062 = vmatmul.mubr.bf16.gmra.mrb[0].mxu0 %v2811
    %v3063 = vpop.f32.mrb[0].mxu0
    %v3064 = vadd.f32 %v2951, %v3063
    %v3065 = vpop.f32.mrb[0].mxu0
    %v3066 = vpop.f32.mrb[0].mxu0
    %v3067 = vadd.f32 %v2954, %v3066
    %v3068 = vpop.f32.mrb[0].mxu0
    %3069 = vdwg.mxu0
    %3070 = vmatprep.subr.bf16.mxu0 0
    %3071 = vmatpush1.bf16.msra.mxu0 %v1305
    %3072 = vmatprep.subr.bf16.mxu0 0
    %3073 = vmatpush1.bf16.msra.mxu0 %v1306
    %3074 = vmatprep.subr.bf16.mxu0 0
    %3075 = vmatpush1.bf16.msra.mxu0 %v1307
    %3076 = vmatprep.subr.bf16.mxu0 0
    %3077 = vmatpush1.bf16.msra.mxu0 %v1308
    %3078 = vmatprep.subr.bf16.mxu0 0
    %3079 = vmatpush1.bf16.msra.mxu0 0
    %3080 = vmatprep.subr.bf16.mxu0 0
    %3081 = vmatpush1.bf16.msra.mxu0 0
    %3082 = vmatprep.subr.bf16.mxu0 0
    %3083 = vmatpush1.bf16.msra.mxu0 0
    %3084 = vmatprep.subr.bf16.mxu0 0
    %3085 = vmatpush1.bf16.msra.mxu0 0
    %3086 = vmatprep.subr.bf16.mxu0 0
    %3087 = vmatpush1.bf16.msra.mxu0 0
    %3088 = vmatprep.subr.bf16.mxu0 0
    %3089 = vmatpush1.bf16.msra.mxu0 0
    %3090 = vmatprep.subr.bf16.mxu0 0
    %3091 = vmatpush1.bf16.msra.mxu0 0
    %3092 = vmatprep.subr.bf16.mxu0 0
    %3093 = vmatpush1.bf16.msra.mxu0 0
    %3094 = vmatprep.subr.bf16.mxu0 0
    %3095 = vmatpush1.bf16.msra.mxu0 0
    %3096 = vmatprep.subr.bf16.mxu0 0
    %3097 = vmatpush1.bf16.msra.mxu0 0
    %3098 = vmatprep.subr.bf16.mxu0 0
    %3099 = vmatpush1.bf16.msra.mxu0 0
    %3100 = vmatprep.subr.bf16.mxu0 0
    %3101 = vmatpush1.bf16.msra.mxu0 0
    %3102 = vmatprep.mubr.bf16.mxu0 0
    %3103 = vmatmul.mubr.bf16.gmra.mrb[0].mxu0 %v2815
    %v3104 = vpop.f32.mrb[0].mxu0
    %v3105 = vadd.f32 %v2992, %v3104
    %v3106 = vpop.f32.mrb[0].mxu0
    %v3107 = vpop.f32.mrb[0].mxu0
    %v3108 = vadd.f32 %v2995, %v3107
    %v3109 = vpop.f32.mrb[0].mxu0
    %3110 = vmatprep.mubr.bf16.mxu0 0
    %3111 = vmatmul.mubr.bf16.gmra.mrb[0].mxu0 %v2818
    %v3112 = vpop.f32.mrb[0].mxu0
    %v3113 = vadd.f32 %v3000, %v3112
    %v3114 = vpop.f32.mrb[0].mxu0
    %v3115 = vpop.f32.mrb[0].mxu0
    %v3116 = vadd.f32 %v3003, %v3115
    %v3117 = vpop.f32.mrb[0].mxu0
    %3118 = vmatprep.mubr.bf16.mxu0 0
    %3119 = vmatmul.mubr.bf16.gmra.mrb[0].mxu0 %v2821
    %v3120 = vpop.f32.mrb[0].mxu0
    %v3121 = vadd.f32 %v3008, %v3120
    %v3122 = vpop.f32.mrb[0].mxu0
    %v3123 = vpop.f32.mrb[0].mxu0
    %v3124 = vadd.f32 %v3011, %v3123
    %v3125 = vpop.f32.mrb[0].mxu0
    %3126 = vmatprep.mubr.bf16.mxu0 0
    %3127 = vmatmul.mubr.bf16.gmra.mrb[0].mxu0 %v2824
    %v3128 = vpop.f32.mrb[0].mxu0
    %v3129 = vadd.f32 %v3016, %v3128
    %v3130 = vpop.f32.mrb[0].mxu0
    %v3131 = vpop.f32.mrb[0].mxu0
    %v3132 = vadd.f32 %v3019, %v3131
    %v3133 = vpop.f32.mrb[0].mxu0
    %3134 = vmatprep.mubr.bf16.mxu0 0
    %3135 = vmatmul.mubr.bf16.gmra.mrb[0].mxu0 %v2827
    %v3136 = vpop.f32.mrb[0].mxu0
    %v3137 = vadd.f32 %v3024, %v3136
    %v3138 = vpop.f32.mrb[0].mxu0
    %v3139 = vpop.f32.mrb[0].mxu0
    %v3140 = vadd.f32 %v3027, %v3139
    %v3141 = vpop.f32.mrb[0].mxu0
    %3142 = vmatprep.mubr.bf16.mxu0 0
    %3143 = vmatmul.mubr.bf16.gmra.mrb[0].mxu0 %v2830
    %v3144 = vpop.f32.mrb[0].mxu0
    %v3145 = vadd.f32 %v3032, %v3144
    %v3146 = vpop.f32.mrb[0].mxu0
    %v3147 = vpop.f32.mrb[0].mxu0
    %v3148 = vadd.f32 %v3035, %v3147
    %v3149 = vpop.f32.mrb[0].mxu0
    %3150 = vmatprep.mubr.bf16.mxu0 0
    %3151 = vmatmul.mubr.bf16.gmra.mrb[0].mxu0 %v2833
    %v3152 = vpop.f32.mrb[0].mxu0
    %v3153 = vadd.f32 %v3040, %v3152
    %v3154 = vpop.f32.mrb[0].mxu0
    %v3155 = vpop.f32.mrb[0].mxu0
    %v3156 = vadd.f32 %v3043, %v3155
    %v3157 = vpop.f32.mrb[0].mxu0
    %3158 = vmatprep.mubr.bf16.mxu0 0
    %3159 = vmatmul.mubr.bf16.gmra.mrb[0].mxu0 %v2836
    %v3160 = vpop.f32.mrb[0].mxu0
    %v3161 = vadd.f32 %v3048, %v3160
    %v3162 = vpop.f32.mrb[0].mxu0
    %v3163 = vpop.f32.mrb[0].mxu0
    %v3164 = vadd.f32 %v3051, %v3163
    %v3165 = vpop.f32.mrb[0].mxu0
    %3166 = vmatprep.mubr.bf16.mxu0 0
    %3167 = vmatmul.mubr.bf16.gmra.mrb[0].mxu0 %v2839
    %v3168 = vpop.f32.mrb[0].mxu0
    %v3169 = vadd.f32 %v3056, %v3168
    %v3170 = vpop.f32.mrb[0].mxu0
    %v3171 = vpop.f32.mrb[0].mxu0
    %v3172 = vadd.f32 %v3059, %v3171
    %v3173 = vpop.f32.mrb[0].mxu0
    %3174 = vmatprep.mubr.bf16.mxu0 0
    %3175 = vmatmul.mubr.bf16.gmra.mrb[0].mxu0 %v2842
    %v3176 = vpop.f32.mrb[0].mxu0
    %v3177 = vadd.f32 %v3064, %v3176
    %v3178 = vpop.f32.mrb[0].mxu0
    %v3179 = vpop.f32.mrb[0].mxu0
    %v3180 = vadd.f32 %v3067, %v3179
    %v3181 = vpop.f32.mrb[0].mxu0
    %3182 = vdwg.mxu0
    %v3183 = vmax.f32 %v3105, 0.0
    %v3184 = vmax.f32 %v3108, 0.0
    %v3185 = vmax.f32 %v3113, 0.0
    %v3186 = vmax.f32 %v3116, 0.0
    %v3187 = vmax.f32 %v3121, 0.0
    %v3188 = vmax.f32 %v3124, 0.0
    %v3189 = vmax.f32 %v3129, 0.0
    %v3190 = vmax.f32 %v3132, 0.0
    %v3191 = vmax.f32 %v3137, 0.0
    %v3192 = vmax.f32 %v3140, 0.0
    %v3193 = vmax.f32 %v3145, 0.0
    %v3194 = vmax.f32 %v3148, 0.0
    %v3195 = vmax.f32 %v3153, 0.0
    %v3196 = vmax.f32 %v3156, 0.0
    %v3197 = vmax.f32 %v3161, 0.0
    %v3198 = vmax.f32 %v3164, 0.0
    %v3199 = vmax.f32 %v3169, 0.0
    %v3200 = vmax.f32 %v3172, 0.0
    %v3201 = vmax.f32 %v3177, 0.0
    %v3202 = vmax.f32 %v3180, 0.0
    %v3203 = vld [vmem:[%s3] sm:$0xff]
    %v3204 = vld [vmem:[%s3 + $0x8] sm:$0xff]
    %v3205 = vld [vmem:[%s3 + $0x10] sm:$0xff]
    %v3206 = vld [vmem:[%s3 + $0x18] sm:$0xff]
    %v3207 = vld [vmem:[%s3 + $0x20] sm:$0xff]
    %v3208 = vld [vmem:[%s3 + $0x28] sm:$0xff]
    %v3209 = vld [vmem:[%s3 + $0x30] sm:$0xff]
    %v3210 = vld [vmem:[%s3 + $0x38] sm:$0xff]
    %v3211 = vld [vmem:[%s3 + $0x40] sm:$0xff]
    %v3212 = vld [vmem:[%s3 + $0x48] sm:$0xff]
    %v3213 = vld [vmem:[%s3 + $0x50] sm:$0xff]
    %v3214 = vld [vmem:[%s3 + $0x58] sm:$0xff]
    %v3215 = vld [vmem:[%s3 + $0x60] sm:$0xff]
    %v3216 = vld [vmem:[%s3 + $0x68] sm:$0xff]
    %v3217 = vld [vmem:[%s3 + $0x70] sm:$0xff]
    %v3218 = vld [vmem:[%s3 + $0x78] sm:$0xff]
    %v3219 = vld [vmem:[%s3 + $0x80] sm:$0xff]
    %v3220 = vld [vmem:[%s3 + $0x88] sm:$0xff]
    %v3221 = vld [vmem:[%s3 + $0x90] sm:$0xff]
    %v3222 = vld [vmem:[%s3 + $0x98] sm:$0xff]
    %3224 = vset.pattern.permute.xlu0 0
    %3225 = vperm.xlu0 %3224, %v3203
    %v3226 = vpop.permute.xlu0 %3225
    %3229 = vset.pattern.permute.xlu0 0
    %3230 = vperm.xlu0 %3229, %v3204
    %v3231 = vpop.permute.xlu0 %3230
    %3234 = vset.pattern.permute.xlu0 0
    %3235 = vperm.xlu0 %3234, %v3205
    %v3236 = vpop.permute.xlu0 %3235
    %3239 = vset.pattern.permute.xlu0 0
    %3240 = vperm.xlu0 %3239, %v3206
    %v3241 = vpop.permute.xlu0 %3240
    %3244 = vset.pattern.permute.xlu0 0
    %3245 = vperm.xlu0 %3244, %v3207
    %v3246 = vpop.permute.xlu0 %3245
    %3249 = vset.pattern.permute.xlu0 0
    %3250 = vperm.xlu0 %3249, %v3208
    %v3251 = vpop.permute.xlu0 %3250
    %3254 = vset.pattern.permute.xlu0 0
    %3255 = vperm.xlu0 %3254, %v3209
    %v3256 = vpop.permute.xlu0 %3255
    %3259 = vset.pattern.permute.xlu0 0
    %3260 = vperm.xlu0 %3259, %v3210
    %v3261 = vpop.permute.xlu0 %3260
    %3264 = vset.pattern.permute.xlu0 0
    %3265 = vperm.xlu0 %3264, %v3211
    %v3266 = vpop.permute.xlu0 %3265
    %3269 = vset.pattern.permute.xlu0 0
    %3270 = vperm.xlu0 %3269, %v3212
    %v3271 = vpop.permute.xlu0 %3270
    %3274 = vset.pattern.permute.xlu0 0
    %3275 = vperm.xlu0 %3274, %v3213
    %v3276 = vpop.permute.xlu0 %3275
    %3279 = vset.pattern.permute.xlu0 0
    %3280 = vperm.xlu0 %3279, %v3214
    %v3281 = vpop.permute.xlu0 %3280
    %3284 = vset.pattern.permute.xlu0 0
    %3285 = vperm.xlu0 %3284, %v3215
    %v3286 = vpop.permute.xlu0 %3285
    %3289 = vset.pattern.permute.xlu0 0
    %3290 = vperm.xlu0 %3289, %v3216
    %v3291 = vpop.permute.xlu0 %3290
    %3294 = vset.pattern.permute.xlu0 0
    %3295 = vperm.xlu0 %3294, %v3217
    %v3296 = vpop.permute.xlu0 %3295
    %3299 = vset.pattern.permute.xlu0 0
    %3300 = vperm.xlu0 %3299, %v3218
    %v3301 = vpop.permute.xlu0 %3300
    %3304 = vset.pattern.permute.xlu0 0
    %3305 = vperm.xlu0 %3304, %v3219
    %v3306 = vpop.permute.xlu0 %3305
    %3309 = vset.pattern.permute.xlu0 0
    %3310 = vperm.xlu0 %3309, %v3220
    %v3311 = vpop.permute.xlu0 %3310
    %3314 = vset.pattern.permute.xlu0 0
    %3315 = vperm.xlu0 %3314, %v3221
    %v3316 = vpop.permute.xlu0 %3315
    %3319 = vset.pattern.permute.xlu0 0
    %3320 = vperm.xlu0 %3319, %v3222
    %v3321 = vpop.permute.xlu0 %3320
    %v3323 = vmul.f32 %v3183, %v3226
    %v3324 = vmul.f32 %v3184, %v3231
    %v3325 = vmul.f32 %v3185, %v3236
    %v3326 = vmul.f32 %v3186, %v3241
    %v3327 = vmul.f32 %v3187, %v3246
    %v3328 = vmul.f32 %v3188, %v3251
    %v3329 = vmul.f32 %v3189, %v3256
    %v3330 = vmul.f32 %v3190, %v3261
    %v3331 = vmul.f32 %v3191, %v3266
    %v3332 = vmul.f32 %v3192, %v3271
    %v3333 = vmul.f32 %v3193, %v3276
    %v3334 = vmul.f32 %v3194, %v3281
    %v3335 = vmul.f32 %v3195, %v3286
    %v3336 = vmul.f32 %v3196, %v3291
    %v3337 = vmul.f32 %v3197, %v3296
    %v3338 = vmul.f32 %v3198, %v3301
    %v3339 = vmul.f32 %v3199, %v3306
    %v3340 = vmul.f32 %v3200, %v3311
    %v3341 = vmul.f32 %v3201, %v3316
    %v3342 = vmul.f32 %v3202, %v3321
    %v3343 = vld [vmem:[#allocation2 + $0x10] sm:$0xff]
    %v3344 = vld [vmem:[#allocation2 + $0x18] sm:$0xff]
    %v3345 = vld [vmem:[#allocation2 + $0x20] sm:$0xff]
    %v3346 = vld [vmem:[#allocation2 + $0x28] sm:$0xff]
    %v3347 = vld [vmem:[#allocation2 + $0x30] sm:$0xff]
    %v3348 = vld [vmem:[#allocation2 + $0x38] sm:$0xff]
    %v3349 = vld [vmem:[#allocation2 + $0x40] sm:$0xff]
    %v3350 = vld [vmem:[#allocation2 + $0x48] sm:$0xff]
    %v3351 = vld [vmem:[#allocation2 + $0x50] sm:$0xff]
    %v3352 = vld [vmem:[#allocation2 + $0x58] sm:$0xff]
    %v3353 = vunpack.c.l.bf16 %v3343
    %v3354 = vunpack.c.h.bf16 %v3343
    %v3355 = vunpack.c.l.bf16 %v3344
    %v3356 = vunpack.c.h.bf16 %v3344
    %v3357 = vunpack.c.l.bf16 %v3345
    %v3358 = vunpack.c.h.bf16 %v3345
    %v3359 = vunpack.c.l.bf16 %v3346
    %v3360 = vunpack.c.h.bf16 %v3346
    %v3361 = vunpack.c.l.bf16 %v3347
    %v3362 = vunpack.c.h.bf16 %v3347
    %v3363 = vunpack.c.l.bf16 %v3348
    %v3364 = vunpack.c.h.bf16 %v3348
    %v3365 = vunpack.c.l.bf16 %v3349
    %v3366 = vunpack.c.h.bf16 %v3349
    %v3367 = vunpack.c.l.bf16 %v3350
    %v3368 = vunpack.c.h.bf16 %v3350
    %v3369 = vunpack.c.l.bf16 %v3351
    %v3370 = vunpack.c.h.bf16 %v3351
    %v3371 = vunpack.c.l.bf16 %v3352
    %v3372 = vunpack.c.h.bf16 %v3352
    %v3373 = vadd.f32 %v3323, %v3353
    %v3374 = vadd.f32 %v3324, %v3354
    %v3375 = vadd.f32 %v3325, %v3355
    %v3376 = vadd.f32 %v3326, %v3356
    %v3377 = vadd.f32 %v3327, %v3357
    %v3378 = vadd.f32 %v3328, %v3358
    %v3379 = vadd.f32 %v3329, %v3359
    %v3380 = vadd.f32 %v3330, %v3360
    %v3381 = vadd.f32 %v3331, %v3361
    %v3382 = vadd.f32 %v3332, %v3362
    %v3383 = vadd.f32 %v3333, %v3363
    %v3384 = vadd.f32 %v3334, %v3364
    %v3385 = vadd.f32 %v3335, %v3365
    %v3386 = vadd.f32 %v3336, %v3366
    %v3387 = vadd.f32 %v3337, %v3367
    %v3388 = vadd.f32 %v3338, %v3368
    %v3389 = vadd.f32 %v3339, %v3369
    %v3390 = vadd.f32 %v3340, %v3370
    %v3391 = vadd.f32 %v3341, %v3371
    %v3392 = vadd.f32 %v3342, %v3372
    %v3393 = vpack.c.bf16 %v3374, %v3373
    %v3394 = vpack.c.bf16 %v3376, %v3375
    %v3395 = vpack.c.bf16 %v3378, %v3377
    %v3396 = vpack.c.bf16 %v3380, %v3379
    %v3397 = vpack.c.bf16 %v3382, %v3381
    %v3398 = vpack.c.bf16 %v3384, %v3383
    %v3399 = vpack.c.bf16 %v3386, %v3385
    %v3400 = vpack.c.bf16 %v3388, %v3387
    %v3401 = vpack.c.bf16 %v3390, %v3389
    %v3402 = vpack.c.bf16 %v3392, %v3391
    %3403 = vst.msk [vmem:[#allocation2 + $0x10] sm:$0xff] %vm18, %v3393
    %3404 = vst.msk [vmem:[#allocation2 + $0x18] sm:$0xff] %vm18, %v3394
    %3405 = vst.msk [vmem:[#allocation2 + $0x20] sm:$0xff] %vm18, %v3395
    %3406 = vst.msk [vmem:[#allocation2 + $0x28] sm:$0xff] %vm18, %v3396
    %3407 = vst.msk [vmem:[#allocation2 + $0x30] sm:$0xff] %vm18, %v3397
    %3408 = vst.msk [vmem:[#allocation2 + $0x38] sm:$0xff] %vm18, %v3398
    %3409 = vst.msk [vmem:[#allocation2 + $0x40] sm:$0xff] %vm18, %v3399
    %3410 = vst.msk [vmem:[#allocation2 + $0x48] sm:$0xff] %vm18, %v3400
    %3411 = vst.msk [vmem:[#allocation2 + $0x50] sm:$0xff] %vm18, %v3401
    %3412 = vst.msk [vmem:[#allocation2 + $0x58] sm:$0xff] %vm18, %v3402
  $region22: #{costnet_forward.3} parent=0 // loop_footer
    %s122 = sadd.s32 1, %s118
  $region23: #{costnet_forward.3} parent=0 // loop_footer_branch
    %117 = sbr.rel target = $region19
  $region24: #{costnet_forward.3} parent=0 // loop_exit
    _
  %s3413 = scalar_lea.vmem %s1, 2304
  %v3414 = vld [vmem:[%s3413] sm:$0xf]
  %v3415 = vld [vmem:[%s3413 + $0x4] sm:$0xf]
  %v3416 = vld [vmem:[%s3413 + $0x8] sm:$0xf]
  %v3417 = vld [vmem:[%s3413 + $0xc] sm:$0xf]
  %v3418 = vld [vmem:[%s3413 + $0x10] sm:$0xf]
  %v3419 = vld [vmem:[%s3413 + $0x14] sm:$0xf]
  %v3420 = vld [vmem:[%s3413 + $0x18] sm:$0xf]
  %v3421 = vld [vmem:[%s3413 + $0x1c] sm:$0xf]
  %v3422 = vld [vmem:[%s3413 + $0x20] sm:$0xf]
  %v3423 = vld [vmem:[%s3413 + $0x24] sm:$0xf]
  %v3424 = vld [vmem:[%s3413 + $0x28] sm:$0xf]
  %v3425 = vld [vmem:[%s3413 + $0x2c] sm:$0xf]
  %v3426 = vld [vmem:[%s3413 + $0x30] sm:$0xf]
  %v3427 = vld [vmem:[%s3413 + $0x34] sm:$0xf]
  %v3428 = vld [vmem:[%s3413 + $0x38] sm:$0xf]
  %v3429 = vld [vmem:[%s3413 + $0x3c] sm:$0xf]
  %v3430 = vld [vmem:[%s3413 + $0x40] sm:$0xf]
  %v3431 = vld [vmem:[%s3413 + $0x44] sm:$0xf]
  %v3432 = vld [vmem:[%s3413 + $0x48] sm:$0xf]
  %v3433 = vld [vmem:[%s3413 + $0x4c] sm:$0xf]
  %v3434 = vld [vmem:[%s3413 + $0x50] sm:$0xf]
  %v3435 = vld [vmem:[%s3413 + $0x54] sm:$0xf]
  %v3436 = vld [vmem:[%s3413 + $0x58] sm:$0xf]
  %v3437 = vld [vmem:[%s3413 + $0x5c] sm:$0xf]
  %v3438 = vld [vmem:[%s3413 + $0x60] sm:$0xf]
  %v3439 = vld [vmem:[%s3413 + $0x64] sm:$0xf]
  %v3440 = vld [vmem:[%s3413 + $0x68] sm:$0xf]
  %v3441 = vld [vmem:[%s3413 + $0x6c] sm:$0xf]
  %v3442 = vld [vmem:[%s3413 + $0x70] sm:$0xf]
  %v3443 = vld [vmem:[%s3413 + $0x74] sm:$0xf]
  %v3444 = vld [vmem:[%s3413 + $0x78] sm:$0xf]
  %v3445 = vld [vmem:[%s3413 + $0x7c] sm:$0xf]
  %v3446 = vld [vmem:[%s3413 + $0x80] sm:$0xf]
  %v3447 = vld [vmem:[%s3413 + $0x84] sm:$0xf]
  %v3448 = vld [vmem:[%s3413 + $0x88] sm:$0xf]
  %v3449 = vld [vmem:[%s3413 + $0x8c] sm:$0xf]
  %v3450 = vld [vmem:[%s3413 + $0x90] sm:$0xf]
  %v3451 = vld [vmem:[%s3413 + $0x94] sm:$0xf]
  %v3452 = vld [vmem:[%s3413 + $0x98] sm:$0xf]
  %v3453 = vld [vmem:[%s3413 + $0x9c] sm:$0xf]
  %v3454 = vld [vmem:[%s3413 + $0xa0] sm:$0xf]
  %v3455 = vld [vmem:[%s3413 + $0xa4] sm:$0xf]
  %v3456 = vld [vmem:[%s3413 + $0xa8] sm:$0xf]
  %v3457 = vld [vmem:[%s3413 + $0xac] sm:$0xf]
  %v3458 = vld [vmem:[%s3413 + $0xb0] sm:$0xf]
  %v3459 = vld [vmem:[%s3413 + $0xb4] sm:$0xf]
  %v3460 = vld [vmem:[%s3413 + $0xb8] sm:$0xf]
  %v3461 = vld [vmem:[%s3413 + $0xbc] sm:$0xf]
  %v3462 = vld [vmem:[%s3413 + $0xc0] sm:$0xf]
  %v3463 = vld [vmem:[%s3413 + $0xc4] sm:$0xf]
  %v3464 = vld [vmem:[%s3413 + $0xc8] sm:$0xf]
  %v3465 = vld [vmem:[%s3413 + $0xcc] sm:$0xf]
  %v3466 = vld [vmem:[%s3413 + $0xd0] sm:$0xf]
  %v3467 = vld [vmem:[%s3413 + $0xd4] sm:$0xf]
  %v3468 = vld [vmem:[%s3413 + $0xd8] sm:$0xf]
  %v3469 = vld [vmem:[%s3413 + $0xdc] sm:$0xf]
  %v3470 = vld [vmem:[%s3413 + $0xe0] sm:$0xf]
  %v3471 = vld [vmem:[%s3413 + $0xe4] sm:$0xf]
  %v3472 = vld [vmem:[%s3413 + $0xe8] sm:$0xf]
  %v3473 = vld [vmem:[%s3413 + $0xec] sm:$0xf]
  %v3474 = vld [vmem:[%s3413 + $0xf0] sm:$0xf]
  %v3475 = vld [vmem:[%s3413 + $0xf4] sm:$0xf]
  %v3476 = vld [vmem:[%s3413 + $0xf8] sm:$0xf]
  %v3477 = vld [vmem:[%s3413 + $0xfc] sm:$0xf]
  %v3478 = vld [vmem:[%s3413 + $0x100] sm:$0xf]
  %v3479 = vld [vmem:[%s3413 + $0x104] sm:$0xf]
  %v3480 = vld [vmem:[%s3413 + $0x108] sm:$0xf]
  %v3481 = vld [vmem:[%s3413 + $0x10c] sm:$0xf]
  %v3482 = vld [vmem:[%s3413 + $0x110] sm:$0xf]
  %v3483 = vld [vmem:[%s3413 + $0x114] sm:$0xf]
  %v3484 = vld [vmem:[%s3413 + $0x118] sm:$0xf]
  %v3485 = vld [vmem:[%s3413 + $0x11c] sm:$0xf]
  %s3486 = scalar_lea.vmem %s2, 8
  %v3487 = vld [vmem:[%s3486] sm:$0x1]
  %v3488 = vld [vmem:[#allocation2] sm:$0x80]
  %v3489 = vld [vmem:[#allocation2 + $0x8] sm:$0xff]
  %v3490 = vld [vmem:[#allocation2 + $0x10] sm:$0xff]
  %v3491 = vld [vmem:[#allocation2 + $0x18] sm:$0xff]
  %v3492 = vld [vmem:[#allocation2 + $0x20] sm:$0xff]
  %v3493 = vld [vmem:[#allocation2 + $0x28] sm:$0xff]
  %v3494 = vld [vmem:[#allocation2 + $0x30] sm:$0xff]
  %v3495 = vld [vmem:[#allocation2 + $0x38] sm:$0xff]
  %v3496 = vld [vmem:[#allocation2 + $0x40] sm:$0xff]
  %v3497 = vld [vmem:[#allocation2 + $0x48] sm:$0xff]
  %v3498 = vld [vmem:[#allocation2 + $0x50] sm:$0xff]
  %vm3499 = vsmask.f32 256
  %v3501 = vshrl.u32 %v3488, 16
  %v3503 = vrot.slane %v3501, 7
  %v3505 = vshrl.u32 %v3489, 16
  %v3507 = vrot.slane %v3505, 7
  %v3508 = vshll.u32 %v3489, 16
  %v3510 = vor.u32 %v3507, %v3508
  %v3511 = vsel %vm3499, %v3503, %v3510
  %v3513 = vshrl.u32 %v3490, 16
  %v3515 = vrot.slane %v3513, 7
  %v3516 = vshll.u32 %v3490, 16
  %v3518 = vor.u32 %v3515, %v3516
  %v3519 = vsel %vm3499, %v3507, %v3518
  %v3521 = vshrl.u32 %v3491, 16
  %v3523 = vrot.slane %v3521, 7
  %v3524 = vshll.u32 %v3491, 16
  %v3526 = vor.u32 %v3523, %v3524
  %v3527 = vsel %vm3499, %v3515, %v3526
  %v3529 = vshrl.u32 %v3492, 16
  %v3531 = vrot.slane %v3529, 7
  %v3532 = vshll.u32 %v3492, 16
  %v3534 = vor.u32 %v3531, %v3532
  %v3535 = vsel %vm3499, %v3523, %v3534
  %v3537 = vshrl.u32 %v3493, 16
  %v3539 = vrot.slane %v3537, 7
  %v3540 = vshll.u32 %v3493, 16
  %v3542 = vor.u32 %v3539, %v3540
  %v3543 = vsel %vm3499, %v3531, %v3542
  %v3545 = vshrl.u32 %v3494, 16
  %v3547 = vrot.slane %v3545, 7
  %v3548 = vshll.u32 %v3494, 16
  %v3550 = vor.u32 %v3547, %v3548
  %v3551 = vsel %vm3499, %v3539, %v3550
  %v3553 = vshrl.u32 %v3495, 16
  %v3555 = vrot.slane %v3553, 7
  %v3556 = vshll.u32 %v3495, 16
  %v3558 = vor.u32 %v3555, %v3556
  %v3559 = vsel %vm3499, %v3547, %v3558
  %v3561 = vshrl.u32 %v3496, 16
  %v3563 = vrot.slane %v3561, 7
  %v3564 = vshll.u32 %v3496, 16
  %v3566 = vor.u32 %v3563, %v3564
  %v3567 = vsel %vm3499, %v3555, %v3566
  %v3569 = vshrl.u32 %v3497, 16
  %v3571 = vrot.slane %v3569, 7
  %v3572 = vshll.u32 %v3497, 16
  %v3574 = vor.u32 %v3571, %v3572
  %v3575 = vsel %vm3499, %v3563, %v3574
  %v3577 = vshrl.u32 %v3498, 16
  %v3579 = vrot.slane %v3577, 7
  %v3580 = vshll.u32 %v3498, 16
  %v3582 = vor.u32 %v3579, %v3580
  %v3583 = vsel %vm3499, %v3571, %v3582
  %3594 = vst.msk [vmem:[#allocation4] sm:$0xff] %vm18, %v3511
  %3595 = vst.msk [vmem:[#allocation4 + $0x28] sm:$0xff] %vm18, %v3519
  %3596 = vst.msk [vmem:[#allocation4 + $0x50] sm:$0xff] %vm18, %v3527
  %3597 = vst.msk [vmem:[#allocation4 + $0x78] sm:$0xff] %vm18, %v3535
  %3598 = vst.msk [vmem:[#allocation4 + $0xa0] sm:$0xff] %vm18, %v3543
  %3599 = vst.msk [vmem:[#allocation4 + $0xc8] sm:$0xff] %vm18, %v3551
  %3600 = vst.msk [vmem:[#allocation4 + $0xf0] sm:$0xff] %vm18, %v3559
  %3601 = vst.msk [vmem:[#allocation4 + $0x118] sm:$0xff] %vm18, %v3567
  %3602 = vst.msk [vmem:[#allocation4 + $0x140] sm:$0xff] %vm18, %v3575
  %3603 = vst.msk [vmem:[#allocation4 + $0x168] sm:$0xff] %vm18, %v3583
  %v3604 = vld [vmem:[#allocation2 + $0x8] sm:$0xff]
  %v3605 = vld [vmem:[#allocation2 + $0x10] sm:$0xff]
  %v3606 = vld [vmem:[#allocation2 + $0x18] sm:$0xff]
  %v3607 = vld [vmem:[#allocation2 + $0x20] sm:$0xff]
  %v3608 = vld [vmem:[#allocation2 + $0x28] sm:$0xff]
  %v3609 = vld [vmem:[#allocation2 + $0x30] sm:$0xff]
  %v3610 = vld [vmem:[#allocation2 + $0x38] sm:$0xff]
  %v3611 = vld [vmem:[#allocation2 + $0x40] sm:$0xff]
  %v3612 = vld [vmem:[#allocation2 + $0x48] sm:$0xff]
  %v3613 = vld [vmem:[#allocation2 + $0x50] sm:$0xff]
  %3624 = vrot.lane.b32.xlu0 %v3604, 64
  %v3625 = vpop.permute.xlu0 %3624
  %3626 = vrot.lane.b32.xlu0 %v3605, 64
  %v3627 = vpop.permute.xlu0 %3626
  %3628 = vrot.lane.b32.xlu0 %v3606, 64
  %v3629 = vpop.permute.xlu0 %3628
  %3630 = vrot.lane.b32.xlu0 %v3607, 64
  %v3631 = vpop.permute.xlu0 %3630
  %3632 = vrot.lane.b32.xlu0 %v3608, 64
  %v3633 = vpop.permute.xlu0 %3632
  %3634 = vrot.lane.b32.xlu0 %v3609, 64
  %v3635 = vpop.permute.xlu0 %3634
  %3636 = vrot.lane.b32.xlu0 %v3610, 64
  %v3637 = vpop.permute.xlu0 %3636
  %3638 = vrot.lane.b32.xlu0 %v3611, 64
  %v3639 = vpop.permute.xlu0 %3638
  %3640 = vrot.lane.b32.xlu0 %v3612, 64
  %v3641 = vpop.permute.xlu0 %3640
  %3642 = vrot.lane.b32.xlu0 %v3613, 64
  %v3643 = vpop.permute.xlu0 %3642
  %vm3654 = vcmask 1048064
  %3655 = vst.msk [vmem:[#allocation4] sm:$0xff] %vm3654, %v3625
  %3656 = vst.msk [vmem:[#allocation4 + $0x28] sm:$0xff] %vm3654, %v3627
  %3657 = vst.msk [vmem:[#allocation4 + $0x50] sm:$0xff] %vm3654, %v3629
  %3658 = vst.msk [vmem:[#allocation4 + $0x78] sm:$0xff] %vm3654, %v3631
  %3659 = vst.msk [vmem:[#allocation4 + $0xa0] sm:$0xff] %vm3654, %v3633
  %3660 = vst.msk [vmem:[#allocation4 + $0xc8] sm:$0xff] %vm3654, %v3635
  %3661 = vst.msk [vmem:[#allocation4 + $0xf0] sm:$0xff] %vm3654, %v3637
  %3662 = vst.msk [vmem:[#allocation4 + $0x118] sm:$0xff] %vm3654, %v3639
  %3663 = vst.msk [vmem:[#allocation4 + $0x140] sm:$0xff] %vm3654, %v3641
  %3664 = vst.msk [vmem:[#allocation4 + $0x168] sm:$0xff] %vm3654, %v3643
  %v3665 = vld [vmem:[#allocation2 + $0x8] sm:$0xff]
  %v3666 = vld [vmem:[#allocation2 + $0x10] sm:$0xff]
  %v3667 = vld [vmem:[#allocation2 + $0x18] sm:$0xff]
  %v3668 = vld [vmem:[#allocation2 + $0x20] sm:$0xff]
  %v3669 = vld [vmem:[#allocation2 + $0x28] sm:$0xff]
  %v3670 = vld [vmem:[#allocation2 + $0x30] sm:$0xff]
  %v3671 = vld [vmem:[#allocation2 + $0x38] sm:$0xff]
  %v3672 = vld [vmem:[#allocation2 + $0x40] sm:$0xff]
  %v3673 = vld [vmem:[#allocation2 + $0x48] sm:$0xff]
  %v3674 = vld [vmem:[#allocation2 + $0x50] sm:$0xff]
  %v3675 = vld [vmem:[#allocation2 + $0x58] sm:$0x1]
  %vm3676 = vsmask.f32 7424
  %v3678 = vshrl.u32 %v3665, 16
  %v3680 = vshll.u32 %v3665, 16
  %v3682 = vrot.slane %v3680, 1
  %v3683 = vor.u32 %v3678, %v3682
  %v3685 = vshll.u32 %v3666, 16
  %v3687 = vrot.slane %v3685, 1
  %v3688 = vsel %vm3676, %v3683, %v3687
  %v3689 = vshrl.u32 %v3666, 16
  %v3691 = vor.u32 %v3689, %v3687
  %v3693 = vshll.u32 %v3667, 16
  %v3695 = vrot.slane %v3693, 1
  %v3696 = vsel %vm3676, %v3691, %v3695
  %v3697 = vshrl.u32 %v3667, 16
  %v3699 = vor.u32 %v3697, %v3695
  %v3701 = vshll.u32 %v3668, 16
  %v3703 = vrot.slane %v3701, 1
  %v3704 = vsel %vm3676, %v3699, %v3703
  %v3705 = vshrl.u32 %v3668, 16
  %v3707 = vor.u32 %v3705, %v3703
  %v3709 = vshll.u32 %v3669, 16
  %v3711 = vrot.slane %v3709, 1
  %v3712 = vsel %vm3676, %v3707, %v3711
  %v3713 = vshrl.u32 %v3669, 16
  %v3715 = vor.u32 %v3713, %v3711
  %v3717 = vshll.u32 %v3670, 16
  %v3719 = vrot.slane %v3717, 1
  %v3720 = vsel %vm3676, %v3715, %v3719
  %v3721 = vshrl.u32 %v3670, 16
  %v3723 = vor.u32 %v3721, %v3719
  %v3725 = vshll.u32 %v3671, 16
  %v3727 = vrot.slane %v3725, 1
  %v3728 = vsel %vm3676, %v3723, %v3727
  %v3729 = vshrl.u32 %v3671, 16
  %v3731 = vor.u32 %v3729, %v3727
  %v3733 = vshll.u32 %v3672, 16
  %v3735 = vrot.slane %v3733, 1
  %v3736 = vsel %vm3676, %v3731, %v3735
  %v3737 = vshrl.u32 %v3672, 16
  %v3739 = vor.u32 %v3737, %v3735
  %v3741 = vshll.u32 %v3673, 16
  %v3743 = vrot.slane %v3741, 1
  %v3744 = vsel %vm3676, %v3739, %v3743
  %v3745 = vshrl.u32 %v3673, 16
  %v3747 = vor.u32 %v3745, %v3743
  %v3749 = vshll.u32 %v3674, 16
  %v3751 = vrot.slane %v3749, 1
  %v3752 = vsel %vm3676, %v3747, %v3751
  %v3753 = vshrl.u32 %v3674, 16
  %v3755 = vor.u32 %v3753, %v3751
  %v3757 = vshll.u32 %v3675, 16
  %v3759 = vrot.slane %v3757, 1
  %v3760 = vsel %vm3676, %v3755, %v3759
  %3771 = vst.msk [vmem:[#allocation4 + $0x8] sm:$0xff] %vm18, %v3688
  %3772 = vst.msk [vmem:[#allocation4 + $0x30] sm:$0xff] %vm18, %v3696
  %3773 = vst.msk [vmem:[#allocation4 + $0x58] sm:$0xff] %vm18, %v3704
  %3774 = vst.msk [vmem:[#allocation4 + $0x80] sm:$0xff] %vm18, %v3712
  %3775 = vst.msk [vmem:[#allocation4 + $0xa8] sm:$0xff] %vm18, %v3720
  %3776 = vst.msk [vmem:[#allocation4 + $0xd0] sm:$0xff] %vm18, %v3728
  %3777 = vst.msk [vmem:[#allocation4 + $0xf8] sm:$0xff] %vm18, %v3736
  %3778 = vst.msk [vmem:[#allocation4 + $0x120] sm:$0xff] %vm18, %v3744
  %3779 = vst.msk [vmem:[#allocation4 + $0x148] sm:$0xff] %vm18, %v3752
  %3780 = vst.msk [vmem:[#allocation4 + $0x170] sm:$0xff] %vm18, %v3760
  %v3781 = vld [vmem:[#allocation2 + $0x8] sm:$0x80]
  %v3782 = vld [vmem:[#allocation2 + $0x10] sm:$0xff]
  %v3783 = vld [vmem:[#allocation2 + $0x18] sm:$0xff]
  %v3784 = vld [vmem:[#allocation2 + $0x20] sm:$0xff]
  %v3785 = vld [vmem:[#allocation2 + $0x28] sm:$0xff]
  %v3786 = vld [vmem:[#allocation2 + $0x30] sm:$0xff]
  %v3787 = vld [vmem:[#allocation2 + $0x38] sm:$0xff]
  %v3788 = vld [vmem:[#allocation2 + $0x40] sm:$0xff]
  %v3789 = vld [vmem:[#allocation2 + $0x48] sm:$0xff]
  %v3790 = vld [vmem:[#allocation2 + $0x50] sm:$0xff]
  %v3791 = vld [vmem:[#allocation2 + $0x58] sm:$0xff]
  %v3793 = vshrl.u32 %v3781, 16
  %v3795 = vrot.slane %v3793, 7
  %v3797 = vshrl.u32 %v3782, 16
  %v3799 = vrot.slane %v3797, 7
  %v3800 = vshll.u32 %v3782, 16
  %v3802 = vor.u32 %v3799, %v3800
  %v3803 = vsel %vm3499, %v3795, %v3802
  %v3805 = vshrl.u32 %v3783, 16
  %v3807 = vrot.slane %v3805, 7
  %v3808 = vshll.u32 %v3783, 16
  %v3810 = vor.u32 %v3807, %v3808
  %v3811 = vsel %vm3499, %v3799, %v3810
  %v3813 = vshrl.u32 %v3784, 16
  %v3815 = vrot.slane %v3813, 7
  %v3816 = vshll.u32 %v3784, 16
  %v3818 = vor.u32 %v3815, %v3816
  %v3819 = vsel %vm3499, %v3807, %v3818
  %v3821 = vshrl.u32 %v3785, 16
  %v3823 = vrot.slane %v3821, 7
  %v3824 = vshll.u32 %v3785, 16
  %v3826 = vor.u32 %v3823, %v3824
  %v3827 = vsel %vm3499, %v3815, %v3826
  %v3829 = vshrl.u32 %v3786, 16
  %v3831 = vrot.slane %v3829, 7
  %v3832 = vshll.u32 %v3786, 16
  %v3834 = vor.u32 %v3831, %v3832
  %v3835 = vsel %vm3499, %v3823, %v3834
  %v3837 = vshrl.u32 %v3787, 16
  %v3839 = vrot.slane %v3837, 7
  %v3840 = vshll.u32 %v3787, 16
  %v3842 = vor.u32 %v3839, %v3840
  %v3843 = vsel %vm3499, %v3831, %v3842
  %v3845 = vshrl.u32 %v3788, 16
  %v3847 = vrot.slane %v3845, 7
  %v3848 = vshll.u32 %v3788, 16
  %v3850 = vor.u32 %v3847, %v3848
  %v3851 = vsel %vm3499, %v3839, %v3850
  %v3853 = vshrl.u32 %v3789, 16
  %v3855 = vrot.slane %v3853, 7
  %v3856 = vshll.u32 %v3789, 16
  %v3858 = vor.u32 %v3855, %v3856
  %v3859 = vsel %vm3499, %v3847, %v3858
  %v3861 = vshrl.u32 %v3790, 16
  %v3863 = vrot.slane %v3861, 7
  %v3864 = vshll.u32 %v3790, 16
  %v3866 = vor.u32 %v3863, %v3864
  %v3867 = vsel %vm3499, %v3855, %v3866
  %v3869 = vshrl.u32 %v3791, 16
  %v3871 = vrot.slane %v3869, 7
  %v3872 = vshll.u32 %v3791, 16
  %v3874 = vor.u32 %v3871, %v3872
  %v3875 = vsel %vm3499, %v3863, %v3874
  %3876 = vrot.lane.b32.xlu0 %v3803, 64
  %v3877 = vpop.permute.xlu0 %3876
  %3878 = vrot.lane.b32.xlu0 %v3811, 64
  %v3879 = vpop.permute.xlu0 %3878
  %3880 = vrot.lane.b32.xlu0 %v3819, 64
  %v3881 = vpop.permute.xlu0 %3880
  %3882 = vrot.lane.b32.xlu0 %v3827, 64
  %v3883 = vpop.permute.xlu0 %3882
  %3884 = vrot.lane.b32.xlu0 %v3835, 64
  %v3885 = vpop.permute.xlu0 %3884
  %3886 = vrot.lane.b32.xlu0 %v3843, 64
  %v3887 = vpop.permute.xlu0 %3886
  %3888 = vrot.lane.b32.xlu0 %v3851, 64
  %v3889 = vpop.permute.xlu0 %3888
  %3890 = vrot.lane.b32.xlu0 %v3859, 64
  %v3891 = vpop.permute.xlu0 %3890
  %3892 = vrot.lane.b32.xlu0 %v3867, 64
  %v3893 = vpop.permute.xlu0 %3892
  %3894 = vrot.lane.b32.xlu0 %v3875, 64
  %v3895 = vpop.permute.xlu0 %3894
  %3906 = vst.msk [vmem:[#allocation4 + $0x8] sm:$0xff] %vm3654, %v3877
  %3907 = vst.msk [vmem:[#allocation4 + $0x30] sm:$0xff] %vm3654, %v3879
  %3908 = vst.msk [vmem:[#allocation4 + $0x58] sm:$0xff] %vm3654, %v3881
  %3909 = vst.msk [vmem:[#allocation4 + $0x80] sm:$0xff] %vm3654, %v3883
  %3910 = vst.msk [vmem:[#allocation4 + $0xa8] sm:$0xff] %vm3654, %v3885
  %3911 = vst.msk [vmem:[#allocation4 + $0xd0] sm:$0xff] %vm3654, %v3887
  %3912 = vst.msk [vmem:[#allocation4 + $0xf8] sm:$0xff] %vm3654, %v3889
  %3913 = vst.msk [vmem:[#allocation4 + $0x120] sm:$0xff] %vm3654, %v3891
  %3914 = vst.msk [vmem:[#allocation4 + $0x148] sm:$0xff] %vm3654, %v3893
  %3915 = vst.msk [vmem:[#allocation4 + $0x170] sm:$0xff] %vm3654, %v3895
  %v3916 = vld [vmem:[#allocation2 + $0x10] sm:$0xff]
  %v3917 = vld [vmem:[#allocation2 + $0x18] sm:$0xff]
  %v3918 = vld [vmem:[#allocation2 + $0x20] sm:$0xff]
  %v3919 = vld [vmem:[#allocation2 + $0x28] sm:$0xff]
  %v3920 = vld [vmem:[#allocation2 + $0x30] sm:$0xff]
  %v3921 = vld [vmem:[#allocation2 + $0x38] sm:$0xff]
  %v3922 = vld [vmem:[#allocation2 + $0x40] sm:$0xff]
  %v3923 = vld [vmem:[#allocation2 + $0x48] sm:$0xff]
  %v3924 = vld [vmem:[#allocation2 + $0x50] sm:$0xff]
  %v3925 = vld [vmem:[#allocation2 + $0x58] sm:$0xff]
  %3926 = vst.msk [vmem:[#allocation4 + $0x10] sm:$0xff] %vm18, %v3916
  %3927 = vst.msk [vmem:[#allocation4 + $0x38] sm:$0xff] %vm18, %v3917
  %3928 = vst.msk [vmem:[#allocation4 + $0x60] sm:$0xff] %vm18, %v3918
  %3929 = vst.msk [vmem:[#allocation4 + $0x88] sm:$0xff] %vm18, %v3919
  %3930 = vst.msk [vmem:[#allocation4 + $0xb0] sm:$0xff] %vm18, %v3920
  %3931 = vst.msk [vmem:[#allocation4 + $0xd8] sm:$0xff] %vm18, %v3921
  %3932 = vst.msk [vmem:[#allocation4 + $0x100] sm:$0xff] %vm18, %v3922
  %3933 = vst.msk [vmem:[#allocation4 + $0x128] sm:$0xff] %vm18, %v3923
  %3934 = vst.msk [vmem:[#allocation4 + $0x150] sm:$0xff] %vm18, %v3924
  %3935 = vst.msk [vmem:[#allocation4 + $0x178] sm:$0xff] %vm18, %v3925
  %v3936 = vld [vmem:[#allocation2 + $0x10] sm:$0xff]
  %v3937 = vld [vmem:[#allocation2 + $0x18] sm:$0xff]
  %v3938 = vld [vmem:[#allocation2 + $0x20] sm:$0xff]
  %v3939 = vld [vmem:[#allocation2 + $0x28] sm:$0xff]
  %v3940 = vld [vmem:[#allocation2 + $0x30] sm:$0xff]
  %v3941 = vld [vmem:[#allocation2 + $0x38] sm:$0xff]
  %v3942 = vld [vmem:[#allocation2 + $0x40] sm:$0xff]
  %v3943 = vld [vmem:[#allocation2 + $0x48] sm:$0xff]
  %v3944 = vld [vmem:[#allocation2 + $0x50] sm:$0xff]
  %v3945 = vld [vmem:[#allocation2 + $0x58] sm:$0xff]
  %v3946 = vld [vmem:[#allocation2 + $0x60] sm:$0x1]
  %v3948 = vshrl.u32 %v3936, 16
  %v3950 = vshll.u32 %v3936, 16
  %v3952 = vrot.slane %v3950, 1
  %v3953 = vor.u32 %v3948, %v3952
  %v3955 = vshll.u32 %v3937, 16
  %v3957 = vrot.slane %v3955, 1
  %v3958 = vsel %vm3676, %v3953, %v3957
  %v3959 = vshrl.u32 %v3937, 16
  %v3961 = vor.u32 %v3959, %v3957
  %v3963 = vshll.u32 %v3938, 16
  %v3965 = vrot.slane %v3963, 1
  %v3966 = vsel %vm3676, %v3961, %v3965
  %v3967 = vshrl.u32 %v3938, 16
  %v3969 = vor.u32 %v3967, %v3965
  %v3971 = vshll.u32 %v3939, 16
  %v3973 = vrot.slane %v3971, 1
  %v3974 = vsel %vm3676, %v3969, %v3973
  %v3975 = vshrl.u32 %v3939, 16
  %v3977 = vor.u32 %v3975, %v3973
  %v3979 = vshll.u32 %v3940, 16
  %v3981 = vrot.slane %v3979, 1
  %v3982 = vsel %vm3676, %v3977, %v3981
  %v3983 = vshrl.u32 %v3940, 16
  %v3985 = vor.u32 %v3983, %v3981
  %v3987 = vshll.u32 %v3941, 16
  %v3989 = vrot.slane %v3987, 1
  %v3990 = vsel %vm3676, %v3985, %v3989
  %v3991 = vshrl.u32 %v3941, 16
  %v3993 = vor.u32 %v3991, %v3989
  %v3995 = vshll.u32 %v3942, 16
  %v3997 = vrot.slane %v3995, 1
  %v3998 = vsel %vm3676, %v3993, %v3997
  %v3999 = vshrl.u32 %v3942, 16
  %v4001 = vor.u32 %v3999, %v3997
  %v4003 = vshll.u32 %v3943, 16
  %v4005 = vrot.slane %v4003, 1
  %v4006 = vsel %vm3676, %v4001, %v4005
  %v4007 = vshrl.u32 %v3943, 16
  %v4009 = vor.u32 %v4007, %v4005
  %v4011 = vshll.u32 %v3944, 16
  %v4013 = vrot.slane %v4011, 1
  %v4014 = vsel %vm3676, %v4009, %v4013
  %v4015 = vshrl.u32 %v3944, 16
  %v4017 = vor.u32 %v4015, %v4013
  %v4019 = vshll.u32 %v3945, 16
  %v4021 = vrot.slane %v4019, 1
  %v4022 = vsel %vm3676, %v4017, %v4021
  %v4023 = vshrl.u32 %v3945, 16
  %v4025 = vor.u32 %v4023, %v4021
  %v4027 = vshll.u32 %v3946, 16
  %v4029 = vrot.slane %v4027, 1
  %v4030 = vsel %vm3676, %v4025, %v4029
  %4031 = vrot.lane.b32.xlu0 %v3958, 64
  %v4032 = vpop.permute.xlu0 %4031
  %4033 = vrot.lane.b32.xlu0 %v3966, 64
  %v4034 = vpop.permute.xlu0 %4033
  %4035 = vrot.lane.b32.xlu0 %v3974, 64
  %v4036 = vpop.permute.xlu0 %4035
  %4037 = vrot.lane.b32.xlu0 %v3982, 64
  %v4038 = vpop.permute.xlu0 %4037
  %4039 = vrot.lane.b32.xlu0 %v3990, 64
  %v4040 = vpop.permute.xlu0 %4039
  %4041 = vrot.lane.b32.xlu0 %v3998, 64
  %v4042 = vpop.permute.xlu0 %4041
  %4043 = vrot.lane.b32.xlu0 %v4006, 64
  %v4044 = vpop.permute.xlu0 %4043
  %4045 = vrot.lane.b32.xlu0 %v4014, 64
  %v4046 = vpop.permute.xlu0 %4045
  %4047 = vrot.lane.b32.xlu0 %v4022, 64
  %v4048 = vpop.permute.xlu0 %4047
  %4049 = vrot.lane.b32.xlu0 %v4030, 64
  %v4050 = vpop.permute.xlu0 %4049
  %4061 = vst.msk [vmem:[#allocation4 + $0x10] sm:$0xff] %vm3654, %v4032
  %4062 = vst.msk [vmem:[#allocation4 + $0x38] sm:$0xff] %vm3654, %v4034
  %4063 = vst.msk [vmem:[#allocation4 + $0x60] sm:$0xff] %vm3654, %v4036
  %4064 = vst.msk [vmem:[#allocation4 + $0x88] sm:$0xff] %vm3654, %v4038
  %4065 = vst.msk [vmem:[#allocation4 + $0xb0] sm:$0xff] %vm3654, %v4040
  %4066 = vst.msk [vmem:[#allocation4 + $0xd8] sm:$0xff] %vm3654, %v4042
  %4067 = vst.msk [vmem:[#allocation4 + $0x100] sm:$0xff] %vm3654, %v4044
  %4068 = vst.msk [vmem:[#allocation4 + $0x128] sm:$0xff] %vm3654, %v4046
  %4069 = vst.msk [vmem:[#allocation4 + $0x150] sm:$0xff] %vm3654, %v4048
  %4070 = vst.msk [vmem:[#allocation4 + $0x178] sm:$0xff] %vm3654, %v4050
  %v4071 = vld [vmem:[#allocation2 + $0x10] sm:$0x80]
  %v4072 = vld [vmem:[#allocation2 + $0x18] sm:$0xff]
  %v4073 = vld [vmem:[#allocation2 + $0x20] sm:$0xff]
  %v4074 = vld [vmem:[#allocation2 + $0x28] sm:$0xff]
  %v4075 = vld [vmem:[#allocation2 + $0x30] sm:$0xff]
  %v4076 = vld [vmem:[#allocation2 + $0x38] sm:$0xff]
  %v4077 = vld [vmem:[#allocation2 + $0x40] sm:$0xff]
  %v4078 = vld [vmem:[#allocation2 + $0x48] sm:$0xff]
  %v4079 = vld [vmem:[#allocation2 + $0x50] sm:$0xff]
  %v4080 = vld [vmem:[#allocation2 + $0x58] sm:$0xff]
  %v4081 = vld [vmem:[#allocation2 + $0x60] sm:$0xff]
  %v4083 = vshrl.u32 %v4071, 16
  %v4085 = vrot.slane %v4083, 7
  %v4087 = vshrl.u32 %v4072, 16
  %v4089 = vrot.slane %v4087, 7
  %v4090 = vshll.u32 %v4072, 16
  %v4092 = vor.u32 %v4089, %v4090
  %v4093 = vsel %vm3499, %v4085, %v4092
  %v4095 = vshrl.u32 %v4073, 16
  %v4097 = vrot.slane %v4095, 7
  %v4098 = vshll.u32 %v4073, 16
  %v4100 = vor.u32 %v4097, %v4098
  %v4101 = vsel %vm3499, %v4089, %v4100
  %v4103 = vshrl.u32 %v4074, 16
  %v4105 = vrot.slane %v4103, 7
  %v4106 = vshll.u32 %v4074, 16
  %v4108 = vor.u32 %v4105, %v4106
  %v4109 = vsel %vm3499, %v4097, %v4108
  %v4111 = vshrl.u32 %v4075, 16
  %v4113 = vrot.slane %v4111, 7
  %v4114 = vshll.u32 %v4075, 16
  %v4116 = vor.u32 %v4113, %v4114
  %v4117 = vsel %vm3499, %v4105, %v4116
  %v4119 = vshrl.u32 %v4076, 16
  %v4121 = vrot.slane %v4119, 7
  %v4122 = vshll.u32 %v4076, 16
  %v4124 = vor.u32 %v4121, %v4122
  %v4125 = vsel %vm3499, %v4113, %v4124
  %v4127 = vshrl.u32 %v4077, 16
  %v4129 = vrot.slane %v4127, 7
  %v4130 = vshll.u32 %v4077, 16
  %v4132 = vor.u32 %v4129, %v4130
  %v4133 = vsel %vm3499, %v4121, %v4132
  %v4135 = vshrl.u32 %v4078, 16
  %v4137 = vrot.slane %v4135, 7
  %v4138 = vshll.u32 %v4078, 16
  %v4140 = vor.u32 %v4137, %v4138
  %v4141 = vsel %vm3499, %v4129, %v4140
  %v4143 = vshrl.u32 %v4079, 16
  %v4145 = vrot.slane %v4143, 7
  %v4146 = vshll.u32 %v4079, 16
  %v4148 = vor.u32 %v4145, %v4146
  %v4149 = vsel %vm3499, %v4137, %v4148
  %v4151 = vshrl.u32 %v4080, 16
  %v4153 = vrot.slane %v4151, 7
  %v4154 = vshll.u32 %v4080, 16
  %v4156 = vor.u32 %v4153, %v4154
  %v4157 = vsel %vm3499, %v4145, %v4156
  %v4159 = vshrl.u32 %v4081, 16
  %v4161 = vrot.slane %v4159, 7
  %v4162 = vshll.u32 %v4081, 16
  %v4164 = vor.u32 %v4161, %v4162
  %v4165 = vsel %vm3499, %v4153, %v4164
  %4176 = vst.msk [vmem:[#allocation4 + $0x18] sm:$0xff] %vm18, %v4093
  %4177 = vst.msk [vmem:[#allocation4 + $0x40] sm:$0xff] %vm18, %v4101
  %4178 = vst.msk [vmem:[#allocation4 + $0x68] sm:$0xff] %vm18, %v4109
  %4179 = vst.msk [vmem:[#allocation4 + $0x90] sm:$0xff] %vm18, %v4117
  %4180 = vst.msk [vmem:[#allocation4 + $0xb8] sm:$0xff] %vm18, %v4125
  %4181 = vst.msk [vmem:[#allocation4 + $0xe0] sm:$0xff] %vm18, %v4133
  %4182 = vst.msk [vmem:[#allocation4 + $0x108] sm:$0xff] %vm18, %v4141
  %4183 = vst.msk [vmem:[#allocation4 + $0x130] sm:$0xff] %vm18, %v4149
  %4184 = vst.msk [vmem:[#allocation4 + $0x158] sm:$0xff] %vm18, %v4157
  %4185 = vst.msk [vmem:[#allocation4 + $0x180] sm:$0xff] %vm18, %v4165
  %v4186 = vld [vmem:[#allocation2 + $0x18] sm:$0xff]
  %v4187 = vld [vmem:[#allocation2 + $0x20] sm:$0xff]
  %v4188 = vld [vmem:[#allocation2 + $0x28] sm:$0xff]
  %v4189 = vld [vmem:[#allocation2 + $0x30] sm:$0xff]
  %v4190 = vld [vmem:[#allocation2 + $0x38] sm:$0xff]
  %v4191 = vld [vmem:[#allocation2 + $0x40] sm:$0xff]
  %v4192 = vld [vmem:[#allocation2 + $0x48] sm:$0xff]
  %v4193 = vld [vmem:[#allocation2 + $0x50] sm:$0xff]
  %v4194 = vld [vmem:[#allocation2 + $0x58] sm:$0xff]
  %v4195 = vld [vmem:[#allocation2 + $0x60] sm:$0xff]
  %4206 = vrot.lane.b32.xlu0 %v4186, 64
  %v4207 = vpop.permute.xlu0 %4206
  %4208 = vrot.lane.b32.xlu0 %v4187, 64
  %v4209 = vpop.permute.xlu0 %4208
  %4210 = vrot.lane.b32.xlu0 %v4188, 64
  %v4211 = vpop.permute.xlu0 %4210
  %4212 = vrot.lane.b32.xlu0 %v4189, 64
  %v4213 = vpop.permute.xlu0 %4212
  %4214 = vrot.lane.b32.xlu0 %v4190, 64
  %v4215 = vpop.permute.xlu0 %4214
  %4216 = vrot.lane.b32.xlu0 %v4191, 64
  %v4217 = vpop.permute.xlu0 %4216
  %4218 = vrot.lane.b32.xlu0 %v4192, 64
  %v4219 = vpop.permute.xlu0 %4218
  %4220 = vrot.lane.b32.xlu0 %v4193, 64
  %v4221 = vpop.permute.xlu0 %4220
  %4222 = vrot.lane.b32.xlu0 %v4194, 64
  %v4223 = vpop.permute.xlu0 %4222
  %4224 = vrot.lane.b32.xlu0 %v4195, 64
  %v4225 = vpop.permute.xlu0 %4224
  %4236 = vst.msk [vmem:[#allocation4 + $0x18] sm:$0xff] %vm3654, %v4207
  %4237 = vst.msk [vmem:[#allocation4 + $0x40] sm:$0xff] %vm3654, %v4209
  %4238 = vst.msk [vmem:[#allocation4 + $0x68] sm:$0xff] %vm3654, %v4211
  %4239 = vst.msk [vmem:[#allocation4 + $0x90] sm:$0xff] %vm3654, %v4213
  %4240 = vst.msk [vmem:[#allocation4 + $0xb8] sm:$0xff] %vm3654, %v4215
  %4241 = vst.msk [vmem:[#allocation4 + $0xe0] sm:$0xff] %vm3654, %v4217
  %4242 = vst.msk [vmem:[#allocation4 + $0x108] sm:$0xff] %vm3654, %v4219
  %4243 = vst.msk [vmem:[#allocation4 + $0x130] sm:$0xff] %vm3654, %v4221
  %4244 = vst.msk [vmem:[#allocation4 + $0x158] sm:$0xff] %vm3654, %v4223
  %4245 = vst.msk [vmem:[#allocation4 + $0x180] sm:$0xff] %vm3654, %v4225
  %v4246 = vld [vmem:[#allocation2 + $0x18] sm:$0xff]
  %v4247 = vld [vmem:[#allocation2 + $0x20] sm:$0xff]
  %v4248 = vld [vmem:[#allocation2 + $0x28] sm:$0xff]
  %v4249 = vld [vmem:[#allocation2 + $0x30] sm:$0xff]
  %v4250 = vld [vmem:[#allocation2 + $0x38] sm:$0xff]
  %v4251 = vld [vmem:[#allocation2 + $0x40] sm:$0xff]
  %v4252 = vld [vmem:[#allocation2 + $0x48] sm:$0xff]
  %v4253 = vld [vmem:[#allocation2 + $0x50] sm:$0xff]
  %v4254 = vld [vmem:[#allocation2 + $0x58] sm:$0xff]
  %v4255 = vld [vmem:[#allocation2 + $0x60] sm:$0xff]
  %v4256 = vld [vmem:[#allocation2 + $0x68] sm:$0x1]
  %v4258 = vshrl.u32 %v4246, 16
  %v4260 = vshll.u32 %v4246, 16
  %v4262 = vrot.slane %v4260, 1
  %v4263 = vor.u32 %v4258, %v4262
  %v4265 = vshll.u32 %v4247, 16
  %v4267 = vrot.slane %v4265, 1
  %v4268 = vsel %vm3676, %v4263, %v4267
  %v4269 = vshrl.u32 %v4247, 16
  %v4271 = vor.u32 %v4269, %v4267
  %v4273 = vshll.u32 %v4248, 16
  %v4275 = vrot.slane %v4273, 1
  %v4276 = vsel %vm3676, %v4271, %v4275
  %v4277 = vshrl.u32 %v4248, 16
  %v4279 = vor.u32 %v4277, %v4275
  %v4281 = vshll.u32 %v4249, 16
  %v4283 = vrot.slane %v4281, 1
  %v4284 = vsel %vm3676, %v4279, %v4283
  %v4285 = vshrl.u32 %v4249, 16
  %v4287 = vor.u32 %v4285, %v4283
  %v4289 = vshll.u32 %v4250, 16
  %v4291 = vrot.slane %v4289, 1
  %v4292 = vsel %vm3676, %v4287, %v4291
  %v4293 = vshrl.u32 %v4250, 16
  %v4295 = vor.u32 %v4293, %v4291
  %v4297 = vshll.u32 %v4251, 16
  %v4299 = vrot.slane %v4297, 1
  %v4300 = vsel %vm3676, %v4295, %v4299
  %v4301 = vshrl.u32 %v4251, 16
  %v4303 = vor.u32 %v4301, %v4299
  %v4305 = vshll.u32 %v4252, 16
  %v4307 = vrot.slane %v4305, 1
  %v4308 = vsel %vm3676, %v4303, %v4307
  %v4309 = vshrl.u32 %v4252, 16
  %v4311 = vor.u32 %v4309, %v4307
  %v4313 = vshll.u32 %v4253, 16
  %v4315 = vrot.slane %v4313, 1
  %v4316 = vsel %vm3676, %v4311, %v4315
  %v4317 = vshrl.u32 %v4253, 16
  %v4319 = vor.u32 %v4317, %v4315
  %v4321 = vshll.u32 %v4254, 16
  %v4323 = vrot.slane %v4321, 1
  %v4324 = vsel %vm3676, %v4319, %v4323
  %v4325 = vshrl.u32 %v4254, 16
  %v4327 = vor.u32 %v4325, %v4323
  %v4329 = vshll.u32 %v4255, 16
  %v4331 = vrot.slane %v4329, 1
  %v4332 = vsel %vm3676, %v4327, %v4331
  %v4333 = vshrl.u32 %v4255, 16
  %v4335 = vor.u32 %v4333, %v4331
  %v4337 = vshll.u32 %v4256, 16
  %v4339 = vrot.slane %v4337, 1
  %v4340 = vsel %vm3676, %v4335, %v4339
  %4351 = vst.msk [vmem:[#allocation4 + $0x20] sm:$0xff] %vm18, %v4268
  %4352 = vst.msk [vmem:[#allocation4 + $0x48] sm:$0xff] %vm18, %v4276
  %4353 = vst.msk [vmem:[#allocation4 + $0x70] sm:$0xff] %vm18, %v4284
  %4354 = vst.msk [vmem:[#allocation4 + $0x98] sm:$0xff] %vm18, %v4292
  %4355 = vst.msk [vmem:[#allocation4 + $0xc0] sm:$0xff] %vm18, %v4300
  %4356 = vst.msk [vmem:[#allocation4 + $0xe8] sm:$0xff] %vm18, %v4308
  %4357 = vst.msk [vmem:[#allocation4 + $0x110] sm:$0xff] %vm18, %v4316
  %4358 = vst.msk [vmem:[#allocation4 + $0x138] sm:$0xff] %vm18, %v4324
  %4359 = vst.msk [vmem:[#allocation4 + $0x160] sm:$0xff] %vm18, %v4332
  %4360 = vst.msk [vmem:[#allocation4 + $0x188] sm:$0xff] %vm18, %v4340
  %v4361 = vld [vmem:[#allocation4] sm:$0xff]
  %v4362 = vld [vmem:[#allocation4 + $0x8] sm:$0xff]
  %v4363 = vld [vmem:[#allocation4 + $0x10] sm:$0xff]
  %v4364 = vld [vmem:[#allocation4 + $0x18] sm:$0xff]
  %v4365 = vld [vmem:[#allocation4 + $0x20] sm:$0xff]
  %v4366 = vld [vmem:[#allocation4 + $0x28] sm:$0xff]
  %v4367 = vld [vmem:[#allocation4 + $0x30] sm:$0xff]
  %v4368 = vld [vmem:[#allocation4 + $0x38] sm:$0xff]
  %v4369 = vld [vmem:[#allocation4 + $0x40] sm:$0xff]
  %v4370 = vld [vmem:[#allocation4 + $0x48] sm:$0xff]
  %v4371 = vld [vmem:[#allocation4 + $0x50] sm:$0xff]
  %v4372 = vld [vmem:[#allocation4 + $0x58] sm:$0xff]
  %v4373 = vld [vmem:[#allocation4 + $0x60] sm:$0xff]
  %v4374 = vld [vmem:[#allocation4 + $0x68] sm:$0xff]
  %v4375 = vld [vmem:[#allocation4 + $0x70] sm:$0xff]
  %v4376 = vld [vmem:[#allocation4 + $0x78] sm:$0xff]
  %v4377 = vld [vmem:[#allocation4 + $0x80] sm:$0xff]
  %v4378 = vld [vmem:[#allocation4 + $0x88] sm:$0xff]
  %v4379 = vld [vmem:[#allocation4 + $0x90] sm:$0xff]
  %v4380 = vld [vmem:[#allocation4 + $0x98] sm:$0xff]
  %v4381 = vld [vmem:[#allocation4 + $0xa0] sm:$0xff]
  %v4382 = vld [vmem:[#allocation4 + $0xa8] sm:$0xff]
  %v4383 = vld [vmem:[#allocation4 + $0xb0] sm:$0xff]
  %v4384 = vld [vmem:[#allocation4 + $0xb8] sm:$0xff]
  %v4385 = vld [vmem:[#allocation4 + $0xc0] sm:$0xff]
  %v4386 = vld [vmem:[#allocation4 + $0xc8] sm:$0xff]
  %v4387 = vld [vmem:[#allocation4 + $0xd0] sm:$0xff]
  %v4388 = vld [vmem:[#allocation4 + $0xd8] sm:$0xff]
  %v4389 = vld [vmem:[#allocation4 + $0xe0] sm:$0xff]
  %v4390 = vld [vmem:[#allocation4 + $0xe8] sm:$0xff]
  %v4391 = vld [vmem:[#allocation4 + $0xf0] sm:$0xff]
  %v4392 = vld [vmem:[#allocation4 + $0xf8] sm:$0xff]
  %v4393 = vld [vmem:[#allocation4 + $0x100] sm:$0xff]
  %v4394 = vld [vmem:[#allocation4 + $0x108] sm:$0xff]
  %v4395 = vld [vmem:[#allocation4 + $0x110] sm:$0xff]
  %v4396 = vld [vmem:[#allocation4 + $0x118] sm:$0xff]
  %v4397 = vld [vmem:[#allocation4 + $0x120] sm:$0xff]
  %v4398 = vld [vmem:[#allocation4 + $0x128] sm:$0xff]
  %v4399 = vld [vmem:[#allocation4 + $0x130] sm:$0xff]
  %v4400 = vld [vmem:[#allocation4 + $0x138] sm:$0xff]
  %v4401 = vld [vmem:[#allocation4 + $0x140] sm:$0xff]
  %v4402 = vld [vmem:[#allocation4 + $0x148] sm:$0xff]
  %v4403 = vld [vmem:[#allocation4 + $0x150] sm:$0xff]
  %v4404 = vld [vmem:[#allocation4 + $0x158] sm:$0xff]
  %v4405 = vld [vmem:[#allocation4 + $0x160] sm:$0xff]
  %v4406 = vld [vmem:[#allocation4 + $0x168] sm:$0xff]
  %v4407 = vld [vmem:[#allocation4 + $0x170] sm:$0xff]
  %v4408 = vld [vmem:[#allocation4 + $0x178] sm:$0xff]
  %v4409 = vld [vmem:[#allocation4 + $0x180] sm:$0xff]
  %v4410 = vld [vmem:[#allocation4 + $0x188] sm:$0xff]
  %v4412 = vlaneseq
  %v4413 = vshrl.u32 %v4412, 7
  %v4414 = vsub.s32 0, %v4413
  %v4415 = vrot.slane %v3487, %v4414
  %v4489 = vunpack.c.l.b16 %v3414
  %v4490 = vunpack.c.l.b16 %v3415
  %v4491 = vunpack.c.l.b16 %v3416
  %v4492 = vunpack.c.l.b16 %v3417
  %v4493 = vunpack.c.l.b16 %v3418
  %v4494 = vunpack.c.l.b16 %v3419
  %v4495 = vunpack.c.l.b16 %v3420
  %v4496 = vunpack.c.l.b16 %v3421
  %v4497 = vunpack.c.l.b16 %v3422
  %v4498 = vunpack.c.l.b16 %v3423
  %v4499 = vunpack.c.l.b16 %v3424
  %v4500 = vunpack.c.l.b16 %v3425
  %v4501 = vunpack.c.l.b16 %v3426
  %v4502 = vunpack.c.l.b16 %v3427
  %v4503 = vunpack.c.l.b16 %v3428
  %v4504 = vunpack.c.l.b16 %v3429
  %v4505 = vunpack.c.l.b16 %v3430
  %v4506 = vunpack.c.l.b16 %v3431
  %v4507 = vunpack.c.l.b16 %v3432
  %v4508 = vunpack.c.l.b16 %v3433
  %v4509 = vunpack.c.l.b16 %v3434
  %v4510 = vunpack.c.l.b16 %v3435
  %v4511 = vunpack.c.l.b16 %v3436
  %v4512 = vunpack.c.l.b16 %v3437
  %v4513 = vunpack.c.l.b16 %v3438
  %v4514 = vunpack.c.l.b16 %v3439
  %v4515 = vunpack.c.l.b16 %v3440
  %v4516 = vunpack.c.l.b16 %v3441
  %v4517 = vunpack.c.l.b16 %v3442
  %v4518 = vunpack.c.l.b16 %v3443
  %v4519 = vunpack.c.l.b16 %v3444
  %v4520 = vunpack.c.l.b16 %v3445
  %v4521 = vunpack.c.l.b16 %v3446
  %v4522 = vunpack.c.l.b16 %v3447
  %v4523 = vunpack.c.l.b16 %v3448
  %v4524 = vunpack.c.l.b16 %v3449
  %v4525 = vunpack.c.l.b16 %v3450
  %v4526 = vunpack.c.l.b16 %v3451
  %v4527 = vunpack.c.l.b16 %v3452
  %v4528 = vunpack.c.l.b16 %v3453
  %v4529 = vunpack.c.l.b16 %v3454
  %v4530 = vunpack.c.l.b16 %v3455
  %v4531 = vunpack.c.l.b16 %v3456
  %v4532 = vunpack.c.l.b16 %v3457
  %v4533 = vunpack.c.l.b16 %v3458
  %v4534 = vunpack.c.l.b16 %v3459
  %v4535 = vunpack.c.l.b16 %v3460
  %v4536 = vunpack.c.l.b16 %v3461
  %v4537 = vunpack.c.l.b16 %v3462
  %v4538 = vunpack.c.l.b16 %v3463
  %v4539 = vunpack.c.l.b16 %v3464
  %v4540 = vunpack.c.l.b16 %v3465
  %v4541 = vunpack.c.l.b16 %v3466
  %v4542 = vunpack.c.l.b16 %v3467
  %v4543 = vunpack.c.l.b16 %v3468
  %v4544 = vunpack.c.l.b16 %v3469
  %v4545 = vunpack.c.l.b16 %v3470
  %v4546 = vunpack.c.l.b16 %v3471
  %v4547 = vunpack.c.l.b16 %v3472
  %v4548 = vunpack.c.l.b16 %v3473
  %v4549 = vunpack.c.l.b16 %v3474
  %v4550 = vunpack.c.l.b16 %v3475
  %v4551 = vunpack.c.l.b16 %v3476
  %v4552 = vunpack.c.l.b16 %v3477
  %v4553 = vunpack.c.l.b16 %v3478
  %v4554 = vunpack.c.l.b16 %v3479
  %v4555 = vunpack.c.l.b16 %v3480
  %v4556 = vunpack.c.l.b16 %v3481
  %v4557 = vunpack.c.l.b16 %v3482
  %v4558 = vunpack.c.l.b16 %v3483
  %v4559 = vunpack.c.l.b16 %v3484
  %v4560 = vunpack.c.l.b16 %v3485
  %v4561 = vpack.c.b16 %v4490, %v4489
  %v4562 = vpack.c.b16 %v4492, %v4491
  %v4563 = vpack.c.b16 %v4494, %v4493
  %v4564 = vpack.c.b16 %v4496, %v4495
  %v4565 = vpack.c.b16 %v4498, %v4497
  %v4566 = vpack.c.b16 %v4500, %v4499
  %v4567 = vpack.c.b16 %v4502, %v4501
  %v4568 = vpack.c.b16 %v4504, %v4503
  %v4569 = vpack.c.b16 %v4506, %v4505
  %v4570 = vpack.c.b16 %v4508, %v4507
  %v4571 = vpack.c.b16 %v4510, %v4509
  %v4572 = vpack.c.b16 %v4512, %v4511
  %v4573 = vpack.c.b16 %v4514, %v4513
  %v4574 = vpack.c.b16 %v4516, %v4515
  %v4575 = vpack.c.b16 %v4518, %v4517
  %v4576 = vpack.c.b16 %v4520, %v4519
  %v4577 = vpack.c.b16 %v4522, %v4521
  %v4578 = vpack.c.b16 %v4524, %v4523
  %v4579 = vpack.c.b16 %v4526, %v4525
  %v4580 = vpack.c.b16 %v4528, %v4527
  %v4581 = vpack.c.b16 %v4530, %v4529
  %v4582 = vpack.c.b16 %v4532, %v4531
  %v4583 = vpack.c.b16 %v4534, %v4533
  %v4584 = vpack.c.b16 %v4536, %v4535
  %v4585 = vpack.c.b16 %v4538, %v4537
  %v4586 = vpack.c.b16 %v4540, %v4539
  %v4587 = vpack.c.b16 %v4542, %v4541
  %v4588 = vpack.c.b16 %v4544, %v4543
  %v4589 = vpack.c.b16 %v4546, %v4545
  %v4590 = vpack.c.b16 %v4548, %v4547
  %v4591 = vpack.c.b16 %v4550, %v4549
  %v4592 = vpack.c.b16 %v4552, %v4551
  %v4593 = vpack.c.b16 %v4554, %v4553
  %v4594 = vpack.c.b16 %v4556, %v4555
  %v4595 = vpack.c.b16 %v4558, %v4557
  %v4596 = vpack.c.b16 %v4560, %v4559
  %v4634 = vsel %vm18, %v4365, 0
  %v4637 = vsel %vm18, %v4370, 0
  %v4640 = vsel %vm18, %v4375, 0
  %v4643 = vsel %vm18, %v4380, 0
  %v4646 = vsel %vm18, %v4385, 0
  %v4649 = vsel %vm18, %v4390, 0
  %v4652 = vsel %vm18, %v4395, 0
  %v4655 = vsel %vm18, %v4400, 0
  %v4658 = vsel %vm18, %v4405, 0
  %v4661 = vsel %vm18, %v4410, 0
  %4663 = vmatprep.subr.bf16.mxu0 0
  %4664 = vmatpush1.bf16.msra.mxu0 %v4561
  %4665 = vmatprep.subr.bf16.mxu0 0
  %4666 = vmatpush1.bf16.msra.mxu0 %v4562
  %4667 = vmatprep.subr.bf16.mxu0 0
  %4668 = vmatpush1.bf16.msra.mxu0 %v4563
  %4669 = vmatprep.subr.bf16.mxu0 0
  %4670 = vmatpush1.bf16.msra.mxu0 %v4564
  %4671 = vmatprep.subr.bf16.mxu0 0
  %4672 = vmatpush1.bf16.msra.mxu0 %v4565
  %4673 = vmatprep.subr.bf16.mxu0 0
  %4674 = vmatpush1.bf16.msra.mxu0 %v4566
  %4675 = vmatprep.subr.bf16.mxu0 0
  %4676 = vmatpush1.bf16.msra.mxu0 %v4567
  %4677 = vmatprep.subr.bf16.mxu0 0
  %4678 = vmatpush1.bf16.msra.mxu0 %v4568
  %4679 = vmatprep.subr.bf16.mxu0 0
  %4680 = vmatpush1.bf16.msra.mxu0 %v4569
  %4681 = vmatprep.subr.bf16.mxu0 0
  %4682 = vmatpush1.bf16.msra.mxu0 %v4570
  %4683 = vmatprep.subr.bf16.mxu0 0
  %4684 = vmatpush1.bf16.msra.mxu0 %v4571
  %4685 = vmatprep.subr.bf16.mxu0 0
  %4686 = vmatpush1.bf16.msra.mxu0 %v4572
  %4687 = vmatprep.subr.bf16.mxu0 0
  %4688 = vmatpush1.bf16.msra.mxu0 %v4573
  %4689 = vmatprep.subr.bf16.mxu0 0
  %4690 = vmatpush1.bf16.msra.mxu0 %v4574
  %4691 = vmatprep.subr.bf16.mxu0 0
  %4692 = vmatpush1.bf16.msra.mxu0 %v4575
  %4693 = vmatprep.subr.bf16.mxu0 0
  %4694 = vmatpush1.bf16.msra.mxu0 %v4576
  %4695 = vmatprep.mubr.bf16.mxu0 %v4362
  %4696 = vmatmul.mubr.bf16.gmra.mrb[0].mxu0 %v4361
  %v4697 = vpop.f32.mrb[0].mxu0
  %v4698 = vpop.f32.mrb[0].mxu0
  %v4699 = vpop.f32.mrb[0].mxu0
  %v4700 = vpop.f32.mrb[0].mxu0
  %4701 = vmatprep.mubr.bf16.mxu0 %v4367
  %4702 = vmatmul.mubr.bf16.gmra.mrb[0].mxu0 %v4366
  %v4703 = vpop.f32.mrb[0].mxu0
  %v4704 = vadd.f32 %v4415, %v4703
  %v4705 = vpop.f32.mrb[0].mxu0
  %v4706 = vpop.f32.mrb[0].mxu0
  %v4707 = vadd.f32 %v4415, %v4706
  %v4708 = vpop.f32.mrb[0].mxu0
  %4709 = vmatprep.mubr.bf16.mxu0 %v4372
  %4710 = vmatmul.mubr.bf16.gmra.mrb[0].mxu0 %v4371
  %v4711 = vpop.f32.mrb[0].mxu0
  %v4712 = vadd.f32 %v4415, %v4711
  %v4713 = vpop.f32.mrb[0].mxu0
  %v4714 = vpop.f32.mrb[0].mxu0
  %v4715 = vadd.f32 %v4415, %v4714
  %v4716 = vpop.f32.mrb[0].mxu0
  %4717 = vmatprep.mubr.bf16.mxu0 %v4377
  %4718 = vmatmul.mubr.bf16.gmra.mrb[0].mxu0 %v4376
  %v4719 = vpop.f32.mrb[0].mxu0
  %v4720 = vadd.f32 %v4415, %v4719
  %v4721 = vpop.f32.mrb[0].mxu0
  %v4722 = vpop.f32.mrb[0].mxu0
  %v4723 = vadd.f32 %v4415, %v4722
  %v4724 = vpop.f32.mrb[0].mxu0
  %4725 = vmatprep.mubr.bf16.mxu0 %v4382
  %4726 = vmatmul.mubr.bf16.gmra.mrb[0].mxu0 %v4381
  %v4727 = vpop.f32.mrb[0].mxu0
  %v4728 = vadd.f32 %v4415, %v4727
  %v4729 = vpop.f32.mrb[0].mxu0
  %v4730 = vpop.f32.mrb[0].mxu0
  %v4731 = vadd.f32 %v4415, %v4730
  %v4732 = vpop.f32.mrb[0].mxu0
  %4733 = vmatprep.mubr.bf16.mxu0 %v4387
  %4734 = vmatmul.mubr.bf16.gmra.mrb[0].mxu0 %v4386
  %v4735 = vpop.f32.mrb[0].mxu0
  %v4736 = vadd.f32 %v4415, %v4735
  %v4737 = vpop.f32.mrb[0].mxu0
  %v4738 = vpop.f32.mrb[0].mxu0
  %v4739 = vadd.f32 %v4415, %v4738
  %v4740 = vpop.f32.mrb[0].mxu0
  %4741 = vmatprep.mubr.bf16.mxu0 %v4392
  %4742 = vmatmul.mubr.bf16.gmra.mrb[0].mxu0 %v4391
  %v4743 = vpop.f32.mrb[0].mxu0
  %v4744 = vadd.f32 %v4415, %v4743
  %v4745 = vpop.f32.mrb[0].mxu0
  %v4746 = vpop.f32.mrb[0].mxu0
  %v4747 = vadd.f32 %v4415, %v4746
  %v4748 = vpop.f32.mrb[0].mxu0
  %4749 = vmatprep.mubr.bf16.mxu0 %v4397
  %4750 = vmatmul.mubr.bf16.gmra.mrb[0].mxu0 %v4396
  %v4751 = vpop.f32.mrb[0].mxu0
  %v4752 = vadd.f32 %v4415, %v4751
  %v4753 = vpop.f32.mrb[0].mxu0
  %v4754 = vpop.f32.mrb[0].mxu0
  %v4755 = vadd.f32 %v4415, %v4754
  %v4756 = vpop.f32.mrb[0].mxu0
  %4757 = vmatprep.mubr.bf16.mxu0 %v4402
  %4758 = vmatmul.mubr.bf16.gmra.mrb[0].mxu0 %v4401
  %v4759 = vpop.f32.mrb[0].mxu0
  %v4760 = vadd.f32 %v4415, %v4759
  %v4761 = vpop.f32.mrb[0].mxu0
  %v4762 = vpop.f32.mrb[0].mxu0
  %v4763 = vadd.f32 %v4415, %v4762
  %v4764 = vpop.f32.mrb[0].mxu0
  %4765 = vmatprep.mubr.bf16.mxu0 %v4407
  %4766 = vmatmul.mubr.bf16.gmra.mrb[0].mxu0 %v4406
  %v4767 = vpop.f32.mrb[0].mxu0
  %v4768 = vpop.f32.mrb[0].mxu0
  %v4769 = vpop.f32.mrb[0].mxu0
  %v4770 = vpop.f32.mrb[0].mxu0
  %4771 = vdwg.mxu0
  %4772 = vmatprep.subr.bf16.mxu0 0
  %4773 = vmatpush1.bf16.msra.mxu0 %v4577
  %4774 = vmatprep.subr.bf16.mxu0 0
  %4775 = vmatpush1.bf16.msra.mxu0 %v4578
  %4776 = vmatprep.subr.bf16.mxu0 0
  %4777 = vmatpush1.bf16.msra.mxu0 %v4579
  %4778 = vmatprep.subr.bf16.mxu0 0
  %4779 = vmatpush1.bf16.msra.mxu0 %v4580
  %4780 = vmatprep.subr.bf16.mxu0 0
  %4781 = vmatpush1.bf16.msra.mxu0 %v4581
  %4782 = vmatprep.subr.bf16.mxu0 0
  %4783 = vmatpush1.bf16.msra.mxu0 %v4582
  %4784 = vmatprep.subr.bf16.mxu0 0
  %4785 = vmatpush1.bf16.msra.mxu0 %v4583
  %4786 = vmatprep.subr.bf16.mxu0 0
  %4787 = vmatpush1.bf16.msra.mxu0 %v4584
  %4788 = vmatprep.subr.bf16.mxu0 0
  %4789 = vmatpush1.bf16.msra.mxu0 %v4585
  %4790 = vmatprep.subr.bf16.mxu0 0
  %4791 = vmatpush1.bf16.msra.mxu0 %v4586
  %4792 = vmatprep.subr.bf16.mxu0 0
  %4793 = vmatpush1.bf16.msra.mxu0 %v4587
  %4794 = vmatprep.subr.bf16.mxu0 0
  %4795 = vmatpush1.bf16.msra.mxu0 %v4588
  %4796 = vmatprep.subr.bf16.mxu0 0
  %4797 = vmatpush1.bf16.msra.mxu0 %v4589
  %4798 = vmatprep.subr.bf16.mxu0 0
  %4799 = vmatpush1.bf16.msra.mxu0 %v4590
  %4800 = vmatprep.subr.bf16.mxu0 0
  %4801 = vmatpush1.bf16.msra.mxu0 %v4591
  %4802 = vmatprep.subr.bf16.mxu0 0
  %4803 = vmatpush1.bf16.msra.mxu0 %v4592
  %4804 = vmatprep.mubr.bf16.mxu0 %v4364
  %4805 = vmatmul.mubr.bf16.gmra.mrb[0].mxu0 %v4363
  %v4806 = vpop.f32.mrb[0].mxu0
  %v4807 = vpop.f32.mrb[0].mxu0
  %v4808 = vpop.f32.mrb[0].mxu0
  %v4809 = vpop.f32.mrb[0].mxu0
  %4810 = vmatprep.mubr.bf16.mxu0 %v4369
  %4811 = vmatmul.mubr.bf16.gmra.mrb[0].mxu0 %v4368
  %v4812 = vpop.f32.mrb[0].mxu0
  %v4813 = vadd.f32 %v4704, %v4812
  %v4814 = vpop.f32.mrb[0].mxu0
  %v4815 = vpop.f32.mrb[0].mxu0
  %v4816 = vadd.f32 %v4707, %v4815
  %v4817 = vpop.f32.mrb[0].mxu0
  %4818 = vmatprep.mubr.bf16.mxu0 %v4374
  %4819 = vmatmul.mubr.bf16.gmra.mrb[0].mxu0 %v4373
  %v4820 = vpop.f32.mrb[0].mxu0
  %v4821 = vadd.f32 %v4712, %v4820
  %v4822 = vpop.f32.mrb[0].mxu0
  %v4823 = vpop.f32.mrb[0].mxu0
  %v4824 = vadd.f32 %v4715, %v4823
  %v4825 = vpop.f32.mrb[0].mxu0
  %4826 = vmatprep.mubr.bf16.mxu0 %v4379
  %4827 = vmatmul.mubr.bf16.gmra.mrb[0].mxu0 %v4378
  %v4828 = vpop.f32.mrb[0].mxu0
  %v4829 = vadd.f32 %v4720, %v4828
  %v4830 = vpop.f32.mrb[0].mxu0
  %v4831 = vpop.f32.mrb[0].mxu0
  %v4832 = vadd.f32 %v4723, %v4831
  %v4833 = vpop.f32.mrb[0].mxu0
  %4834 = vmatprep.mubr.bf16.mxu0 %v4384
  %4835 = vmatmul.mubr.bf16.gmra.mrb[0].mxu0 %v4383
  %v4836 = vpop.f32.mrb[0].mxu0
  %v4837 = vadd.f32 %v4728, %v4836
  %v4838 = vpop.f32.mrb[0].mxu0
  %v4839 = vpop.f32.mrb[0].mxu0
  %v4840 = vadd.f32 %v4731, %v4839
  %v4841 = vpop.f32.mrb[0].mxu0
  %4842 = vmatprep.mubr.bf16.mxu0 %v4389
  %4843 = vmatmul.mubr.bf16.gmra.mrb[0].mxu0 %v4388
  %v4844 = vpop.f32.mrb[0].mxu0
  %v4845 = vadd.f32 %v4736, %v4844
  %v4846 = vpop.f32.mrb[0].mxu0
  %v4847 = vpop.f32.mrb[0].mxu0
  %v4848 = vadd.f32 %v4739, %v4847
  %v4849 = vpop.f32.mrb[0].mxu0
  %4850 = vmatprep.mubr.bf16.mxu0 %v4394
  %4851 = vmatmul.mubr.bf16.gmra.mrb[0].mxu0 %v4393
  %v4852 = vpop.f32.mrb[0].mxu0
  %v4853 = vadd.f32 %v4744, %v4852
  %v4854 = vpop.f32.mrb[0].mxu0
  %v4855 = vpop.f32.mrb[0].mxu0
  %v4856 = vadd.f32 %v4747, %v4855
  %v4857 = vpop.f32.mrb[0].mxu0
  %4858 = vmatprep.mubr.bf16.mxu0 %v4399
  %4859 = vmatmul.mubr.bf16.gmra.mrb[0].mxu0 %v4398
  %v4860 = vpop.f32.mrb[0].mxu0
  %v4861 = vadd.f32 %v4752, %v4860
  %v4862 = vpop.f32.mrb[0].mxu0
  %v4863 = vpop.f32.mrb[0].mxu0
  %v4864 = vadd.f32 %v4755, %v4863
  %v4865 = vpop.f32.mrb[0].mxu0
  %4866 = vmatprep.mubr.bf16.mxu0 %v4404
  %4867 = vmatmul.mubr.bf16.gmra.mrb[0].mxu0 %v4403
  %v4868 = vpop.f32.mrb[0].mxu0
  %v4869 = vadd.f32 %v4760, %v4868
  %v4870 = vpop.f32.mrb[0].mxu0
  %v4871 = vpop.f32.mrb[0].mxu0
  %v4872 = vadd.f32 %v4763, %v4871
  %v4873 = vpop.f32.mrb[0].mxu0
  %4874 = vmatprep.mubr.bf16.mxu0 %v4409
  %4875 = vmatmul.mubr.bf16.gmra.mrb[0].mxu0 %v4408
  %v4876 = vpop.f32.mrb[0].mxu0
  %v4877 = vpop.f32.mrb[0].mxu0
  %v4878 = vpop.f32.mrb[0].mxu0
  %v4879 = vpop.f32.mrb[0].mxu0
  %4880 = vdwg.mxu0
  %4881 = vmatprep.subr.bf16.mxu0 0
  %4882 = vmatpush1.bf16.msra.mxu0 %v4593
  %4883 = vmatprep.subr.bf16.mxu0 0
  %4884 = vmatpush1.bf16.msra.mxu0 %v4594
  %4885 = vmatprep.subr.bf16.mxu0 0
  %4886 = vmatpush1.bf16.msra.mxu0 %v4595
  %4887 = vmatprep.subr.bf16.mxu0 0
  %4888 = vmatpush1.bf16.msra.mxu0 %v4596
  %4889 = vmatprep.subr.bf16.mxu0 0
  %4890 = vmatpush1.bf16.msra.mxu0 0
  %4891 = vmatprep.subr.bf16.mxu0 0
  %4892 = vmatpush1.bf16.msra.mxu0 0
  %4893 = vmatprep.subr.bf16.mxu0 0
  %4894 = vmatpush1.bf16.msra.mxu0 0
  %4895 = vmatprep.subr.bf16.mxu0 0
  %4896 = vmatpush1.bf16.msra.mxu0 0
  %4897 = vmatprep.subr.bf16.mxu0 0
  %4898 = vmatpush1.bf16.msra.mxu0 0
  %4899 = vmatprep.subr.bf16.mxu0 0
  %4900 = vmatpush1.bf16.msra.mxu0 0
  %4901 = vmatprep.subr.bf16.mxu0 0
  %4902 = vmatpush1.bf16.msra.mxu0 0
  %4903 = vmatprep.subr.bf16.mxu0 0
  %4904 = vmatpush1.bf16.msra.mxu0 0
  %4905 = vmatprep.subr.bf16.mxu0 0
  %4906 = vmatpush1.bf16.msra.mxu0 0
  %4907 = vmatprep.subr.bf16.mxu0 0
  %4908 = vmatpush1.bf16.msra.mxu0 0
  %4909 = vmatprep.subr.bf16.mxu0 0
  %4910 = vmatpush1.bf16.msra.mxu0 0
  %4911 = vmatprep.subr.bf16.mxu0 0
  %4912 = vmatpush1.bf16.msra.mxu0 0
  %4913 = vmatprep.mubr.bf16.mxu0 0
  %4914 = vmatmul.mubr.bf16.gmra.mrb[0].mxu0 %v4634
  %v4915 = vpop.f32.mrb[0].mxu0
  %v4916 = vpop.f32.mrb[0].mxu0
  %v4917 = vpop.f32.mrb[0].mxu0
  %v4918 = vpop.f32.mrb[0].mxu0
  %4919 = vmatprep.mubr.bf16.mxu0 0
  %4920 = vmatmul.mubr.bf16.gmra.mrb[0].mxu0 %v4637
  %v4921 = vpop.f32.mrb[0].mxu0
  %v4922 = vadd.f32 %v4813, %v4921
  %v4923 = vpop.f32.mrb[0].mxu0
  %v4924 = vpop.f32.mrb[0].mxu0
  %v4925 = vadd.f32 %v4816, %v4924
  %v4926 = vpop.f32.mrb[0].mxu0
  %4927 = vmatprep.mubr.bf16.mxu0 0
  %4928 = vmatmul.mubr.bf16.gmra.mrb[0].mxu0 %v4640
  %v4929 = vpop.f32.mrb[0].mxu0
  %v4930 = vadd.f32 %v4821, %v4929
  %v4931 = vpop.f32.mrb[0].mxu0
  %v4932 = vpop.f32.mrb[0].mxu0
  %v4933 = vadd.f32 %v4824, %v4932
  %v4934 = vpop.f32.mrb[0].mxu0
  %4935 = vmatprep.mubr.bf16.mxu0 0
  %4936 = vmatmul.mubr.bf16.gmra.mrb[0].mxu0 %v4643
  %v4937 = vpop.f32.mrb[0].mxu0
  %v4938 = vadd.f32 %v4829, %v4937
  %v4939 = vpop.f32.mrb[0].mxu0
  %v4940 = vpop.f32.mrb[0].mxu0
  %v4941 = vadd.f32 %v4832, %v4940
  %v4942 = vpop.f32.mrb[0].mxu0
  %4943 = vmatprep.mubr.bf16.mxu0 0
  %4944 = vmatmul.mubr.bf16.gmra.mrb[0].mxu0 %v4646
  %v4945 = vpop.f32.mrb[0].mxu0
  %v4946 = vadd.f32 %v4837, %v4945
  %v4947 = vpop.f32.mrb[0].mxu0
  %v4948 = vpop.f32.mrb[0].mxu0
  %v4949 = vadd.f32 %v4840, %v4948
  %v4950 = vpop.f32.mrb[0].mxu0
  %4951 = vmatprep.mubr.bf16.mxu0 0
  %4952 = vmatmul.mubr.bf16.gmra.mrb[0].mxu0 %v4649
  %v4953 = vpop.f32.mrb[0].mxu0
  %v4954 = vadd.f32 %v4845, %v4953
  %v4955 = vpop.f32.mrb[0].mxu0
  %v4956 = vpop.f32.mrb[0].mxu0
  %v4957 = vadd.f32 %v4848, %v4956
  %v4958 = vpop.f32.mrb[0].mxu0
  %4959 = vmatprep.mubr.bf16.mxu0 0
  %4960 = vmatmul.mubr.bf16.gmra.mrb[0].mxu0 %v4652
  %v4961 = vpop.f32.mrb[0].mxu0
  %v4962 = vadd.f32 %v4853, %v4961
  %v4963 = vpop.f32.mrb[0].mxu0
  %v4964 = vpop.f32.mrb[0].mxu0
  %v4965 = vadd.f32 %v4856, %v4964
  %v4966 = vpop.f32.mrb[0].mxu0
  %4967 = vmatprep.mubr.bf16.mxu0 0
  %4968 = vmatmul.mubr.bf16.gmra.mrb[0].mxu0 %v4655
  %v4969 = vpop.f32.mrb[0].mxu0
  %v4970 = vadd.f32 %v4861, %v4969
  %v4971 = vpop.f32.mrb[0].mxu0
  %v4972 = vpop.f32.mrb[0].mxu0
  %v4973 = vadd.f32 %v4864, %v4972
  %v4974 = vpop.f32.mrb[0].mxu0
  %4975 = vmatprep.mubr.bf16.mxu0 0
  %4976 = vmatmul.mubr.bf16.gmra.mrb[0].mxu0 %v4658
  %v4977 = vpop.f32.mrb[0].mxu0
  %v4978 = vadd.f32 %v4869, %v4977
  %v4979 = vpop.f32.mrb[0].mxu0
  %v4980 = vpop.f32.mrb[0].mxu0
  %v4981 = vadd.f32 %v4872, %v4980
  %v4982 = vpop.f32.mrb[0].mxu0
  %4983 = vmatprep.mubr.bf16.mxu0 0
  %4984 = vmatmul.mubr.bf16.gmra.mrb[0].mxu0 %v4661
  %v4985 = vpop.f32.mrb[0].mxu0
  %v4986 = vpop.f32.mrb[0].mxu0
  %v4987 = vpop.f32.mrb[0].mxu0
  %v4988 = vpop.f32.mrb[0].mxu0
  %4989 = vdwg.mxu0
  %v4990 = vld [vmem:[%s3 + $0x10] sm:$0xff]
  %v4991 = vld [vmem:[%s3 + $0x18] sm:$0xff]
  %v4992 = vld [vmem:[%s3 + $0x20] sm:$0xff]
  %v4993 = vld [vmem:[%s3 + $0x28] sm:$0xff]
  %v4994 = vld [vmem:[%s3 + $0x30] sm:$0xff]
  %v4995 = vld [vmem:[%s3 + $0x38] sm:$0xff]
  %v4996 = vld [vmem:[%s3 + $0x40] sm:$0xff]
  %v4997 = vld [vmem:[%s3 + $0x48] sm:$0xff]
  %v4998 = vld [vmem:[%s3 + $0x50] sm:$0xff]
  %v4999 = vld [vmem:[%s3 + $0x58] sm:$0xff]
  %v5000 = vld [vmem:[%s3 + $0x60] sm:$0xff]
  %v5001 = vld [vmem:[%s3 + $0x68] sm:$0xff]
  %v5002 = vld [vmem:[%s3 + $0x70] sm:$0xff]
  %v5003 = vld [vmem:[%s3 + $0x78] sm:$0xff]
  %v5004 = vld [vmem:[%s3 + $0x80] sm:$0xff]
  %v5005 = vld [vmem:[%s3 + $0x88] sm:$0xff]
  %5007 = vset.pattern.permute.xlu0 0
  %5008 = vperm.xlu0 %5007, %v4990
  %v5009 = vpop.permute.xlu0 %5008
  %5012 = vset.pattern.permute.xlu0 0
  %5013 = vperm.xlu0 %5012, %v4991
  %v5014 = vpop.permute.xlu0 %5013
  %5017 = vset.pattern.permute.xlu0 0
  %5018 = vperm.xlu0 %5017, %v4992
  %v5019 = vpop.permute.xlu0 %5018
  %5022 = vset.pattern.permute.xlu0 0
  %5023 = vperm.xlu0 %5022, %v4993
  %v5024 = vpop.permute.xlu0 %5023
  %5027 = vset.pattern.permute.xlu0 0
  %5028 = vperm.xlu0 %5027, %v4994
  %v5029 = vpop.permute.xlu0 %5028
  %5032 = vset.pattern.permute.xlu0 0
  %5033 = vperm.xlu0 %5032, %v4995
  %v5034 = vpop.permute.xlu0 %5033
  %5037 = vset.pattern.permute.xlu0 0
  %5038 = vperm.xlu0 %5037, %v4996
  %v5039 = vpop.permute.xlu0 %5038
  %5042 = vset.pattern.permute.xlu0 0
  %5043 = vperm.xlu0 %5042, %v4997
  %v5044 = vpop.permute.xlu0 %5043
  %5047 = vset.pattern.permute.xlu0 0
  %5048 = vperm.xlu0 %5047, %v4998
  %v5049 = vpop.permute.xlu0 %5048
  %5052 = vset.pattern.permute.xlu0 0
  %5053 = vperm.xlu0 %5052, %v4999
  %v5054 = vpop.permute.xlu0 %5053
  %5057 = vset.pattern.permute.xlu0 0
  %5058 = vperm.xlu0 %5057, %v5000
  %v5059 = vpop.permute.xlu0 %5058
  %5062 = vset.pattern.permute.xlu0 0
  %5063 = vperm.xlu0 %5062, %v5001
  %v5064 = vpop.permute.xlu0 %5063
  %5067 = vset.pattern.permute.xlu0 0
  %5068 = vperm.xlu0 %5067, %v5002
  %v5069 = vpop.permute.xlu0 %5068
  %5072 = vset.pattern.permute.xlu0 0
  %5073 = vperm.xlu0 %5072, %v5003
  %v5074 = vpop.permute.xlu0 %5073
  %5077 = vset.pattern.permute.xlu0 0
  %5078 = vperm.xlu0 %5077, %v5004
  %v5079 = vpop.permute.xlu0 %5078
  %5082 = vset.pattern.permute.xlu0 0
  %5083 = vperm.xlu0 %5082, %v5005
  %v5084 = vpop.permute.xlu0 %5083
  %v5086 = vmul.f32 %v4922, %v5009
  %v5087 = vmul.f32 %v4925, %v5014
  %v5088 = vmul.f32 %v4930, %v5019
  %v5089 = vmul.f32 %v4933, %v5024
  %v5090 = vmul.f32 %v4938, %v5029
  %v5091 = vmul.f32 %v4941, %v5034
  %v5092 = vmul.f32 %v4946, %v5039
  %v5093 = vmul.f32 %v4949, %v5044
  %v5094 = vmul.f32 %v4954, %v5049
  %v5095 = vmul.f32 %v4957, %v5054
  %v5096 = vmul.f32 %v4962, %v5059
  %v5097 = vmul.f32 %v4965, %v5064
  %v5098 = vmul.f32 %v4970, %v5069
  %v5099 = vmul.f32 %v4973, %v5074
  %v5100 = vmul.f32 %v4978, %v5079
  %v5101 = vmul.f32 %v4981, %v5084
  %vm5102 = vcmask 523265
  %5103 = vst.msk [vmem:[%s4 - $0x1] sm:$0xfe] %vm5102, %v5086
  %vm5104 = vcmask 516096
  %5105 = vst.msk [vmem:[%s4 + $0x7] sm:$0x1] %vm5104, %v5087
  %5106 = vst.msk [vmem:[%s4 + $0x7] sm:$0xfe] %vm5102, %v5088
  %5107 = vst.msk [vmem:[%s4 + $0xf] sm:$0x1] %vm5104, %v5089
  %5108 = vst.msk [vmem:[%s4 + $0xf] sm:$0xfe] %vm5102, %v5090
  %5109 = vst.msk [vmem:[%s4 + $0x17] sm:$0x1] %vm5104, %v5091
  %5110 = vst.msk [vmem:[%s4 + $0x17] sm:$0xfe] %vm5102, %v5092
  %5111 = vst.msk [vmem:[%s4 + $0x1f] sm:$0x1] %vm5104, %v5093
  %5112 = vst.msk [vmem:[%s4 + $0x1f] sm:$0xfe] %vm5102, %v5094
  %5113 = vst.msk [vmem:[%s4 + $0x27] sm:$0x1] %vm5104, %v5095
  %5114 = vst.msk [vmem:[%s4 + $0x27] sm:$0xfe] %vm5102, %v5096
  %5115 = vst.msk [vmem:[%s4 + $0x2f] sm:$0x1] %vm5104, %v5097
  %5116 = vst.msk [vmem:[%s4 + $0x2f] sm:$0xfe] %vm5102, %v5098
  %5117 = vst.msk [vmem:[%s4 + $0x37] sm:$0x1] %vm5104, %v5099
  %5118 = vst.msk [vmem:[%s4 + $0x37] sm:$0xfe] %vm5102, %v5100
  %5119 = vst.msk [vmem:[%s4 + $0x3f] sm:$0x1] %vm5104, %v5101
  // Predicated region
  $region25: #{costnet_forward.3} parent=0 // pred_check
    _
  $region26: #{costnet_forward.3} parent=0 // pred_check_branch
    %5121 = sbr.rel (0) target = $region28
  $region27: #{costnet_forward.3} parent=0 // pred_region
    _
  $region28: #{costnet_forward.3} parent=0 // pred_fallthru
    _
  // Predicated region
  $region29: #{costnet_forward.3} parent=0 // pred_check
    _
  $region30: #{costnet_forward.3} parent=0 // pred_check_branch
    %5123 = sbr.rel (0) target = $region32
  $region31: #{costnet_forward.3} parent=0 // pred_region
    _
  $region32: #{costnet_forward.3} parent=0 // pred_fallthru
    _

</llo_original>
